<compile_context>
chip_gen: v7x
topology: tpu7x:2x2x1
jax: 0.10.0
libtpu: 0.0.40
codegen_flags: <defaults>
</compile_context>

<pallas_src>
import functools

import jax
import jax.numpy as jnp
from jax.experimental import pallas as pl
from jax.experimental.pallas import tpu as pltpu

BF16 = jnp.bfloat16
F32 = jnp.float32


# ----------------------------- math helpers (pure jnp, usable in-kernel) ----

def _gelu_exact(x):
    # PyTorch nn.GELU() default = exact erf-based GELU
    return 0.5 * x * (1.0 + jax.lax.erf(x * (1.0 / jnp.sqrt(2.0).astype(x.dtype))))


def _batchnorm_train(x2d, gamma, beta, eps=1e-5):
    # x2d: [N, D]; BatchNorm1d over channel dim D with batch statistics over N
    mean = jnp.mean(x2d, axis=0, keepdims=True)
    var = jnp.mean((x2d - mean) ** 2, axis=0, keepdims=True)
    return (x2d - mean) * jax.lax.rsqrt(var + eps) * gamma + beta


# ----------------------------- Pallas kernel --------------------------------

def encoder_kernel(x_ref, wp_w_ref, wp_b_ref, wpos_ref,
                   wqkv_ref, wo_ref, ff1_w_ref, ff2_w_ref, vec_ref,
                   xemb_ref, z_ref, attn_ref,
                   u_scr, prev_scr,
                   *, n_heads):
    layer = pl.program_id(0)                 # grid axis 0 = encoder layer index
    n_layers = pl.num_programs(0)
    B, L, P = x_ref.shape
    D = wp_w_ref.shape[-1]
    F = ff1_w_ref.shape[-1]
    H = n_heads
    dk = D // H
    scale = 1.0 / float(dk) ** 0.5

    # Packed per-layer vectors (one DMA per layer): rows of a (8, max(3D,F)) slab.
    vec = vec_ref[0]
    b_qkv = vec[0:1, :3 * D]
    b_o = vec[1:2, :D]
    bn1_g = vec[2:3, :D]
    bn1_b = vec[3:4, :D]
    ff1_b = vec[4:5, :F]
    ff2_b = vec[5:6, :D]
    bn2_g = vec[6:7, :D]
    bn2_b = vec[7:8, :D]

    # ---- layer 0: patch embedding + positional encoding, zero residual scores
    @pl.when(layer == 0)
    def _():
        x2d = x_ref[...].reshape(B * L, P).astype(BF16)
        emb = (jnp.dot(x2d, wp_w_ref[...], preferred_element_type=F32)
               + wp_b_ref[...])
        emb3 = emb.reshape(B, L, D)
        xemb_ref[...] = emb3                 # "x" returned (pre-positional-enc.)
        u_scr[...] = emb3 + wpos_ref[...]    # dropout(p=0) == identity
        prev_scr[...] = jnp.zeros_like(prev_scr)

    u2d = u_scr[...].reshape(B * L, D)
    u_bf = u2d.astype(BF16)

    # Fused QKV projection: one wide (B*L, D) @ (D, 3D) matmul per layer.
    qkv = jnp.dot(u_bf, wqkv_ref[0], preferred_element_type=F32) + b_qkv

    def split_heads(t2d):
        # (B*L, D) -> (H*B, L, dk), head-major batch ordering (x = h*B + b)
        t3 = t2d.reshape(B, L, D)
        return jnp.concatenate(
            [t3[:, :, h * dk:(h + 1) * dk] for h in range(H)], axis=0).astype(BF16)

    qh = split_heads(qkv[:, 0 * D:1 * D])
    kh = split_heads(qkv[:, 1 * D:2 * D])
    vh = split_heads(qkv[:, 2 * D:3 * D])

    # scores for all heads in one batched einsum (single batch dim = H*B)
    s = jnp.einsum('xld,xmd->xlm', qh, kh, preferred_element_type=F32) * scale
    s = s + prev_scr[...]                    # residual attention (zeros at layer 0)
    prev_scr[...] = s                        # carried to the next layer

    # softmax (attn_dropout = 0); reciprocal runs on the EUP slot
    m = jnp.max(s, axis=-1, keepdims=True)
    e = jnp.exp(s - m)
    w = e * pl.reciprocal(jnp.sum(e, axis=-1, keepdims=True), approx=True)

    # attention output for all heads in one batched einsum
    o = jnp.einsum('xlm,xmd->xld', w.astype(BF16), vh, preferred_element_type=F32)

    # merge heads on the lane axis -> single (B*L, D) @ (D, D) output projection
    o_cat = jnp.concatenate([o[h * B:(h + 1) * B] for h in range(H)], axis=-1)
    attn_out = (jnp.dot(o_cat.reshape(B * L, D).astype(BF16), wo_ref[0],
                        preferred_element_type=F32) + b_o)

    # residual + BatchNorm (post-norm, batch statistics)
    src = _batchnorm_train(u2d + attn_out, bn1_g, bn1_b)

    # position-wise FFN: Linear -> GELU -> Linear   (dropouts are p=0)
    h1 = (jnp.dot(src.astype(BF16), ff1_w_ref[0], preferred_element_type=F32)
          + ff1_b)
    h1 = _gelu_exact(h1)
    h2 = (jnp.dot(h1.astype(BF16), ff2_w_ref[0], preferred_element_type=F32)
          + ff2_b)

    # residual + BatchNorm
    src = _batchnorm_train(src + h2, bn2_g, bn2_b)
    u_scr[...] = src.reshape(B, L, D)

    # ---- last layer: emit encoder output and last-layer attention weights
    @pl.when(layer == n_layers - 1)
    def _():
        z_ref[...] = src.reshape(B, L, D)
        attn_ref[...] = w.reshape(H, B, L, L)


# ----------------------------- wrapper ---------------------------------------

def _vmem_limit_bytes():
    # Size the VMEM budget per TPU generation (~100 MiB v5e/v6e, ~56 MiB v7x).
    try:
        info = pltpu.get_tpu_info()
        cap = int(getattr(info, "vmem_capacity_bytes", 128 * 1024 * 1024))
        return int(min(cap - 8 * 1024 * 1024, 100 * 1024 * 1024))
    except Exception:
        return 64 * 1024 * 1024


def encoder_forward(x, params, *, n_heads, n_layers):
    """x: [bs, num_patch, n_vars, patch_len] (matches the PyTorch module input)."""
    bs, num_patch, n_vars, patch_len = x.shape
    d_model = params['wp_w'].shape[1]
    d_ff = params['ff1_w'].shape[-1]
    B, L = bs * n_vars, num_patch
    H, D, F = n_heads, d_model, d_ff
    Wv = max(3 * D, F)

    # torch: x = W_P(x); x = x.transpose(1,2); u = reshape(bs*n_vars, L, D)
    # equivalent layout glue on the *input* (W_P acts on the last dim only):
    x_b = jnp.transpose(x, (0, 2, 1, 3)).reshape(B, L, patch_len)

    # Fused QKV weight (bf16), one streamed block per layer.
    wqkv = jnp.concatenate([params['wq'], params['wk'], params['wv']],
                           axis=-1).astype(BF16)

    # Pack all small per-layer vectors into one (n_layers, 8, Wv) f32 slab.
    def row(v):                                  # (n_layers, 1, k) -> (n_layers, 1, Wv)
        return jnp.pad(v, ((0, 0), (0, 0), (0, Wv - v.shape[-1])))

    b_qkv = jnp.concatenate([params['bq'], params['bk'], params['bv']], axis=-1)
    vec_slab = jnp.concatenate(
        [row(b_qkv), row(params['bo']),
         row(params['bn1_g']), row(params['bn1_b']),
         row(params['ff1_b']), row(params['ff2_b']),
         row(params['bn2_g']), row(params['bn2_b'])], axis=1)   # (n_layers, 8, Wv)

    # Matmul weights in bf16 (full-rate MXU, half the streamed-weight VMEM);
    # biases / BN affine / positional encoding stay f32.
    inputs = (x_b,
              params['wp_w'].astype(BF16), params['wp_b'], params['wpos'],
              wqkv, params['wo'].astype(BF16),
              params['ff1_w'].astype(BF16), params['ff2_w'].astype(BF16),
              vec_slab)

    def resident(shape):          # same block every grid step (loaded once)
        nd = len(shape)
        return pl.BlockSpec(shape, lambda l, _nd=nd: (0,) * _nd)

    def streamed(tail):           # one layer's slice per grid step (double-buffered)
        nt = len(tail)
        return pl.BlockSpec((1,) + tail, lambda l, _nt=nt: (l,) + (0,) * _nt)

    in_specs = [
        resident((B, L, patch_len)),          # x
        resident((patch_len, D)),             # W_P weight
        resident((1, D)),                     # W_P bias
        resident((L, D)),                     # W_pos
        streamed((D, 3 * D)),                 # fused W_QKV
        streamed((D, D)),                     # W_O
        streamed((D, F)),                     # FF1 weight
        streamed((F, D)),                     # FF2 weight
        streamed((8, Wv)),                    # packed per-layer vectors
    ]

    out_shape = (jax.ShapeDtypeStruct((B, L, D), F32),      # embedding (pre-pos)
                 jax.ShapeDtypeStruct((B, L, D), F32),      # encoder output
                 jax.ShapeDtypeStruct((H, B, L, L), F32))   # last-layer attention
    out_specs = (resident((B, L, D)),
                 resident((B, L, D)),
                 resident((H, B, L, L)))

    grid_spec = pltpu.PrefetchScalarGridSpec(
        num_scalar_prefetch=0,
        grid=(n_layers,),
        in_specs=in_specs,
        out_specs=out_specs,
        scratch_shapes=[pltpu.VMEM((B, L, D), F32),         # activation carry
                        pltpu.VMEM((H * B, L, L), F32)])    # residual-attn scores

    flops = (2 * B * L * patch_len * D
             + n_layers * (2 * B * L * D * 3 * D            # fused qkv
                           + 2 * B * L * D * D              # output projection
                           + 4 * B * L * L * D              # score + attn-value
                           + 4 * B * L * D * F))            # FFN
    transcendentals = n_layers * (B * H * L * L + B * L * F)
    bytes_accessed = (sum(int(a.size) * a.dtype.itemsize for a in inputs)
                      + 4 * (2 * B * L * D + H * B * L * L))

    kernel = functools.partial(encoder_kernel, n_heads=n_heads)
    xemb_bld, z_bld, attn_hbll = pl.pallas_call(
        kernel,
        out_shape=out_shape,
        grid_spec=grid_spec,
        compiler_params=pltpu.CompilerParams(
            dimension_semantics=("arbitrary",),              # layers are sequential
            vmem_limit_bytes=_vmem_limit_bytes()),
        cost_estimate=pl.CostEstimate(flops=flops,
                                      transcendentals=transcendentals,
                                      bytes_accessed=bytes_accessed),
    )(*inputs)

    # torch: z = reshape(-1, n_vars, L, D).permute(0,1,3,2)
    z = z_bld.reshape(bs, n_vars, L, D).transpose(0, 1, 3, 2)
    # torch: return x.transpose(2,3) where x was [bs, n_vars, L, D]
    x_tr = xemb_bld.reshape(bs, n_vars, L, D).transpose(0, 1, 3, 2)
    attn = attn_hbll.transpose(1, 0, 2, 3)       # (H, B, L, L) -> (B, H, L, L)
    return z, x_tr, attn


# ----------------------------- parameters ------------------------------------

def init_params(key, *, patch_len, d_model, n_heads, d_ff, num_patch, n_layers):
    ks = jax.random.split(key, 16)

    def lin(k, shape, scale=0.05):
        return jax.random.normal(k, shape, F32) * scale

    p = {}
    # patch embedding Linear(patch_len, d_model)  -- stored (in, out)
    p['wp_w'] = lin(ks[0], (patch_len, d_model))
    p['wp_b'] = lin(ks[1], (1, d_model))
    # positional encoding 'zeros' -> uniform(-0.02, 0.02), shape (num_patch, d_model)
    p['wpos'] = jax.random.uniform(ks[2], (num_patch, d_model), F32, -0.02, 0.02)
    # per-layer attention projections (in, out)
    p['wq'] = lin(ks[3], (n_layers, d_model, d_model))
    p['bq'] = lin(ks[4], (n_layers, 1, d_model))
    p['wk'] = lin(ks[5], (n_layers, d_model, d_model))
    p['bk'] = lin(ks[6], (n_layers, 1, d_model))
    p['wv'] = lin(ks[7], (n_layers, d_model, d_model))
    p['bv'] = lin(ks[8], (n_layers, 1, d_model))
    p['wo'] = lin(ks[9], (n_layers, d_model, d_model))
    p['bo'] = lin(ks[10], (n_layers, 1, d_model))
    # BatchNorm affine params (PyTorch init: weight=1, bias=0)
    p['bn1_g'] = jnp.ones((n_layers, 1, d_model), F32)
    p['bn1_b'] = jnp.zeros((n_layers, 1, d_model), F32)
    p['bn2_g'] = jnp.ones((n_layers, 1, d_model), F32)
    p['bn2_b'] = jnp.zeros((n_layers, 1, d_model), F32)
    # FFN
    p['ff1_w'] = lin(ks[11], (n_layers, d_model, d_ff))
    p['ff1_b'] = lin(ks[12], (n_layers, 1, d_ff))
    p['ff2_w'] = lin(ks[13], (n_layers, d_ff, d_model))
    p['ff2_b'] = lin(ks[14], (n_layers, 1, d_model))
    return p


# ----------------------------- pure-JAX reference (sanity check) -------------

def encoder_reference(x, params, *, n_heads, n_layers):
    bs, num_patch, n_vars, patch_len = x.shape
    d_model = params['wp_w'].shape[1]
    B, L = bs * n_vars, num_patch
    dk = d_model // n_heads
    scale = 1.0 / float(dk) ** 0.5

    xb = jnp.transpose(x, (0, 2, 1, 3)).reshape(B, L, patch_len)
    emb = xb @ params['wp_w'] + params['wp_b']
    u = emb + params['wpos']

    prev = None
    attn_w = None
    for l in range(n_layers):
        q = (u @ params['wq'][l] + params['bq'][l]).reshape(B, L, n_heads, dk)
        k = (u @ params['wk'][l] + params['bk'][l]).reshape(B, L, n_heads, dk)
        v = (u @ params['wv'][l] + params['bv'][l]).reshape(B, L, n_heads, dk)
        s = jnp.einsum('bqhd,bkhd->bhqk', q, k) * scale
        if prev is not None:
            s = s + prev
        w = jax.nn.softmax(s, axis=-1)
        o = jnp.einsum('bhqk,bkhd->bqhd', w, v).reshape(B, L, d_model)
        o = o @ params['wo'][l] + params['bo'][l]
        prev, attn_w = s, w

        src = (u + o).reshape(B * L, d_model)
        src = _batchnorm_train(src, params['bn1_g'][l], params['bn1_b'][l])
        h1 = _gelu_exact(src @ params['ff1_w'][l] + params['ff1_b'][l])
        h2 = h1 @ params['ff2_w'][l] + params['ff2_b'][l]
        src = _batchnorm_train(src + h2, params['bn2_g'][l], params['bn2_b'][l])
        u = src.reshape(B, L, d_model)

    z = u.reshape(bs, n_vars, L, d_model).transpose(0, 1, 3, 2)
    x_tr = emb.reshape(bs, n_vars, L, d_model).transpose(0, 1, 3, 2)
    return z, x_tr, attn_w


# ----------------------------- main -------------------------------------------

if __name__ == "__main__":
    bs, num_patch, n_vars, patch_len = 2, 8, 4, 16
    d_model, n_heads, d_ff, n_layers = 32, 4, 64, 2

    key = jax.random.PRNGKey(0)
    kx, kp = jax.random.split(key)
    x = jax.random.normal(kx, (bs, num_patch, n_vars, patch_len), F32)
    params = init_params(kp, patch_len=patch_len, d_model=d_model, n_heads=n_heads,
                         d_ff=d_ff, num_patch=num_patch, n_layers=n_layers)

    z, x_tr, attn = encoder_forward(x, params, n_heads=n_heads, n_layers=n_layers)
    jax.block_until_ready((z, x_tr, attn))

    assert z.shape == (bs, n_vars, d_model, num_patch)
    assert x_tr.shape == (bs, n_vars, d_model, num_patch)
    assert attn.shape == (bs * n_vars, n_heads, num_patch, num_patch)

    z_ref, x_tr_ref, a_ref = encoder_reference(x, params, n_heads=n_heads,
                                               n_layers=n_layers)
    # bf16 matmuls (f32 accumulation) + approx reciprocal vs f32 reference
    assert jnp.allclose(z, z_ref, atol=3e-2, rtol=3e-2)
    assert jnp.allclose(x_tr, x_tr_ref, atol=3e-2, rtol=3e-2)
    assert jnp.allclose(attn, a_ref, atol=3e-2, rtol=3e-2)

    print("KERNEL_OK")
</pallas_src>

<mosaic_0001>
module attributes {stable_mosaic.version = 11 : i64} {
  func.func @encoder_kernel(%arg0: i32, %arg1: memref<8x8x16xf32, #tpu.memory_space<vmem>>, %arg2: memref<16x32xbf16, #tpu.memory_space<vmem>>, %arg3: memref<1x32xf32, #tpu.memory_space<vmem>>, %arg4: memref<8x32xf32, #tpu.memory_space<vmem>>, %arg5: memref<1x32x96xbf16, #tpu.memory_space<vmem>>, %arg6: memref<1x32x32xbf16, #tpu.memory_space<vmem>>, %arg7: memref<1x32x64xbf16, #tpu.memory_space<vmem>>, %arg8: memref<1x64x32xbf16, #tpu.memory_space<vmem>>, %arg9: memref<1x8x96xf32, #tpu.memory_space<vmem>>, %arg10: memref<8x8x32xf32, #tpu.memory_space<vmem>>, %arg11: memref<8x8x32xf32, #tpu.memory_space<vmem>>, %arg12: memref<4x8x8x8xf32, #tpu.memory_space<vmem>>, %arg13: memref<8x8x32xf32, #tpu.memory_space<vmem>>, %arg14: memref<32x8x8xf32, #tpu.memory_space<vmem>>) attributes {dimension_semantics = [#tpu.dimension_semantics<arbitrary>], iteration_bounds = array<i64: 2>, scalar_prefetch = 0 : i64, scratch_operands = 2 : i64, tpu.core_type = #tpu.core_type<tc>, window_params = [{pipeline_mode = #tpu.pipeline_mode<synchronous>, transform_indices = @transform_0, window_bounds = array<i64: 8, 8, 16>}, {pipeline_mode = #tpu.pipeline_mode<synchronous>, transform_indices = @transform_1, window_bounds = array<i64: 16, 32>}, {pipeline_mode = #tpu.pipeline_mode<synchronous>, transform_indices = @transform_2, window_bounds = array<i64: 1, 32>}, {pipeline_mode = #tpu.pipeline_mode<synchronous>, transform_indices = @transform_3, window_bounds = array<i64: 8, 32>}, {transform_indices = @transform_4, window_bounds = array<i64: 1, 32, 96>}, {transform_indices = @transform_5, window_bounds = array<i64: 1, 32, 32>}, {transform_indices = @transform_6, window_bounds = array<i64: 1, 32, 64>}, {transform_indices = @transform_7, window_bounds = array<i64: 1, 64, 32>}, {transform_indices = @transform_8, window_bounds = array<i64: 1, 8, 96>}, {pipeline_mode = #tpu.pipeline_mode<synchronous>, transform_indices = @transform_9, window_bounds = array<i64: 8, 8, 32>}, {pipeline_mode = #tpu.pipeline_mode<synchronous>, transform_indices = @transform_10, window_bounds = array<i64: 8, 8, 32>}, {pipeline_mode = #tpu.pipeline_mode<synchronous>, transform_indices = @transform_11, window_bounds = array<i64: 4, 8, 8, 8>}]} {
    %c0 = arith.constant 0 : index
    %c0_0 = arith.constant 0 : index
    %c0_1 = arith.constant 0 : index
    %0 = vector.load %arg9[%c0, %c0_0, %c0_1] : memref<1x8x96xf32, #tpu.memory_space<vmem>>, vector<1x8x96xf32>
    %1 = vector.shape_cast %0 : vector<1x8x96xf32> to vector<8x96xf32>
    %2 = vector.extract_strided_slice %1 {offsets = [0, 0], sizes = [1, 96], strides = [1, 1]} : vector<8x96xf32> to vector<1x96xf32>
    %3 = vector.extract_strided_slice %1 {offsets = [1, 0], sizes = [1, 32], strides = [1, 1]} : vector<8x96xf32> to vector<1x32xf32>
    %4 = vector.extract_strided_slice %1 {offsets = [2, 0], sizes = [1, 32], strides = [1, 1]} : vector<8x96xf32> to vector<1x32xf32>
    %5 = vector.extract_strided_slice %1 {offsets = [3, 0], sizes = [1, 32], strides = [1, 1]} : vector<8x96xf32> to vector<1x32xf32>
    %6 = vector.extract_strided_slice %1 {offsets = [4, 0], sizes = [1, 64], strides = [1, 1]} : vector<8x96xf32> to vector<1x64xf32>
    %7 = vector.extract_strided_slice %1 {offsets = [5, 0], sizes = [1, 32], strides = [1, 1]} : vector<8x96xf32> to vector<1x32xf32>
    %8 = vector.extract_strided_slice %1 {offsets = [6, 0], sizes = [1, 32], strides = [1, 1]} : vector<8x96xf32> to vector<1x32xf32>
    %9 = vector.extract_strided_slice %1 {offsets = [7, 0], sizes = [1, 32], strides = [1, 1]} : vector<8x96xf32> to vector<1x32xf32>
    %c0_i32 = arith.constant 0 : i32
    %10 = arith.cmpi eq, %arg0, %c0_i32 : i32
    %11 = arith.extui %10 : i1 to i32
    %c0_i32_2 = arith.constant 0 : i32
    %12 = arith.cmpi ne, %11, %c0_i32_2 : i32
    scf.if %12 {
      %c0_50 = arith.constant 0 : index
      %c0_51 = arith.constant 0 : index
      %c0_52 = arith.constant 0 : index
      %148 = vector.load %arg1[%c0_50, %c0_51, %c0_52] : memref<8x8x16xf32, #tpu.memory_space<vmem>>, vector<8x8x16xf32>
      %149 = vector.shape_cast %148 : vector<8x8x16xf32> to vector<64x16xf32>
      %150 = arith.truncf %149 : vector<64x16xf32> to vector<64x16xbf16>
      %c0_53 = arith.constant 0 : index
      %c0_54 = arith.constant 0 : index
      %151 = vector.load %arg2[%c0_53, %c0_54] : memref<16x32xbf16, #tpu.memory_space<vmem>>, vector<16x32xbf16>
      %cst_55 = arith.constant dense<0.000000e+00> : vector<64x32xf32>
      %152 = tpu.matmul %150, %151, %cst_55 {dimension_numbers = #tpu.dot_dimension_numbers<[1], [0], [0], [1], [0, 0, 1, 1], [], []>} : vector<64x16xbf16>, vector<16x32xbf16>, vector<64x32xf32> -> vector<64x32xf32>
      %c0_56 = arith.constant 0 : index
      %c0_57 = arith.constant 0 : index
      %153 = vector.load %arg3[%c0_56, %c0_57] : memref<1x32xf32, #tpu.memory_space<vmem>>, vector<1x32xf32>
      %154 = vector.broadcast %153 : vector<1x32xf32> to vector<64x32xf32>
      %155 = arith.addf %152, %154 : vector<64x32xf32>
      %156 = vector.shape_cast %155 : vector<64x32xf32> to vector<8x8x32xf32>
      %c0_58 = arith.constant 0 : index
      %c0_59 = arith.constant 0 : index
      %c0_60 = arith.constant 0 : index
      %157 = vector.load %arg10[%c0_58, %c0_59, %c0_60] : memref<8x8x32xf32, #tpu.memory_space<vmem>>, vector<8x8x32xf32>
      tpu.vector_store %arg10[%c0_58, %c0_59, %c0_60], %156 {strides = array<i32>} : memref<8x8x32xf32, #tpu.memory_space<vmem>>, vector<8x8x32xf32>,
      %c0_61 = arith.constant 0 : index
      %c0_62 = arith.constant 0 : index
      %158 = vector.load %arg4[%c0_61, %c0_62] : memref<8x32xf32, #tpu.memory_space<vmem>>, vector<8x32xf32>
      %159 = vector.shape_cast %158 : vector<8x32xf32> to vector<1x8x32xf32>
      %160 = vector.broadcast %159 : vector<1x8x32xf32> to vector<8x8x32xf32>
      %161 = arith.addf %156, %160 : vector<8x8x32xf32>
      %c0_63 = arith.constant 0 : index
      %c0_64 = arith.constant 0 : index
      %c0_65 = arith.constant 0 : index
      %162 = vector.load %arg13[%c0_63, %c0_64, %c0_65] : memref<8x8x32xf32, #tpu.memory_space<vmem>>, vector<8x8x32xf32>
      tpu.vector_store %arg13[%c0_63, %c0_64, %c0_65], %161 {strides = array<i32>} : memref<8x8x32xf32, #tpu.memory_space<vmem>>, vector<8x8x32xf32>,
      %cst_66 = arith.constant 0.000000e+00 : f32
      %163 = vector.broadcast %cst_66 : f32 to vector<32x8x8xf32>
      %c0_67 = arith.constant 0 : index
      %c0_68 = arith.constant 0 : index
      %c0_69 = arith.constant 0 : index
      %164 = vector.load %arg14[%c0_67, %c0_68, %c0_69] : memref<32x8x8xf32, #tpu.memory_space<vmem>>, vector<32x8x8xf32>
      tpu.vector_store %arg14[%c0_67, %c0_68, %c0_69], %163 {strides = array<i32>} : memref<32x8x8xf32, #tpu.memory_space<vmem>>, vector<32x8x8xf32>,
    } else {
    }
    %c0_3 = arith.constant 0 : index
    %c0_4 = arith.constant 0 : index
    %c0_5 = arith.constant 0 : index
    %13 = vector.load %arg13[%c0_3, %c0_4, %c0_5] : memref<8x8x32xf32, #tpu.memory_space<vmem>>, vector<8x8x32xf32>
    %14 = vector.shape_cast %13 : vector<8x8x32xf32> to vector<64x32xf32>
    %15 = arith.truncf %14 : vector<64x32xf32> to vector<64x32xbf16>
    %c0_6 = arith.constant 0 : index
    %c0_7 = arith.constant 0 : index
    %c0_8 = arith.constant 0 : index
    %16 = vector.load %arg5[%c0_6, %c0_7, %c0_8] : memref<1x32x96xbf16, #tpu.memory_space<vmem>>, vector<1x32x96xbf16>
    %17 = vector.shape_cast %16 : vector<1x32x96xbf16> to vector<32x96xbf16>
    %cst = arith.constant dense<0.000000e+00> : vector<64x96xf32>
    %18 = tpu.matmul %15, %17, %cst {dimension_numbers = #tpu.dot_dimension_numbers<[1], [0], [0], [1], [0, 0, 1, 1], [], []>} : vector<64x32xbf16>, vector<32x96xbf16>, vector<64x96xf32> -> vector<64x96xf32>
    %19 = vector.broadcast %2 : vector<1x96xf32> to vector<64x96xf32>
    %20 = arith.addf %18, %19 : vector<64x96xf32>
    %21 = vector.extract_strided_slice %20 {offsets = [0, 0], sizes = [64, 32], strides = [1, 1]} : vector<64x96xf32> to vector<64x32xf32>
    %22 = vector.shape_cast %21 : vector<64x32xf32> to vector<8x8x32xf32>
    %23 = vector.extract_strided_slice %22 {offsets = [0, 0, 0], sizes = [8, 8, 8], strides = [1, 1, 1]} : vector<8x8x32xf32> to vector<8x8x8xf32>
    %24 = vector.extract_strided_slice %22 {offsets = [0, 0, 8], sizes = [8, 8, 8], strides = [1, 1, 1]} : vector<8x8x32xf32> to vector<8x8x8xf32>
    %25 = vector.extract_strided_slice %22 {offsets = [0, 0, 16], sizes = [8, 8, 8], strides = [1, 1, 1]} : vector<8x8x32xf32> to vector<8x8x8xf32>
    %26 = vector.extract_strided_slice %22 {offsets = [0, 0, 24], sizes = [8, 8, 8], strides = [1, 1, 1]} : vector<8x8x32xf32> to vector<8x8x8xf32>
    %27 = tpu.concatenate %23, %24, %25, %26 in 0 : vector<8x8x8xf32>, vector<8x8x8xf32>, vector<8x8x8xf32>, vector<8x8x8xf32> -> vector<32x8x8xf32>
    %28 = arith.truncf %27 : vector<32x8x8xf32> to vector<32x8x8xbf16>
    %29 = vector.extract_strided_slice %20 {offsets = [0, 32], sizes = [64, 32], strides = [1, 1]} : vector<64x96xf32> to vector<64x32xf32>
    %30 = vector.shape_cast %29 : vector<64x32xf32> to vector<8x8x32xf32>
    %31 = vector.extract_strided_slice %30 {offsets = [0, 0, 0], sizes = [8, 8, 8], strides = [1, 1, 1]} : vector<8x8x32xf32> to vector<8x8x8xf32>
    %32 = vector.extract_strided_slice %30 {offsets = [0, 0, 8], sizes = [8, 8, 8], strides = [1, 1, 1]} : vector<8x8x32xf32> to vector<8x8x8xf32>
    %33 = vector.extract_strided_slice %30 {offsets = [0, 0, 16], sizes = [8, 8, 8], strides = [1, 1, 1]} : vector<8x8x32xf32> to vector<8x8x8xf32>
    %34 = vector.extract_strided_slice %30 {offsets = [0, 0, 24], sizes = [8, 8, 8], strides = [1, 1, 1]} : vector<8x8x32xf32> to vector<8x8x8xf32>
    %35 = tpu.concatenate %31, %32, %33, %34 in 0 : vector<8x8x8xf32>, vector<8x8x8xf32>, vector<8x8x8xf32>, vector<8x8x8xf32> -> vector<32x8x8xf32>
    %36 = arith.truncf %35 : vector<32x8x8xf32> to vector<32x8x8xbf16>
    %37 = vector.extract_strided_slice %20 {offsets = [0, 64], sizes = [64, 32], strides = [1, 1]} : vector<64x96xf32> to vector<64x32xf32>
    %38 = vector.shape_cast %37 : vector<64x32xf32> to vector<8x8x32xf32>
    %39 = vector.extract_strided_slice %38 {offsets = [0, 0, 0], sizes = [8, 8, 8], strides = [1, 1, 1]} : vector<8x8x32xf32> to vector<8x8x8xf32>
    %40 = vector.extract_strided_slice %38 {offsets = [0, 0, 8], sizes = [8, 8, 8], strides = [1, 1, 1]} : vector<8x8x32xf32> to vector<8x8x8xf32>
    %41 = vector.extract_strided_slice %38 {offsets = [0, 0, 16], sizes = [8, 8, 8], strides = [1, 1, 1]} : vector<8x8x32xf32> to vector<8x8x8xf32>
    %42 = vector.extract_strided_slice %38 {offsets = [0, 0, 24], sizes = [8, 8, 8], strides = [1, 1, 1]} : vector<8x8x32xf32> to vector<8x8x8xf32>
    %43 = tpu.concatenate %39, %40, %41, %42 in 0 : vector<8x8x8xf32>, vector<8x8x8xf32>, vector<8x8x8xf32>, vector<8x8x8xf32> -> vector<32x8x8xf32>
    %44 = arith.truncf %43 : vector<32x8x8xf32> to vector<32x8x8xbf16>
    "tpu.trace_start"() <{level = 10 : i32, message = "xld,xmd->xlm"}> : () -> ()
    %cst_9 = arith.constant dense<0.000000e+00> : vector<32x8x8xf32>
    %45 = tpu.matmul %28, %36, %cst_9 {dimension_numbers = #tpu.dot_dimension_numbers<[2], [2], [1], [1], [0, 0, 0, 1, 1, 1], [0], [0]>} : vector<32x8x8xbf16>, vector<32x8x8xbf16>, vector<32x8x8xf32> -> vector<32x8x8xf32>
    "tpu.trace_stop"() : () -> ()
    %cst_10 = arith.constant 0.353553385 : f32
    %46 = vector.broadcast %cst_10 : f32 to vector<32x8x8xf32>
    %47 = arith.mulf %45, %46 : vector<32x8x8xf32>
    %c0_11 = arith.constant 0 : index
    %c0_12 = arith.constant 0 : index
    %c0_13 = arith.constant 0 : index
    %48 = vector.load %arg14[%c0_11, %c0_12, %c0_13] : memref<32x8x8xf32, #tpu.memory_space<vmem>>, vector<32x8x8xf32>
    %49 = arith.addf %47, %48 : vector<32x8x8xf32>
    %c0_14 = arith.constant 0 : index
    %c0_15 = arith.constant 0 : index
    %c0_16 = arith.constant 0 : index
    %50 = vector.load %arg14[%c0_14, %c0_15, %c0_16] : memref<32x8x8xf32, #tpu.memory_space<vmem>>, vector<32x8x8xf32>
    tpu.vector_store %arg14[%c0_14, %c0_15, %c0_16], %49 {strides = array<i32>} : memref<32x8x8xf32, #tpu.memory_space<vmem>>, vector<32x8x8xf32>,
    %cst_17 = arith.constant dense<0xFF800000> : vector<32x8xf32>
    %51 = vector.multi_reduction <maximumf>, %49, %cst_17 [2] : vector<32x8x8xf32> to vector<32x8xf32>
    %52 = vector.shape_cast %51 : vector<32x8xf32> to vector<32x8x1xf32>
    %53 = vector.broadcast %52 : vector<32x8x1xf32> to vector<32x8x8xf32>
    %54 = arith.subf %49, %53 : vector<32x8x8xf32>
    %55 = math.exp %54 : vector<32x8x8xf32>
    %cst_18 = arith.constant dense<0.000000e+00> : vector<32x8xf32>
    %56 = vector.multi_reduction <add>, %55, %cst_18 [2] : vector<32x8x8xf32> to vector<32x8xf32>
    %57 = vector.shape_cast %56 : vector<32x8xf32> to vector<32x8x1xf32>
    %58 = tpu.reciprocal %57 {approx = true} : vector<32x8x1xf32> -> vector<32x8x1xf32>
    %59 = vector.broadcast %58 : vector<32x8x1xf32> to vector<32x8x8xf32>
    %60 = arith.mulf %55, %59 : vector<32x8x8xf32>
    %61 = arith.truncf %60 : vector<32x8x8xf32> to vector<32x8x8xbf16>
    "tpu.trace_start"() <{level = 10 : i32, message = "xlm,xmd->xld"}> : () -> ()
    %cst_19 = arith.constant dense<0.000000e+00> : vector<32x8x8xf32>
    %62 = tpu.matmul %61, %44, %cst_19 {dimension_numbers = #tpu.dot_dimension_numbers<[2], [1], [1], [2], [0, 0, 0, 1, 1, 2], [0], [0]>} : vector<32x8x8xbf16>, vector<32x8x8xbf16>, vector<32x8x8xf32> -> vector<32x8x8xf32>
    "tpu.trace_stop"() : () -> ()
    %63 = vector.extract_strided_slice %62 {offsets = [0, 0, 0], sizes = [8, 8, 8], strides = [1, 1, 1]} : vector<32x8x8xf32> to vector<8x8x8xf32>
    %64 = vector.extract_strided_slice %62 {offsets = [8, 0, 0], sizes = [8, 8, 8], strides = [1, 1, 1]} : vector<32x8x8xf32> to vector<8x8x8xf32>
    %65 = vector.extract_strided_slice %62 {offsets = [16, 0, 0], sizes = [8, 8, 8], strides = [1, 1, 1]} : vector<32x8x8xf32> to vector<8x8x8xf32>
    %66 = vector.extract_strided_slice %62 {offsets = [24, 0, 0], sizes = [8, 8, 8], strides = [1, 1, 1]} : vector<32x8x8xf32> to vector<8x8x8xf32>
    %67 = tpu.concatenate %63, %64, %65, %66 in 2 : vector<8x8x8xf32>, vector<8x8x8xf32>, vector<8x8x8xf32>, vector<8x8x8xf32> -> vector<8x8x32xf32>
    %68 = vector.shape_cast %67 : vector<8x8x32xf32> to vector<64x32xf32>
    %69 = arith.truncf %68 : vector<64x32xf32> to vector<64x32xbf16>
    %c0_20 = arith.constant 0 : index
    %c0_21 = arith.constant 0 : index
    %c0_22 = arith.constant 0 : index
    %70 = vector.load %arg6[%c0_20, %c0_21, %c0_22] : memref<1x32x32xbf16, #tpu.memory_space<vmem>>, vector<1x32x32xbf16>
    %71 = vector.shape_cast %70 : vector<1x32x32xbf16> to vector<32x32xbf16>
    %cst_23 = arith.constant dense<0.000000e+00> : vector<64x32xf32>
    %72 = tpu.matmul %69, %71, %cst_23 {dimension_numbers = #tpu.dot_dimension_numbers<[1], [0], [0], [1], [0, 0, 1, 1], [], []>} : vector<64x32xbf16>, vector<32x32xbf16>, vector<64x32xf32> -> vector<64x32xf32>
    %73 = vector.broadcast %3 : vector<1x32xf32> to vector<64x32xf32>
    %74 = arith.addf %72, %73 : vector<64x32xf32>
    %75 = arith.addf %14, %74 : vector<64x32xf32>
    %cst_24 = arith.constant dense<0.000000e+00> : vector<32xf32>
    %76 = vector.multi_reduction <add>, %75, %cst_24 [0] : vector<64x32xf32> to vector<32xf32>
    %77 = vector.shape_cast %76 : vector<32xf32> to vector<1x32xf32>
    %cst_25 = arith.constant 6.400000e+01 : f32
    %78 = vector.broadcast %cst_25 : f32 to vector<1x32xf32>
    %79 = arith.divf %77, %78 : vector<1x32xf32>
    %80 = vector.broadcast %79 : vector<1x32xf32> to vector<64x32xf32>
    %81 = arith.subf %75, %80 : vector<64x32xf32>
    %82 = arith.mulf %81, %81 : vector<64x32xf32>
    %cst_26 = arith.constant dense<0.000000e+00> : vector<32xf32>
    %83 = vector.multi_reduction <add>, %82, %cst_26 [0] : vector<64x32xf32> to vector<32xf32>
    %84 = vector.shape_cast %83 : vector<32xf32> to vector<1x32xf32>
    %cst_27 = arith.constant 6.400000e+01 : f32
    %85 = vector.broadcast %cst_27 : f32 to vector<1x32xf32>
    %86 = arith.divf %84, %85 : vector<1x32xf32>
    %87 = vector.broadcast %79 : vector<1x32xf32> to vector<64x32xf32>
    %88 = arith.subf %75, %87 : vector<64x32xf32>
    %cst_28 = arith.constant 9.99999974E-6 : f32
    %89 = vector.broadcast %cst_28 : f32 to vector<1x32xf32>
    %90 = arith.addf %86, %89 : vector<1x32xf32>
    %91 = math.rsqrt %90 : vector<1x32xf32>
    %92 = vector.broadcast %91 : vector<1x32xf32> to vector<64x32xf32>
    %93 = arith.mulf %88, %92 : vector<64x32xf32>
    %94 = vector.broadcast %4 : vector<1x32xf32> to vector<64x32xf32>
    %95 = arith.mulf %93, %94 : vector<64x32xf32>
    %96 = vector.broadcast %5 : vector<1x32xf32> to vector<64x32xf32>
    %97 = arith.addf %95, %96 : vector<64x32xf32>
    %98 = arith.truncf %97 : vector<64x32xf32> to vector<64x32xbf16>
    %c0_29 = arith.constant 0 : index
    %c0_30 = arith.constant 0 : index
    %c0_31 = arith.constant 0 : index
    %99 = vector.load %arg7[%c0_29, %c0_30, %c0_31] : memref<1x32x64xbf16, #tpu.memory_space<vmem>>, vector<1x32x64xbf16>
    %100 = vector.shape_cast %99 : vector<1x32x64xbf16> to vector<32x64xbf16>
    %cst_32 = arith.constant dense<0.000000e+00> : vector<64x64xf32>
    %101 = tpu.matmul %98, %100, %cst_32 {dimension_numbers = #tpu.dot_dimension_numbers<[1], [0], [0], [1], [0, 0, 1, 1], [], []>} : vector<64x32xbf16>, vector<32x64xbf16>, vector<64x64xf32> -> vector<64x64xf32>
    %102 = vector.broadcast %6 : vector<1x64xf32> to vector<64x64xf32>
    %103 = arith.addf %101, %102 : vector<64x64xf32>
    %cst_33 = arith.constant 5.000000e-01 : f32
    %104 = vector.broadcast %cst_33 : f32 to vector<64x64xf32>
    %105 = arith.mulf %104, %103 : vector<64x64xf32>
    %cst_34 = arith.constant 2.000000e+00 : f32
    %106 = math.sqrt %cst_34 : f32
    %cst_35 = arith.constant 1.000000e+00 : f32
    %107 = arith.divf %cst_35, %106 : f32
    %108 = vector.broadcast %107 : f32 to vector<64x64xf32>
    %109 = arith.mulf %103, %108 : vector<64x64xf32>
    %110 = math.erf %109 : vector<64x64xf32>
    %cst_36 = arith.constant 1.000000e+00 : f32
    %111 = vector.broadcast %cst_36 : f32 to vector<64x64xf32>
    %112 = arith.addf %111, %110 : vector<64x64xf32>
    %113 = arith.mulf %105, %112 : vector<64x64xf32>
    %114 = arith.truncf %113 : vector<64x64xf32> to vector<64x64xbf16>
    %c0_37 = arith.constant 0 : index
    %c0_38 = arith.constant 0 : index
    %c0_39 = arith.constant 0 : index
    %115 = vector.load %arg8[%c0_37, %c0_38, %c0_39] : memref<1x64x32xbf16, #tpu.memory_space<vmem>>, vector<1x64x32xbf16>
    %116 = vector.shape_cast %115 : vector<1x64x32xbf16> to vector<64x32xbf16>
    %cst_40 = arith.constant dense<0.000000e+00> : vector<64x32xf32>
    %117 = tpu.matmul %114, %116, %cst_40 {dimension_numbers = #tpu.dot_dimension_numbers<[1], [0], [0], [1], [0, 0, 1, 1], [], []>} : vector<64x64xbf16>, vector<64x32xbf16>, vector<64x32xf32> -> vector<64x32xf32>
    %118 = vector.broadcast %7 : vector<1x32xf32> to vector<64x32xf32>
    %119 = arith.addf %117, %118 : vector<64x32xf32>
    %120 = arith.addf %97, %119 : vector<64x32xf32>
    %cst_41 = arith.constant dense<0.000000e+00> : vector<32xf32>
    %121 = vector.multi_reduction <add>, %120, %cst_41 [0] : vector<64x32xf32> to vector<32xf32>
    %122 = vector.shape_cast %121 : vector<32xf32> to vector<1x32xf32>
    %cst_42 = arith.constant 6.400000e+01 : f32
    %123 = vector.broadcast %cst_42 : f32 to vector<1x32xf32>
    %124 = arith.divf %122, %123 : vector<1x32xf32>
    %125 = vector.broadcast %124 : vector<1x32xf32> to vector<64x32xf32>
    %126 = arith.subf %120, %125 : vector<64x32xf32>
    %127 = arith.mulf %126, %126 : vector<64x32xf32>
    %cst_43 = arith.constant dense<0.000000e+00> : vector<32xf32>
    %128 = vector.multi_reduction <add>, %127, %cst_43 [0] : vector<64x32xf32> to vector<32xf32>
    %129 = vector.shape_cast %128 : vector<32xf32> to vector<1x32xf32>
    %cst_44 = arith.constant 6.400000e+01 : f32
    %130 = vector.broadcast %cst_44 : f32 to vector<1x32xf32>
    %131 = arith.divf %129, %130 : vector<1x32xf32>
    %132 = vector.broadcast %124 : vector<1x32xf32> to vector<64x32xf32>
    %133 = arith.subf %120, %132 : vector<64x32xf32>
    %cst_45 = arith.constant 9.99999974E-6 : f32
    %134 = vector.broadcast %cst_45 : f32 to vector<1x32xf32>
    %135 = arith.addf %131, %134 : vector<1x32xf32>
    %136 = math.rsqrt %135 : vector<1x32xf32>
    %137 = vector.broadcast %136 : vector<1x32xf32> to vector<64x32xf32>
    %138 = arith.mulf %133, %137 : vector<64x32xf32>
    %139 = vector.broadcast %8 : vector<1x32xf32> to vector<64x32xf32>
    %140 = arith.mulf %138, %139 : vector<64x32xf32>
    %141 = vector.broadcast %9 : vector<1x32xf32> to vector<64x32xf32>
    %142 = arith.addf %140, %141 : vector<64x32xf32>
    %143 = vector.shape_cast %142 : vector<64x32xf32> to vector<8x8x32xf32>
    %c0_46 = arith.constant 0 : index
    %c0_47 = arith.constant 0 : index
    %c0_48 = arith.constant 0 : index
    %144 = vector.load %arg13[%c0_46, %c0_47, %c0_48] : memref<8x8x32xf32, #tpu.memory_space<vmem>>, vector<8x8x32xf32>
    tpu.vector_store %arg13[%c0_46, %c0_47, %c0_48], %143 {strides = array<i32>} : memref<8x8x32xf32, #tpu.memory_space<vmem>>, vector<8x8x32xf32>,
    %c1_i32 = arith.constant 1 : i32
    %145 = arith.cmpi eq, %arg0, %c1_i32 : i32
    %146 = arith.extui %145 : i1 to i32
    %c0_i32_49 = arith.constant 0 : i32
    %147 = arith.cmpi ne, %146, %c0_i32_49 : i32
    scf.if %147 {
      %148 = vector.shape_cast %142 : vector<64x32xf32> to vector<8x8x32xf32>
      %c0_50 = arith.constant 0 : index
      %c0_51 = arith.constant 0 : index
      %c0_52 = arith.constant 0 : index
      %149 = vector.load %arg11[%c0_50, %c0_51, %c0_52] : memref<8x8x32xf32, #tpu.memory_space<vmem>>, vector<8x8x32xf32>
      tpu.vector_store %arg11[%c0_50, %c0_51, %c0_52], %148 {strides = array<i32>} : memref<8x8x32xf32, #tpu.memory_space<vmem>>, vector<8x8x32xf32>,
      %150 = vector.shape_cast %60 : vector<32x8x8xf32> to vector<4x8x8x8xf32>
      %c0_53 = arith.constant 0 : index
      %c0_54 = arith.constant 0 : index
      %c0_55 = arith.constant 0 : index
      %c0_56 = arith.constant 0 : index
      %151 = vector.load %arg12[%c0_53, %c0_54, %c0_55, %c0_56] : memref<4x8x8x8xf32, #tpu.memory_space<vmem>>, vector<4x8x8x8xf32>
      tpu.vector_store %arg12[%c0_53, %c0_54, %c0_55, %c0_56], %150 {strides = array<i32>} : memref<4x8x8x8xf32, #tpu.memory_space<vmem>>, vector<4x8x8x8xf32>,
    } else {
    }
    return
  }
  func.func @transform_0(%arg0: i32) -> (i32, i32, i32) {
    %c0_i32 = arith.constant 0 : i32
    %c0_i32_0 = arith.constant 0 : i32
    %c0_i32_1 = arith.constant 0 : i32
    %c0_i32_2 = arith.constant 0 : i32
    return %c0_i32, %c0_i32_0, %c0_i32_1 : i32, i32, i32
  }
  func.func @transform_1(%arg0: i32) -> (i32, i32) {
    %c0_i32 = arith.constant 0 : i32
    %c0_i32_0 = arith.constant 0 : i32
    %c0_i32_1 = arith.constant 0 : i32
    return %c0_i32, %c0_i32_0 : i32, i32
  }
  func.func @transform_2(%arg0: i32) -> (i32, i32) {
    %c0_i32 = arith.constant 0 : i32
    %c0_i32_0 = arith.constant 0 : i32
    %c0_i32_1 = arith.constant 0 : i32
    return %c0_i32, %c0_i32_0 : i32, i32
  }
  func.func @transform_3(%arg0: i32) -> (i32, i32) {
    %c0_i32 = arith.constant 0 : i32
    %c0_i32_0 = arith.constant 0 : i32
    %c0_i32_1 = arith.constant 0 : i32
    return %c0_i32, %c0_i32_0 : i32, i32
  }
  func.func @transform_4(%arg0: i32) -> (i32, i32, i32) {
    %c0_i32 = arith.constant 0 : i32
    %c0_i32_0 = arith.constant 0 : i32
    %c0_i32_1 = arith.constant 0 : i32
    return %arg0, %c0_i32, %c0_i32_0 : i32, i32, i32
  }
  func.func @transform_5(%arg0: i32) -> (i32, i32, i32) {
    %c0_i32 = arith.constant 0 : i32
    %c0_i32_0 = arith.constant 0 : i32
    %c0_i32_1 = arith.constant 0 : i32
    return %arg0, %c0_i32, %c0_i32_0 : i32, i32, i32
  }
  func.func @transform_6(%arg0: i32) -> (i32, i32, i32) {
    %c0_i32 = arith.constant 0 : i32
    %c0_i32_0 = arith.constant 0 : i32
    %c0_i32_1 = arith.constant 0 : i32
    return %arg0, %c0_i32, %c0_i32_0 : i32, i32, i32
  }
  func.func @transform_7(%arg0: i32) -> (i32, i32, i32) {
    %c0_i32 = arith.constant 0 : i32
    %c0_i32_0 = arith.constant 0 : i32
    %c0_i32_1 = arith.constant 0 : i32
    return %arg0, %c0_i32, %c0_i32_0 : i32, i32, i32
  }
  func.func @transform_8(%arg0: i32) -> (i32, i32, i32) {
    %c0_i32 = arith.constant 0 : i32
    %c0_i32_0 = arith.constant 0 : i32
    %c0_i32_1 = arith.constant 0 : i32
    return %arg0, %c0_i32, %c0_i32_0 : i32, i32, i32
  }
  func.func @transform_9(%arg0: i32) -> (i32, i32, i32) {
    %c0_i32 = arith.constant 0 : i32
    %c0_i32_0 = arith.constant 0 : i32
    %c0_i32_1 = arith.constant 0 : i32
    %c0_i32_2 = arith.constant 0 : i32
    return %c0_i32, %c0_i32_0, %c0_i32_1 : i32, i32, i32
  }
  func.func @transform_10(%arg0: i32) -> (i32, i32, i32) {
    %c0_i32 = arith.constant 0 : i32
    %c0_i32_0 = arith.constant 0 : i32
    %c0_i32_1 = arith.constant 0 : i32
    %c0_i32_2 = arith.constant 0 : i32
    return %c0_i32, %c0_i32_0, %c0_i32_1 : i32, i32, i32
  }
  func.func @transform_11(%arg0: i32) -> (i32, i32, i32, i32) {
    %c0_i32 = arith.constant 0 : i32
    %c0_i32_0 = arith.constant 0 : i32
    %c0_i32_1 = arith.constant 0 : i32
    %c0_i32_2 = arith.constant 0 : i32
    %c0_i32_3 = arith.constant 0 : i32
    return %c0_i32, %c0_i32_0, %c0_i32_1, %c0_i32_2 : i32, i32, i32, i32
  }
}

</mosaic_0001>

<llo_original>
// kernel: tpu_custom_call.1
$region0: #{tpu_custom_call.1}
  #allocation0 [shape = 'u32[]', space=smem, size = 0x4, offset = 0x4, fixed_abs, tag = 'smem constant byte address 0x4 - core index']
  #allocation1 [shape = 'u32[144,128]{1,0:T(1,128)}', space=vmem, size = 0x12000, scoped, tag = 'internal scratch']
  #allocation2 [shape = 'f32[8,8,32]{2,1,0:T(8,128)}', space=vmem, size = 0x8000, scoped, tag = 'scratch operand']
  #allocation3 [shape = 'f32[32,8,8]{2,1,0:T(8,128)}', space=vmem, size = 0x20000, scoped, tag = 'scratch operand']
  %s0 = inlined_call_operand.hbm [shape: f32[8,8,16], index: 0, kind: input, shape index: {}]
  %s1 = inlined_call_operand.hbm [shape: bf16[16,32], index: 1, kind: input, shape index: {}]
  %s2 = inlined_call_operand.hbm [shape: f32[1,32], index: 2, kind: input, shape index: {}]
  %s3 = inlined_call_operand.hbm [shape: f32[8,32], index: 3, kind: input, shape index: {}]
  %s4 = inlined_call_operand.hbm [shape: bf16[2,32,96], index: 4, kind: input, shape index: {}]
  %s5 = inlined_call_operand.hbm [shape: bf16[2,32,32], index: 5, kind: input, shape index: {}]
  %s6 = inlined_call_operand.hbm [shape: bf16[2,32,64], index: 6, kind: input, shape index: {}]
  %s7 = inlined_call_operand.hbm [shape: bf16[2,64,32], index: 7, kind: input, shape index: {}]
  %s8 = inlined_call_operand.hbm [shape: f32[2,8,96], index: 8, kind: input, shape index: {}]
  %s9 = inlined_call_operand.hbm [shape: f32[8,8,32], index: 9, kind: output, shape index: {0}]
  %s10 = inlined_call_operand.hbm [shape: f32[8,8,32], index: 10, kind: output, shape index: {1}]
  %s11 = inlined_call_operand.hbm [shape: f32[4,8,8,8], index: 11, kind: output, shape index: {2}]
  %12 = xla_tuple %s9, %s10, %s11
  %s13 = sld [smem:[#allocation0]]
  $region129: #{tpu_custom_call.1} parent=0
    _
  %s15 = ssub.s32 1, %s13
  %s16 = scalar_select 0, %s15, %s13
  $region1: #{tpu_custom_call.1} parent=0
    #allocation4 [shape = 'u8[32768]{0}', space=vmem, size = 0x8000, scoped, tag = 'input window, operand 0, single buffered']
    #allocation5 [shape = 's32[2]{0}', space=sflag, size = 0x8, scoped, tag = 'scoped memory for tpu_custom_call.1']
    #allocation6 [shape = 's32[2]{0}', space=sflag, size = 0x8, scoped, tag = 'scoped memory for tpu_custom_call.1']
    #allocation7 [shape = 'u8[4096]{0}', space=vmem, size = 0x1000, scoped, tag = 'input window, operand 1, single buffered']
    #allocation8 [shape = 's32[1]{0}', space=sflag, size = 0x4, scoped, tag = 'scoped memory for tpu_custom_call.1']
    #allocation9 [shape = 'u8[512]{0}', space=vmem, size = 0x400, scoped, tag = 'input window, operand 2, single buffered']
    #allocation10 [shape = 'u8[4096]{0}', space=vmem, size = 0x1000, scoped, tag = 'input window, operand 3, single buffered']
    #allocation11 [shape = 's32[1]{0}', space=sflag, size = 0x4, scoped, tag = 'scoped memory for tpu_custom_call.1']
    #allocation12 [shape = 'u8[16384]{0}', space=vmem, size = 0x4000, scoped, tag = 'input window, operand 4']
    #allocation13 [shape = 'u8[16384]{0}', space=vmem, size = 0x4000, scoped, tag = 'input window, operand 5']
    #allocation14 [shape = 'u8[16384]{0}', space=vmem, size = 0x4000, scoped, tag = 'input window, operand 6']
    #allocation15 [shape = 'u8[32768]{0}', space=vmem, size = 0x8000, scoped, tag = 'input window, operand 7']
    #allocation16 [shape = 'u8[8192]{0}', space=vmem, size = 0x2000, scoped, tag = 'input window, operand 8']
    #allocation17 [shape = 'u8[32768]{0}', space=vmem, size = 0x8000, scoped, tag = 'output window, operand 0, single buffered']
    #allocation18 [shape = 'u8[32768]{0}', space=vmem, size = 0x8000, scoped, tag = 'output window, operand 1, single buffered']
    #allocation19 [shape = 's32[1]{0}', space=sflag, size = 0x4, scoped, tag = 'scoped memory for tpu_custom_call.1']
    #allocation20 [shape = 'u8[131072]{0}', space=vmem, size = 0x20000, scoped, tag = 'output window, operand 2, single buffered']
    %17 = vsyncpa [#allocation5], 0
    %18 = vsyncpa [#allocation8], 0
    %19 = vsyncpa [#allocation11], 0
    %20 = vsyncpa [#allocation6], 0
    %21 = vsyncpa [#allocation19], 0
    loop: start=0, step=1, limit=4
    $region2: #{tpu_custom_call.1} parent=1 // loop_pre_header
      _
    $region3: #{tpu_custom_call.1} parent=1 // loop_header
      %s23 = sphi 0, %s27
      %p24 = scmp.ge.s32.totalorder %s23, 4
      %s31 = sphi 0, %s31
      %s33 = sphi 0, %s31
      %s34 = sphi 0, %s33
      %s48 = sphi 0, %s34
      %s52 = sphi 0, %s52
      %s54 = sphi 0, %s52
      %s55 = sphi 0, %s54
      %s69 = sphi 0, %s55
      %s73 = sphi 0, %s73
      %s75 = sphi 0, %s73
      %s76 = sphi 0, %s75
      %s90 = sphi 0, %s76
      %s94 = sphi 0, %s94
      %s96 = sphi 0, %s94
      %s97 = sphi 0, %s96
      %s111 = sphi 0, %s97
      %s117 = sphi 0, %s119
      %s120 = sphi 0, %s117
      %s121 = sphi 0, %s120
      %s137 = sphi 0, %s121
      %s143 = sphi 0, %s145
      %s146 = sphi 0, %s143
      %s147 = sphi 0, %s146
      %s163 = sphi 0, %s147
      %s169 = sphi 0, %s171
      %s172 = sphi 0, %s169
      %s173 = sphi 0, %s172
      %s189 = sphi 0, %s173
      %s195 = sphi 0, %s197
      %s198 = sphi 0, %s195
      %s199 = sphi 0, %s198
      %s215 = sphi 0, %s199
      %s221 = sphi 0, %s223
      %s224 = sphi 0, %s221
      %s225 = sphi 0, %s224
      %s241 = sphi 0, %s225
      %s245 = sphi 0, %s245
      %s247 = sphi 0, %s245
      %s248 = sphi 0, %s247
      %s262 = sphi 0, %s248
      %s266 = sphi 0, %s266
      %s268 = sphi 0, %s266
      %s269 = sphi 0, %s268
      %s283 = sphi 0, %s269
      %s287 = sphi 0, %s287
      %s289 = sphi 0, %s287
      %s290 = sphi 0, %s289
      %s304 = sphi 0, %s290
    $region4: #{tpu_custom_call.1} parent=1 // loop_header_branch
      %26 = sbr.rel (%p24) target = $region8
    $region5: #{tpu_custom_call.1} parent=1 // loop_body
      %s28 = ssub.s32 %s23, 1
      %s29 = ssub.s32 %s23, 2
      %s30 = sadd.s32 %s23, 1
      %s32 = sadd.s32 %s31, 1
      %p35 = scmp.eq.s32.totalorder %s23, 1
      %p36 = scmp.ne.s32.totalorder %s31, %s33
      %p37 = scmp.eq.s32.totalorder %s23, 0
      %p38 = por %p36, %p37
      %p39 = scmp.ne.s32.totalorder %s31, %s33
      %p40 = scmp.eq.s32.totalorder %s28, 1
      %p41 = por %p39, %p40
      %p42 = scmp.ne.s32.totalorder %s33, %s34
      %p43 = scmp.eq.s32.totalorder %s28, 0
      %p44 = por %p42, %p43
      %p45 = scmp.ne.s32.totalorder %s33, %s34
      %p46 = scmp.eq.s32.totalorder %s29, 1
      %p47 = por %p45, %p46
      %p49 = scmp.ne.s32.totalorder %s34, %s48
      %p50 = scmp.eq.s32.totalorder %s29, 0
      %p51 = por %p49, %p50
      %s53 = sadd.s32 %s52, 1
      %p56 = scmp.eq.s32.totalorder %s23, 1
      %p57 = scmp.ne.s32.totalorder %s52, %s54
      %p58 = scmp.eq.s32.totalorder %s23, 0
      %p59 = por %p57, %p58
      %p60 = scmp.ne.s32.totalorder %s52, %s54
      %p61 = scmp.eq.s32.totalorder %s28, 1
      %p62 = por %p60, %p61
      %p63 = scmp.ne.s32.totalorder %s54, %s55
      %p64 = scmp.eq.s32.totalorder %s28, 0
      %p65 = por %p63, %p64
      %p66 = scmp.ne.s32.totalorder %s54, %s55
      %p67 = scmp.eq.s32.totalorder %s29, 1
      %p68 = por %p66, %p67
      %p70 = scmp.ne.s32.totalorder %s55, %s69
      %p71 = scmp.eq.s32.totalorder %s29, 0
      %p72 = por %p70, %p71
      %s74 = sadd.s32 %s73, 1
      %p77 = scmp.eq.s32.totalorder %s23, 1
      %p78 = scmp.ne.s32.totalorder %s73, %s75
      %p79 = scmp.eq.s32.totalorder %s23, 0
      %p80 = por %p78, %p79
      %p81 = scmp.ne.s32.totalorder %s73, %s75
      %p82 = scmp.eq.s32.totalorder %s28, 1
      %p83 = por %p81, %p82
      %p84 = scmp.ne.s32.totalorder %s75, %s76
      %p85 = scmp.eq.s32.totalorder %s28, 0
      %p86 = por %p84, %p85
      %p87 = scmp.ne.s32.totalorder %s75, %s76
      %p88 = scmp.eq.s32.totalorder %s29, 1
      %p89 = por %p87, %p88
      %p91 = scmp.ne.s32.totalorder %s76, %s90
      %p92 = scmp.eq.s32.totalorder %s29, 0
      %p93 = por %p91, %p92
      %s95 = sadd.s32 %s94, 1
      %p98 = scmp.eq.s32.totalorder %s23, 1
      %p99 = scmp.ne.s32.totalorder %s94, %s96
      %p100 = scmp.eq.s32.totalorder %s23, 0
      %p101 = por %p99, %p100
      %p102 = scmp.ne.s32.totalorder %s94, %s96
      %p103 = scmp.eq.s32.totalorder %s28, 1
      %p104 = por %p102, %p103
      %p105 = scmp.ne.s32.totalorder %s96, %s97
      %p106 = scmp.eq.s32.totalorder %s28, 0
      %p107 = por %p105, %p106
      %p108 = scmp.ne.s32.totalorder %s96, %s97
      %p109 = scmp.eq.s32.totalorder %s29, 1
      %p110 = por %p108, %p109
      %p112 = scmp.ne.s32.totalorder %s97, %s111
      %p113 = scmp.eq.s32.totalorder %s29, 0
      %p114 = por %p112, %p113
      %s115 = ssub.s32 %s23, %s30
      %p116 = scmp.eq.s32.totalorder %s115, 0
      %s118 = sadd.s32 %s117, 1
      %s119 = scalar_select %p116, %s117, %s118
      %p122 = pneg %p116
      %p123 = scmp.eq.s32.totalorder %s23, 1
      %p124 = por %p122, %p123
      %p125 = scmp.ne.s32.totalorder %s117, %s120
      %p126 = scmp.eq.s32.totalorder %s23, 0
      %p127 = por %p125, %p126
      %p128 = scmp.ne.s32.totalorder %s117, %s120
      %p129 = scmp.eq.s32.totalorder %s28, 1
      %p130 = por %p128, %p129
      %p131 = scmp.ne.s32.totalorder %s120, %s121
      %p132 = scmp.eq.s32.totalorder %s28, 0
      %p133 = por %p131, %p132
      %p134 = scmp.ne.s32.totalorder %s120, %s121
      %p135 = scmp.eq.s32.totalorder %s29, 1
      %p136 = por %p134, %p135
      %p138 = scmp.ne.s32.totalorder %s121, %s137
      %p139 = scmp.eq.s32.totalorder %s29, 0
      %p140 = por %p138, %p139
      %s141 = ssub.s32 %s23, %s30
      %p142 = scmp.eq.s32.totalorder %s141, 0
      %s144 = sadd.s32 %s143, 1
      %s145 = scalar_select %p142, %s143, %s144
      %p148 = pneg %p142
      %p149 = scmp.eq.s32.totalorder %s23, 1
      %p150 = por %p148, %p149
      %p151 = scmp.ne.s32.totalorder %s143, %s146
      %p152 = scmp.eq.s32.totalorder %s23, 0
      %p153 = por %p151, %p152
      %p154 = scmp.ne.s32.totalorder %s143, %s146
      %p155 = scmp.eq.s32.totalorder %s28, 1
      %p156 = por %p154, %p155
      %p157 = scmp.ne.s32.totalorder %s146, %s147
      %p158 = scmp.eq.s32.totalorder %s28, 0
      %p159 = por %p157, %p158
      %p160 = scmp.ne.s32.totalorder %s146, %s147
      %p161 = scmp.eq.s32.totalorder %s29, 1
      %p162 = por %p160, %p161
      %p164 = scmp.ne.s32.totalorder %s147, %s163
      %p165 = scmp.eq.s32.totalorder %s29, 0
      %p166 = por %p164, %p165
      %s167 = ssub.s32 %s23, %s30
      %p168 = scmp.eq.s32.totalorder %s167, 0
      %s170 = sadd.s32 %s169, 1
      %s171 = scalar_select %p168, %s169, %s170
      %p174 = pneg %p168
      %p175 = scmp.eq.s32.totalorder %s23, 1
      %p176 = por %p174, %p175
      %p177 = scmp.ne.s32.totalorder %s169, %s172
      %p178 = scmp.eq.s32.totalorder %s23, 0
      %p179 = por %p177, %p178
      %p180 = scmp.ne.s32.totalorder %s169, %s172
      %p181 = scmp.eq.s32.totalorder %s28, 1
      %p182 = por %p180, %p181
      %p183 = scmp.ne.s32.totalorder %s172, %s173
      %p184 = scmp.eq.s32.totalorder %s28, 0
      %p185 = por %p183, %p184
      %p186 = scmp.ne.s32.totalorder %s172, %s173
      %p187 = scmp.eq.s32.totalorder %s29, 1
      %p188 = por %p186, %p187
      %p190 = scmp.ne.s32.totalorder %s173, %s189
      %p191 = scmp.eq.s32.totalorder %s29, 0
      %p192 = por %p190, %p191
      %s193 = ssub.s32 %s23, %s30
      %p194 = scmp.eq.s32.totalorder %s193, 0
      %s196 = sadd.s32 %s195, 1
      %s197 = scalar_select %p194, %s195, %s196
      %p200 = pneg %p194
      %p201 = scmp.eq.s32.totalorder %s23, 1
      %p202 = por %p200, %p201
      %p203 = scmp.ne.s32.totalorder %s195, %s198
      %p204 = scmp.eq.s32.totalorder %s23, 0
      %p205 = por %p203, %p204
      %p206 = scmp.ne.s32.totalorder %s195, %s198
      %p207 = scmp.eq.s32.totalorder %s28, 1
      %p208 = por %p206, %p207
      %p209 = scmp.ne.s32.totalorder %s198, %s199
      %p210 = scmp.eq.s32.totalorder %s28, 0
      %p211 = por %p209, %p210
      %p212 = scmp.ne.s32.totalorder %s198, %s199
      %p213 = scmp.eq.s32.totalorder %s29, 1
      %p214 = por %p212, %p213
      %p216 = scmp.ne.s32.totalorder %s199, %s215
      %p217 = scmp.eq.s32.totalorder %s29, 0
      %p218 = por %p216, %p217
      %s219 = ssub.s32 %s23, %s30
      %p220 = scmp.eq.s32.totalorder %s219, 0
      %s222 = sadd.s32 %s221, 1
      %s223 = scalar_select %p220, %s221, %s222
      %p226 = pneg %p220
      %p227 = scmp.eq.s32.totalorder %s23, 1
      %p228 = por %p226, %p227
      %p229 = scmp.ne.s32.totalorder %s221, %s224
      %p230 = scmp.eq.s32.totalorder %s23, 0
      %p231 = por %p229, %p230
      %p232 = scmp.ne.s32.totalorder %s221, %s224
      %p233 = scmp.eq.s32.totalorder %s28, 1
      %p234 = por %p232, %p233
      %p235 = scmp.ne.s32.totalorder %s224, %s225
      %p236 = scmp.eq.s32.totalorder %s28, 0
      %p237 = por %p235, %p236
      %p238 = scmp.ne.s32.totalorder %s224, %s225
      %p239 = scmp.eq.s32.totalorder %s29, 1
      %p240 = por %p238, %p239
      %p242 = scmp.ne.s32.totalorder %s225, %s241
      %p243 = scmp.eq.s32.totalorder %s29, 0
      %p244 = por %p242, %p243
      %s246 = sadd.s32 %s245, 1
      %p249 = scmp.eq.s32.totalorder %s23, 1
      %p250 = scmp.ne.s32.totalorder %s245, %s247
      %p251 = scmp.eq.s32.totalorder %s23, 0
      %p252 = por %p250, %p251
      %p253 = scmp.ne.s32.totalorder %s245, %s247
      %p254 = scmp.eq.s32.totalorder %s28, 1
      %p255 = por %p253, %p254
      %p256 = scmp.ne.s32.totalorder %s247, %s248
      %p257 = scmp.eq.s32.totalorder %s28, 0
      %p258 = por %p256, %p257
      %p259 = scmp.ne.s32.totalorder %s247, %s248
      %p260 = scmp.eq.s32.totalorder %s29, 1
      %p261 = por %p259, %p260
      %p263 = scmp.ne.s32.totalorder %s248, %s262
      %p264 = scmp.eq.s32.totalorder %s29, 0
      %p265 = por %p263, %p264
      %s267 = sadd.s32 %s266, 1
      %p270 = scmp.eq.s32.totalorder %s23, 1
      %p271 = scmp.ne.s32.totalorder %s266, %s268
      %p272 = scmp.eq.s32.totalorder %s23, 0
      %p273 = por %p271, %p272
      %p274 = scmp.ne.s32.totalorder %s266, %s268
      %p275 = scmp.eq.s32.totalorder %s28, 1
      %p276 = por %p274, %p275
      %p277 = scmp.ne.s32.totalorder %s268, %s269
      %p278 = scmp.eq.s32.totalorder %s28, 0
      %p279 = por %p277, %p278
      %p280 = scmp.ne.s32.totalorder %s268, %s269
      %p281 = scmp.eq.s32.totalorder %s29, 1
      %p282 = por %p280, %p281
      %p284 = scmp.ne.s32.totalorder %s269, %s283
      %p285 = scmp.eq.s32.totalorder %s29, 0
      %p286 = por %p284, %p285
      %s288 = sadd.s32 %s287, 1
      %p291 = scmp.eq.s32.totalorder %s23, 1
      %p292 = scmp.ne.s32.totalorder %s287, %s289
      %p293 = scmp.eq.s32.totalorder %s23, 0
      %p294 = por %p292, %p293
      %p295 = scmp.ne.s32.totalorder %s287, %s289
      %p296 = scmp.eq.s32.totalorder %s28, 1
      %p297 = por %p295, %p296
      %p298 = scmp.ne.s32.totalorder %s289, %s290
      %p299 = scmp.eq.s32.totalorder %s28, 0
      %p300 = por %p298, %p299
      %p301 = scmp.ne.s32.totalorder %s289, %s290
      %p302 = scmp.eq.s32.totalorder %s29, 1
      %p303 = por %p301, %p302
      %p305 = scmp.ne.s32.totalorder %s290, %s304
      %p306 = scmp.eq.s32.totalorder %s29, 0
      %p307 = por %p305, %p306
      %p308 = scmp.le.s32.totalorder 1, %s23
      %p309 = scmp.lt.s32.totalorder %s23, 3
      %p310 = pnand %p308, %p309
      %p311 = pneg %p310
      // Predicated region
      $region9: #{tpu_custom_call.1} parent=5 // pred_check
        _
      $region10: #{tpu_custom_call.1} parent=5 // pred_check_branch
        %313 = sbr.rel (%p310) target = $region12
      $region11: #{tpu_custom_call.1} parent=5 // pred_region
        %s314 = ssub.s32 %s23, 1
        // Predicated region
        $region13: #{tpu_custom_call.1} parent=11 // pred_check
          %p315 = pneg %p44
        $region14: #{tpu_custom_call.1} parent=11 // pred_check_branch
          %317 = sbr.rel (%p315) target = $region16
        $region15: #{tpu_custom_call.1} parent=11 // pred_region
          %s319 = ssub.s32 1024, 1024
          %320 = vsyncadd [#allocation5], %s319
          %s321 = sshll.u32 [#allocation4], 4
          %s322 = int_to_ptr.vmem [resolvable:$true] %s321
          %327 = dma.hbm_to_vmem [thread:$0]  %s0, 1024, %s322, [#allocation5], 128, 128, 8
        $region16: #{tpu_custom_call.1} parent=11 // pred_fallthru
          _
        // Predicated region
        $region17: #{tpu_custom_call.1} parent=11 // pred_check
          %p328 = pneg %p65
        $region18: #{tpu_custom_call.1} parent=11 // pred_check_branch
          %330 = sbr.rel (%p328) target = $region20
        $region19: #{tpu_custom_call.1} parent=11 // pred_region
          %s332 = ssub.s32 128, 128
          %333 = vsyncadd [#allocation8], %s332
          %s334 = sshll.u32 [#allocation7], 4
          %s335 = int_to_ptr.vmem [resolvable:$true] %s334
          %340 = dma.hbm_to_vmem [thread:$0]  %s1, 128, %s335, [#allocation8], 64, 64, 4
        $region20: #{tpu_custom_call.1} parent=11 // pred_fallthru
          _
        // Predicated region
        $region21: #{tpu_custom_call.1} parent=11 // pred_check
          %p341 = pneg %p86
        $region22: #{tpu_custom_call.1} parent=11 // pred_check_branch
          %343 = sbr.rel (%p341) target = $region24
        $region23: #{tpu_custom_call.1} parent=11 // pred_region
          %s345 = ssub.s32 16, 16
          %346 = vsyncadd [#allocation8], %s345
          %s348 = sshll.u32 [#allocation9], 4
          %s349 = int_to_ptr.vmem [resolvable:$true] %s348
          %351 = dma.hbm_to_vmem [thread:$0]  %s2, 16, %s349, [#allocation8]
        $region24: #{tpu_custom_call.1} parent=11 // pred_fallthru
          _
        // Predicated region
        $region25: #{tpu_custom_call.1} parent=11 // pred_check
          %p352 = pneg %p107
        $region26: #{tpu_custom_call.1} parent=11 // pred_check_branch
          %354 = sbr.rel (%p352) target = $region28
        $region27: #{tpu_custom_call.1} parent=11 // pred_region
          %s356 = ssub.s32 128, 128
          %357 = vsyncadd [#allocation11], %s356
          %s359 = sshll.u32 [#allocation10], 4
          %s360 = int_to_ptr.vmem [resolvable:$true] %s359
          %362 = dma.hbm_to_vmem [thread:$0]  %s3, 128, %s360, [#allocation11]
        $region28: #{tpu_custom_call.1} parent=11 // pred_fallthru
          _
      $region12: #{tpu_custom_call.1} parent=5 // pred_fallthru
        _
      %p363 = scmp.lt.s32.totalorder %s23, 2
      // Predicated region
      $region29: #{tpu_custom_call.1} parent=5 // pred_check
        %p364 = pneg %p363
      $region30: #{tpu_custom_call.1} parent=5 // pred_check_branch
        %366 = sbr.rel (%p364) target = $region32
      $region31: #{tpu_custom_call.1} parent=5 // pred_region
        // Predicated region
        $region33: #{tpu_custom_call.1} parent=31 // pred_check
          %p367 = pneg %p127
        $region34: #{tpu_custom_call.1} parent=31 // pred_check_branch
          %369 = sbr.rel (%p367) target = $region36
        $region35: #{tpu_custom_call.1} parent=31 // pred_region
          %s370 = sand.u32 %s23, 1
          %s371 = scalar_lea.sflag [#allocation5], %s370
          %s372 = sand.u32 %s117, 1
          %s373 = smul.addr %s372, 16
          %s374 = scalar_lea.vmem [#allocation12], %s373
          %s376 = ssub.s32 256, 256
          %377 = vsyncadd %s371, %s376
          %s378 = smul.addr %s23, 4
          %s379 = smul.addr %s378, 64
          %s380 = scalar_lea.hbm %s4, %s379
          %s381 = sshll.u32 %s374, 4
          %s382 = int_to_ptr.vmem [resolvable:$true] %s381
          %387 = dma.hbm_to_vmem [thread:$0]  %s380, 256, %s382, %s371, 64, 64, 4
        $region36: #{tpu_custom_call.1} parent=31 // pred_fallthru
          _
        // Predicated region
        $region37: #{tpu_custom_call.1} parent=31 // pred_check
          %p388 = pneg %p153
        $region38: #{tpu_custom_call.1} parent=31 // pred_check_branch
          %390 = sbr.rel (%p388) target = $region40
        $region39: #{tpu_custom_call.1} parent=31 // pred_region
          %s391 = sand.u32 %s23, 1
          %s392 = scalar_lea.sflag [#allocation5], %s391
          %s393 = sand.u32 %s143, 1
          %s394 = smul.addr %s393, 16
          %s395 = scalar_lea.vmem [#allocation13], %s394
          %s397 = ssub.s32 256, 256
          %398 = vsyncadd %s392, %s397
          %s399 = smul.addr %s23, 4
          %s400 = smul.addr %s399, 64
          %s401 = scalar_lea.hbm %s5, %s400
          %s402 = sshll.u32 %s395, 4
          %s403 = int_to_ptr.vmem [resolvable:$true] %s402
          %408 = dma.hbm_to_vmem [thread:$0]  %s401, 256, %s403, %s392, 64, 64, 4
        $region40: #{tpu_custom_call.1} parent=31 // pred_fallthru
          _
        // Predicated region
        $region41: #{tpu_custom_call.1} parent=31 // pred_check
          %p409 = pneg %p179
        $region42: #{tpu_custom_call.1} parent=31 // pred_check_branch
          %411 = sbr.rel (%p409) target = $region44
        $region43: #{tpu_custom_call.1} parent=31 // pred_region
          %s412 = sand.u32 %s23, 1
          %s413 = scalar_lea.sflag [#allocation5], %s412
          %s414 = sand.u32 %s169, 1
          %s415 = smul.addr %s414, 16
          %s416 = scalar_lea.vmem [#allocation14], %s415
          %s418 = ssub.s32 256, 256
          %419 = vsyncadd %s413, %s418
          %s420 = smul.addr %s23, 4
          %s421 = smul.addr %s420, 64
          %s422 = scalar_lea.hbm %s6, %s421
          %s423 = sshll.u32 %s416, 4
          %s424 = int_to_ptr.vmem [resolvable:$true] %s423
          %429 = dma.hbm_to_vmem [thread:$0]  %s422, 256, %s424, %s413, 64, 64, 4
        $region44: #{tpu_custom_call.1} parent=31 // pred_fallthru
          _
        // Predicated region
        $region45: #{tpu_custom_call.1} parent=31 // pred_check
          %p430 = pneg %p205
        $region46: #{tpu_custom_call.1} parent=31 // pred_check_branch
          %432 = sbr.rel (%p430) target = $region48
        $region47: #{tpu_custom_call.1} parent=31 // pred_region
          %s433 = sand.u32 %s23, 1
          %s434 = scalar_lea.sflag [#allocation5], %s433
          %s435 = sand.u32 %s195, 1
          %s436 = smul.addr %s435, 32
          %s437 = scalar_lea.vmem [#allocation15], %s436
          %s439 = ssub.s32 512, 512
          %440 = vsyncadd %s434, %s439
          %s441 = smul.addr %s23, 8
          %s442 = smul.addr %s441, 64
          %s443 = scalar_lea.hbm %s7, %s442
          %s444 = sshll.u32 %s437, 4
          %s445 = int_to_ptr.vmem [resolvable:$true] %s444
          %450 = dma.hbm_to_vmem [thread:$0]  %s443, 512, %s445, %s434, 64, 64, 4
        $region48: #{tpu_custom_call.1} parent=31 // pred_fallthru
          _
        // Predicated region
        $region49: #{tpu_custom_call.1} parent=31 // pred_check
          %p451 = pneg %p231
        $region50: #{tpu_custom_call.1} parent=31 // pred_check_branch
          %453 = sbr.rel (%p451) target = $region52
        $region51: #{tpu_custom_call.1} parent=31 // pred_region
          %s454 = sand.u32 %s23, 1
          %s455 = scalar_lea.sflag [#allocation5], %s454
          %s456 = sand.u32 %s221, 1
          %s457 = smul.addr %s456, 8
          %s458 = scalar_lea.vmem [#allocation16], %s457
          %s460 = ssub.s32 128, 128
          %461 = vsyncadd %s455, %s460
          %s462 = smul.addr %s23, 128
          %s463 = scalar_lea.hbm %s8, %s462
          %s465 = sshll.u32 %s458, 4
          %s466 = int_to_ptr.vmem [resolvable:$true] %s465
          %468 = dma.hbm_to_vmem [thread:$0]  %s463, 128, %s466, %s455
        $region52: #{tpu_custom_call.1} parent=31 // pred_fallthru
          _
      $region32: #{tpu_custom_call.1} parent=5 // pred_fallthru
        _
      %p469 = scmp.le.s32.totalorder 1, %s23
      %p470 = scmp.lt.s32.totalorder %s23, 3
      %p471 = pnand %p469, %p470
      %p472 = pneg %p471
      // Predicated region
      $region53: #{tpu_custom_call.1} parent=5 // pred_check
        _
      $region54: #{tpu_custom_call.1} parent=5 // pred_check_branch
        %474 = sbr.rel (%p471) target = $region56
      $region55: #{tpu_custom_call.1} parent=5 // pred_region
        %s475 = ssub.s32 %s23, 1
        // Predicated region
        $region57: #{tpu_custom_call.1} parent=55 // pred_check
          %p476 = pneg %p44
        $region58: #{tpu_custom_call.1} parent=55 // pred_check_branch
          %478 = sbr.rel (%p476) target = $region60
        $region59: #{tpu_custom_call.1} parent=55 // pred_region
          %479 = dma.done [#allocation5], 1024
        $region60: #{tpu_custom_call.1} parent=55 // pred_fallthru
          _
        // Predicated region
        $region61: #{tpu_custom_call.1} parent=55 // pred_check
          %p480 = pneg %p65
        $region62: #{tpu_custom_call.1} parent=55 // pred_check_branch
          %482 = sbr.rel (%p480) target = $region64
        $region63: #{tpu_custom_call.1} parent=55 // pred_region
          %483 = dma.done [#allocation8], 128
        $region64: #{tpu_custom_call.1} parent=55 // pred_fallthru
          _
        // Predicated region
        $region65: #{tpu_custom_call.1} parent=55 // pred_check
          %p484 = pneg %p86
        $region66: #{tpu_custom_call.1} parent=55 // pred_check_branch
          %486 = sbr.rel (%p484) target = $region68
        $region67: #{tpu_custom_call.1} parent=55 // pred_region
          %487 = dma.done [#allocation8], 16
        $region68: #{tpu_custom_call.1} parent=55 // pred_fallthru
          _
        // Predicated region
        $region69: #{tpu_custom_call.1} parent=55 // pred_check
          %p488 = pneg %p107
        $region70: #{tpu_custom_call.1} parent=55 // pred_check_branch
          %490 = sbr.rel (%p488) target = $region72
        $region71: #{tpu_custom_call.1} parent=55 // pred_region
          %491 = dma.done [#allocation11], 128
        $region72: #{tpu_custom_call.1} parent=55 // pred_fallthru
          _
        %s492 = sand.u32 %s28, 1
        %s493 = scalar_lea.sflag [#allocation5], %s492
        %s494 = sand.u32 %s120, 1
        %s495 = smul.addr %s494, 16
        %s496 = scalar_lea.vmem [#allocation12], %s495
        // Predicated region
        $region73: #{tpu_custom_call.1} parent=55 // pred_check
          %p497 = pneg %p133
        $region74: #{tpu_custom_call.1} parent=55 // pred_check_branch
          %499 = sbr.rel (%p497) target = $region76
        $region75: #{tpu_custom_call.1} parent=55 // pred_region
          %500 = dma.done %s493, 256
        $region76: #{tpu_custom_call.1} parent=55 // pred_fallthru
          _
        %s501 = sand.u32 %s28, 1
        %s502 = scalar_lea.sflag [#allocation5], %s501
        %s503 = sand.u32 %s146, 1
        %s504 = smul.addr %s503, 16
        %s505 = scalar_lea.vmem [#allocation13], %s504
        // Predicated region
        $region77: #{tpu_custom_call.1} parent=55 // pred_check
          %p506 = pneg %p159
        $region78: #{tpu_custom_call.1} parent=55 // pred_check_branch
          %508 = sbr.rel (%p506) target = $region80
        $region79: #{tpu_custom_call.1} parent=55 // pred_region
          %509 = dma.done %s502, 256
        $region80: #{tpu_custom_call.1} parent=55 // pred_fallthru
          _
        %s510 = sand.u32 %s28, 1
        %s511 = scalar_lea.sflag [#allocation5], %s510
        %s512 = sand.u32 %s172, 1
        %s513 = smul.addr %s512, 16
        %s514 = scalar_lea.vmem [#allocation14], %s513
        // Predicated region
        $region81: #{tpu_custom_call.1} parent=55 // pred_check
          %p515 = pneg %p185
        $region82: #{tpu_custom_call.1} parent=55 // pred_check_branch
          %517 = sbr.rel (%p515) target = $region84
        $region83: #{tpu_custom_call.1} parent=55 // pred_region
          %518 = dma.done %s511, 256
        $region84: #{tpu_custom_call.1} parent=55 // pred_fallthru
          _
        %s519 = sand.u32 %s28, 1
        %s520 = scalar_lea.sflag [#allocation5], %s519
        %s521 = sand.u32 %s198, 1
        %s522 = smul.addr %s521, 32
        %s523 = scalar_lea.vmem [#allocation15], %s522
        // Predicated region
        $region85: #{tpu_custom_call.1} parent=55 // pred_check
          %p524 = pneg %p211
        $region86: #{tpu_custom_call.1} parent=55 // pred_check_branch
          %526 = sbr.rel (%p524) target = $region88
        $region87: #{tpu_custom_call.1} parent=55 // pred_region
          %527 = dma.done %s520, 512
        $region88: #{tpu_custom_call.1} parent=55 // pred_fallthru
          _
        %s528 = sand.u32 %s28, 1
        %s529 = scalar_lea.sflag [#allocation5], %s528
        %s530 = sand.u32 %s224, 1
        %s531 = smul.addr %s530, 8
        %s532 = scalar_lea.vmem [#allocation16], %s531
        // Predicated region
        $region89: #{tpu_custom_call.1} parent=55 // pred_check
          %p533 = pneg %p237
        $region90: #{tpu_custom_call.1} parent=55 // pred_check_branch
          %535 = sbr.rel (%p533) target = $region92
        $region91: #{tpu_custom_call.1} parent=55 // pred_region
          %536 = dma.done %s529, 128
        $region92: #{tpu_custom_call.1} parent=55 // pred_fallthru
          _
        %p537 = pneg %p44
        %p538 = pneg %p41
        %p539 = pneg %p65
        %p540 = pneg %p62
        %p541 = pneg %p86
        %p542 = pneg %p83
        %p543 = pneg %p107
        %p544 = pneg %p104
        %s545 = sand.u32 %s28, 1
        %s546 = scalar_lea.sflag [#allocation5], %s545
        %s547 = sand.u32 %s120, 1
        %s548 = smul.addr %s547, 16
        %s549 = scalar_lea.vmem [#allocation12], %s548
        %p550 = pneg %p133
        %p551 = pneg %p130
        %s552 = sand.u32 %s28, 1
        %s553 = scalar_lea.sflag [#allocation5], %s552
        %s554 = sand.u32 %s146, 1
        %s555 = smul.addr %s554, 16
        %s556 = scalar_lea.vmem [#allocation13], %s555
        %p557 = pneg %p159
        %p558 = pneg %p156
        %s559 = sand.u32 %s28, 1
        %s560 = scalar_lea.sflag [#allocation5], %s559
        %s561 = sand.u32 %s172, 1
        %s562 = smul.addr %s561, 16
        %s563 = scalar_lea.vmem [#allocation14], %s562
        %p564 = pneg %p185
        %p565 = pneg %p182
        %s566 = sand.u32 %s28, 1
        %s567 = scalar_lea.sflag [#allocation5], %s566
        %s568 = sand.u32 %s198, 1
        %s569 = smul.addr %s568, 32
        %s570 = scalar_lea.vmem [#allocation15], %s569
        %p571 = pneg %p211
        %p572 = pneg %p208
        %s573 = sand.u32 %s28, 1
        %s574 = scalar_lea.sflag [#allocation5], %s573
        %s575 = sand.u32 %s224, 1
        %s576 = smul.addr %s575, 8
        %s577 = scalar_lea.vmem [#allocation16], %s576
        %p578 = pneg %p237
        %p579 = pneg %p234
        %p580 = pneg %p258
        %p581 = pneg %p255
        %p582 = pneg %p279
        %p583 = pneg %p276
        %p584 = pneg %p300
        %p585 = pneg %p297
        %v587 = vld [vmem:[%s532] sm:$0xff]
        %p588 = scmp.eq.s32.totalorder %s28, 0
        // Predicated region
        $region93: #{tpu_custom_call.1} parent=55 // pred_check
          %p589 = pneg %p588
        $region94: #{tpu_custom_call.1} parent=55 // pred_check_branch
          %591 = sbr.rel (%p589) target = $region96
        $region95: #{tpu_custom_call.1} parent=55 // pred_region
          %v592 = vld [vmem:[#allocation4] sm:$0xff]
          %v593 = vld [vmem:[#allocation4 + $0x8] sm:$0xff]
          %v594 = vld [vmem:[#allocation4 + $0x10] sm:$0xff]
          %v595 = vld [vmem:[#allocation4 + $0x18] sm:$0xff]
          %v596 = vld [vmem:[#allocation4 + $0x20] sm:$0xff]
          %v597 = vld [vmem:[#allocation4 + $0x28] sm:$0xff]
          %v598 = vld [vmem:[#allocation4 + $0x30] sm:$0xff]
          %v599 = vld [vmem:[#allocation4 + $0x38] sm:$0xff]
          %v600 = vpack.c.bf16 %v593, %v592
          %v601 = vpack.c.bf16 %v595, %v594
          %v602 = vpack.c.bf16 %v597, %v596
          %v603 = vpack.c.bf16 %v599, %v598
          %v604 = vld [vmem:[#allocation7] sm:$0xf]
          %v605 = vld [vmem:[#allocation7 + $0x4] sm:$0xf]
          %v606 = vld [vmem:[#allocation9] sm:$0x1]
          %v608 = vlaneseq
          %v609 = vshrl.u32 %v608, 7
          %v610 = vsub.s32 0, %v609
          %v611 = vrot.slane %v606, %v610
          %v615 = vunpack.c.l.b16 %v604
          %v616 = vunpack.c.l.b16 %v605
          %v617 = vpack.c.b16 %v616, %v615
          %vm619 = vcmask 130048
          %v621 = vsel %vm619, %v600, 0
          %v624 = vsel %vm619, %v601, 0
          %v627 = vsel %vm619, %v602, 0
          %v630 = vsel %vm619, %v603, 0
          %632 = vmatprep.subr.bf16.mxu0 0
          %633 = vmatpush1.bf16.msra.mxu0 %v617
          %634 = vmatprep.subr.bf16.mxu0 0
          %635 = vmatpush1.bf16.msra.mxu0 0
          %636 = vmatprep.subr.bf16.mxu0 0
          %637 = vmatpush1.bf16.msra.mxu0 0
          %638 = vmatprep.subr.bf16.mxu0 0
          %639 = vmatpush1.bf16.msra.mxu0 0
          %640 = vmatprep.subr.bf16.mxu0 0
          %641 = vmatpush1.bf16.msra.mxu0 0
          %642 = vmatprep.subr.bf16.mxu0 0
          %643 = vmatpush1.bf16.msra.mxu0 0
          %644 = vmatprep.subr.bf16.mxu0 0
          %645 = vmatpush1.bf16.msra.mxu0 0
          %646 = vmatprep.subr.bf16.mxu0 0
          %647 = vmatpush1.bf16.msra.mxu0 0
          %648 = vmatprep.subr.bf16.mxu0 0
          %649 = vmatpush1.bf16.msra.mxu0 0
          %650 = vmatprep.subr.bf16.mxu0 0
          %651 = vmatpush1.bf16.msra.mxu0 0
          %652 = vmatprep.subr.bf16.mxu0 0
          %653 = vmatpush1.bf16.msra.mxu0 0
          %654 = vmatprep.subr.bf16.mxu0 0
          %655 = vmatpush1.bf16.msra.mxu0 0
          %656 = vmatprep.subr.bf16.mxu0 0
          %657 = vmatpush1.bf16.msra.mxu0 0
          %658 = vmatprep.subr.bf16.mxu0 0
          %659 = vmatpush1.bf16.msra.mxu0 0
          %660 = vmatprep.subr.bf16.mxu0 0
          %661 = vmatpush1.bf16.msra.mxu0 0
          %662 = vmatprep.subr.bf16.mxu0 0
          %663 = vmatpush1.bf16.msra.mxu0 0
          %664 = vmatprep.mubr.bf16.mxu0 0
          %665 = vmatmul.mubr.bf16.gmra.mrb[0].mxu0 %v621
          %v666 = vpop.f32.mrb[0].mxu0
          %v667 = vadd.f32 %v611, %v666
          %v668 = vpop.f32.mrb[0].mxu0
          %v669 = vpop.f32.mrb[0].mxu0
          %v670 = vadd.f32 %v611, %v669
          %v671 = vpop.f32.mrb[0].mxu0
          %672 = vmatprep.mubr.bf16.mxu0 0
          %673 = vmatmul.mubr.bf16.gmra.mrb[0].mxu0 %v624
          %v674 = vpop.f32.mrb[0].mxu0
          %v675 = vadd.f32 %v611, %v674
          %v676 = vpop.f32.mrb[0].mxu0
          %v677 = vpop.f32.mrb[0].mxu0
          %v678 = vadd.f32 %v611, %v677
          %v679 = vpop.f32.mrb[0].mxu0
          %680 = vmatprep.mubr.bf16.mxu0 0
          %681 = vmatmul.mubr.bf16.gmra.mrb[0].mxu0 %v627
          %v682 = vpop.f32.mrb[0].mxu0
          %v683 = vadd.f32 %v611, %v682
          %v684 = vpop.f32.mrb[0].mxu0
          %v685 = vpop.f32.mrb[0].mxu0
          %v686 = vadd.f32 %v611, %v685
          %v687 = vpop.f32.mrb[0].mxu0
          %688 = vmatprep.mubr.bf16.mxu0 0
          %689 = vmatmul.mubr.bf16.gmra.mrb[0].mxu0 %v630
          %v690 = vpop.f32.mrb[0].mxu0
          %v691 = vadd.f32 %v611, %v690
          %v692 = vpop.f32.mrb[0].mxu0
          %v693 = vpop.f32.mrb[0].mxu0
          %v694 = vadd.f32 %v611, %v693
          %v695 = vpop.f32.mrb[0].mxu0
          %696 = vdwg.mxu0
          %vm697 = vcmask 261120
          %698 = vst.msk [vmem:[#allocation17] sm:$0xff] %vm697, %v667
          %699 = vst.msk [vmem:[#allocation17 + $0x8] sm:$0xff] %vm697, %v670
          %700 = vst.msk [vmem:[#allocation17 + $0x10] sm:$0xff] %vm697, %v675
          %701 = vst.msk [vmem:[#allocation17 + $0x18] sm:$0xff] %vm697, %v678
          %702 = vst.msk [vmem:[#allocation17 + $0x20] sm:$0xff] %vm697, %v683
          %703 = vst.msk [vmem:[#allocation17 + $0x28] sm:$0xff] %vm697, %v686
          %704 = vst.msk [vmem:[#allocation17 + $0x30] sm:$0xff] %vm697, %v691
          %705 = vst.msk [vmem:[#allocation17 + $0x38] sm:$0xff] %vm697, %v694
          %v706 = vld [vmem:[#allocation10] sm:$0xff]
          %v707 = vadd.f32 %v667, %v706
          %v708 = vadd.f32 %v670, %v706
          %v709 = vadd.f32 %v675, %v706
          %v710 = vadd.f32 %v678, %v706
          %v711 = vadd.f32 %v683, %v706
          %v712 = vadd.f32 %v686, %v706
          %v713 = vadd.f32 %v691, %v706
          %v714 = vadd.f32 %v694, %v706
          %715 = vst.msk [vmem:[#allocation2] sm:$0xff] %vm697, %v707
          %716 = vst.msk [vmem:[#allocation2 + $0x8] sm:$0xff] %vm697, %v708
          %717 = vst.msk [vmem:[#allocation2 + $0x10] sm:$0xff] %vm697, %v709
          %718 = vst.msk [vmem:[#allocation2 + $0x18] sm:$0xff] %vm697, %v710
          %719 = vst.msk [vmem:[#allocation2 + $0x20] sm:$0xff] %vm697, %v711
          %720 = vst.msk [vmem:[#allocation2 + $0x28] sm:$0xff] %vm697, %v712
          %721 = vst.msk [vmem:[#allocation2 + $0x30] sm:$0xff] %vm697, %v713
          %722 = vst.msk [vmem:[#allocation2 + $0x38] sm:$0xff] %vm697, %v714
          %vm723 = vcmask 64512
          %724 = vst.msk [vmem:[#allocation3] sm:$0xff] %vm723, 0.0
          %725 = vst.msk [vmem:[#allocation3 + $0x8] sm:$0xff] %vm723, 0.0
          %726 = vst.msk [vmem:[#allocation3 + $0x10] sm:$0xff] %vm723, 0.0
          %727 = vst.msk [vmem:[#allocation3 + $0x18] sm:$0xff] %vm723, 0.0
          %728 = vst.msk [vmem:[#allocation3 + $0x20] sm:$0xff] %vm723, 0.0
          %729 = vst.msk [vmem:[#allocation3 + $0x28] sm:$0xff] %vm723, 0.0
          %730 = vst.msk [vmem:[#allocation3 + $0x30] sm:$0xff] %vm723, 0.0
          %731 = vst.msk [vmem:[#allocation3 + $0x38] sm:$0xff] %vm723, 0.0
          %732 = vst.msk [vmem:[#allocation3 + $0x40] sm:$0xff] %vm723, 0.0
          %733 = vst.msk [vmem:[#allocation3 + $0x48] sm:$0xff] %vm723, 0.0
          %734 = vst.msk [vmem:[#allocation3 + $0x50] sm:$0xff] %vm723, 0.0
          %735 = vst.msk [vmem:[#allocation3 + $0x58] sm:$0xff] %vm723, 0.0
          %736 = vst.msk [vmem:[#allocation3 + $0x60] sm:$0xff] %vm723, 0.0
          %737 = vst.msk [vmem:[#allocation3 + $0x68] sm:$0xff] %vm723, 0.0
          %738 = vst.msk [vmem:[#allocation3 + $0x70] sm:$0xff] %vm723, 0.0
          %739 = vst.msk [vmem:[#allocation3 + $0x78] sm:$0xff] %vm723, 0.0
          %740 = vst.msk [vmem:[#allocation3 + $0x80] sm:$0xff] %vm723, 0.0
          %741 = vst.msk [vmem:[#allocation3 + $0x88] sm:$0xff] %vm723, 0.0
          %742 = vst.msk [vmem:[#allocation3 + $0x90] sm:$0xff] %vm723, 0.0
          %743 = vst.msk [vmem:[#allocation3 + $0x98] sm:$0xff] %vm723, 0.0
          %744 = vst.msk [vmem:[#allocation3 + $0xa0] sm:$0xff] %vm723, 0.0
          %745 = vst.msk [vmem:[#allocation3 + $0xa8] sm:$0xff] %vm723, 0.0
          %746 = vst.msk [vmem:[#allocation3 + $0xb0] sm:$0xff] %vm723, 0.0
          %747 = vst.msk [vmem:[#allocation3 + $0xb8] sm:$0xff] %vm723, 0.0
          %748 = vst.msk [vmem:[#allocation3 + $0xc0] sm:$0xff] %vm723, 0.0
          %749 = vst.msk [vmem:[#allocation3 + $0xc8] sm:$0xff] %vm723, 0.0
          %750 = vst.msk [vmem:[#allocation3 + $0xd0] sm:$0xff] %vm723, 0.0
          %751 = vst.msk [vmem:[#allocation3 + $0xd8] sm:$0xff] %vm723, 0.0
          %752 = vst.msk [vmem:[#allocation3 + $0xe0] sm:$0xff] %vm723, 0.0
          %753 = vst.msk [vmem:[#allocation3 + $0xe8] sm:$0xff] %vm723, 0.0
          %754 = vst.msk [vmem:[#allocation3 + $0xf0] sm:$0xff] %vm723, 0.0
          %755 = vst.msk [vmem:[#allocation3 + $0xf8] sm:$0xff] %vm723, 0.0
        $region96: #{tpu_custom_call.1} parent=55 // pred_fallthru
          _
        %v756 = vld [vmem:[#allocation2] sm:$0xff]
        %v757 = vld [vmem:[#allocation2 + $0x8] sm:$0xff]
        %v758 = vld [vmem:[#allocation2 + $0x10] sm:$0xff]
        %v759 = vld [vmem:[#allocation2 + $0x18] sm:$0xff]
        %v760 = vld [vmem:[#allocation2 + $0x20] sm:$0xff]
        %v761 = vld [vmem:[#allocation2 + $0x28] sm:$0xff]
        %v762 = vld [vmem:[#allocation2 + $0x30] sm:$0xff]
        %v763 = vld [vmem:[#allocation2 + $0x38] sm:$0xff]
        %v764 = vpack.c.bf16 %v757, %v756
        %v765 = vpack.c.bf16 %v759, %v758
        %v766 = vpack.c.bf16 %v761, %v760
        %v767 = vpack.c.bf16 %v763, %v762
        %v768 = vld [vmem:[%s496] sm:$0xf]
        %v769 = vld [vmem:[%s496 + $0x4] sm:$0xf]
        %v770 = vld [vmem:[%s496 + $0x8] sm:$0xf]
        %v771 = vld [vmem:[%s496 + $0xc] sm:$0xf]
        %v772 = vlaneseq
        %v773 = vshrl.u32 %v772, 7
        %v774 = vsub.s32 0, %v773
        %v775 = vrot.slane %v587, %v774
        %v780 = vunpack.c.l.b16 %v768
        %v781 = vunpack.c.l.b16 %v769
        %v782 = vunpack.c.l.b16 %v770
        %v783 = vunpack.c.l.b16 %v771
        %v784 = vpack.c.b16 %v781, %v780
        %v785 = vpack.c.b16 %v783, %v782
        %vm788 = vcmask 261120
        %v790 = vsel %vm788, %v764, 0
        %v793 = vsel %vm788, %v765, 0
        %v796 = vsel %vm788, %v766, 0
        %v799 = vsel %vm788, %v767, 0
        %801 = vmatprep.subr.bf16.mxu0 0
        %802 = vmatpush1.bf16.msra.mxu0 %v784
        %803 = vmatprep.subr.bf16.mxu0 0
        %804 = vmatpush1.bf16.msra.mxu0 %v785
        %805 = vmatprep.subr.bf16.mxu0 0
        %806 = vmatpush1.bf16.msra.mxu0 0
        %807 = vmatprep.subr.bf16.mxu0 0
        %808 = vmatpush1.bf16.msra.mxu0 0
        %809 = vmatprep.subr.bf16.mxu0 0
        %810 = vmatpush1.bf16.msra.mxu0 0
        %811 = vmatprep.subr.bf16.mxu0 0
        %812 = vmatpush1.bf16.msra.mxu0 0
        %813 = vmatprep.subr.bf16.mxu0 0
        %814 = vmatpush1.bf16.msra.mxu0 0
        %815 = vmatprep.subr.bf16.mxu0 0
        %816 = vmatpush1.bf16.msra.mxu0 0
        %817 = vmatprep.subr.bf16.mxu0 0
        %818 = vmatpush1.bf16.msra.mxu0 0
        %819 = vmatprep.subr.bf16.mxu0 0
        %820 = vmatpush1.bf16.msra.mxu0 0
        %821 = vmatprep.subr.bf16.mxu0 0
        %822 = vmatpush1.bf16.msra.mxu0 0
        %823 = vmatprep.subr.bf16.mxu0 0
        %824 = vmatpush1.bf16.msra.mxu0 0
        %825 = vmatprep.subr.bf16.mxu0 0
        %826 = vmatpush1.bf16.msra.mxu0 0
        %827 = vmatprep.subr.bf16.mxu0 0
        %828 = vmatpush1.bf16.msra.mxu0 0
        %829 = vmatprep.subr.bf16.mxu0 0
        %830 = vmatpush1.bf16.msra.mxu0 0
        %831 = vmatprep.subr.bf16.mxu0 0
        %832 = vmatpush1.bf16.msra.mxu0 0
        %833 = vmatprep.mubr.bf16.mxu0 0
        %834 = vmatmul.mubr.bf16.gmra.mrb[0].mxu0 %v790
        %v835 = vpop.f32.mrb[0].mxu0
        %v836 = vadd.f32 %v775, %v835
        %v837 = vpop.f32.mrb[0].mxu0
        %v838 = vpop.f32.mrb[0].mxu0
        %v839 = vadd.f32 %v775, %v838
        %v840 = vpop.f32.mrb[0].mxu0
        %841 = vmatprep.mubr.bf16.mxu0 0
        %842 = vmatmul.mubr.bf16.gmra.mrb[0].mxu0 %v793
        %v843 = vpop.f32.mrb[0].mxu0
        %v844 = vadd.f32 %v775, %v843
        %v845 = vpop.f32.mrb[0].mxu0
        %v846 = vpop.f32.mrb[0].mxu0
        %v847 = vadd.f32 %v775, %v846
        %v848 = vpop.f32.mrb[0].mxu0
        %849 = vmatprep.mubr.bf16.mxu0 0
        %850 = vmatmul.mubr.bf16.gmra.mrb[0].mxu0 %v796
        %v851 = vpop.f32.mrb[0].mxu0
        %v852 = vadd.f32 %v775, %v851
        %v853 = vpop.f32.mrb[0].mxu0
        %v854 = vpop.f32.mrb[0].mxu0
        %v855 = vadd.f32 %v775, %v854
        %v856 = vpop.f32.mrb[0].mxu0
        %857 = vmatprep.mubr.bf16.mxu0 0
        %858 = vmatmul.mubr.bf16.gmra.mrb[0].mxu0 %v799
        %v859 = vpop.f32.mrb[0].mxu0
        %v860 = vadd.f32 %v775, %v859
        %v861 = vpop.f32.mrb[0].mxu0
        %v862 = vpop.f32.mrb[0].mxu0
        %v863 = vadd.f32 %v775, %v862
        %v864 = vpop.f32.mrb[0].mxu0
        %865 = vdwg.mxu0
        %874 = vrot.lane.b32.xlu0 %v836, 120
        %v875 = vpop.permute.xlu0 %874
        %876 = vrot.lane.b32.xlu0 %v839, 120
        %v877 = vpop.permute.xlu0 %876
        %878 = vrot.lane.b32.xlu0 %v844, 120
        %v879 = vpop.permute.xlu0 %878
        %880 = vrot.lane.b32.xlu0 %v847, 120
        %v881 = vpop.permute.xlu0 %880
        %882 = vrot.lane.b32.xlu0 %v852, 120
        %v883 = vpop.permute.xlu0 %882
        %884 = vrot.lane.b32.xlu0 %v855, 120
        %v885 = vpop.permute.xlu0 %884
        %886 = vrot.lane.b32.xlu0 %v860, 120
        %v887 = vpop.permute.xlu0 %886
        %888 = vrot.lane.b32.xlu0 %v863, 120
        %v889 = vpop.permute.xlu0 %888
        %898 = vrot.lane.b32.xlu0 %v836, 112
        %v899 = vpop.permute.xlu0 %898
        %900 = vrot.lane.b32.xlu0 %v839, 112
        %v901 = vpop.permute.xlu0 %900
        %902 = vrot.lane.b32.xlu0 %v844, 112
        %v903 = vpop.permute.xlu0 %902
        %904 = vrot.lane.b32.xlu0 %v847, 112
        %v905 = vpop.permute.xlu0 %904
        %906 = vrot.lane.b32.xlu0 %v852, 112
        %v907 = vpop.permute.xlu0 %906
        %908 = vrot.lane.b32.xlu0 %v855, 112
        %v909 = vpop.permute.xlu0 %908
        %910 = vrot.lane.b32.xlu0 %v860, 112
        %v911 = vpop.permute.xlu0 %910
        %912 = vrot.lane.b32.xlu0 %v863, 112
        %v913 = vpop.permute.xlu0 %912
        %922 = vrot.lane.b32.xlu0 %v836, 104
        %v923 = vpop.permute.xlu0 %922
        %924 = vrot.lane.b32.xlu0 %v839, 104
        %v925 = vpop.permute.xlu0 %924
        %926 = vrot.lane.b32.xlu0 %v844, 104
        %v927 = vpop.permute.xlu0 %926
        %928 = vrot.lane.b32.xlu0 %v847, 104
        %v929 = vpop.permute.xlu0 %928
        %930 = vrot.lane.b32.xlu0 %v852, 104
        %v931 = vpop.permute.xlu0 %930
        %932 = vrot.lane.b32.xlu0 %v855, 104
        %v933 = vpop.permute.xlu0 %932
        %934 = vrot.lane.b32.xlu0 %v860, 104
        %v935 = vpop.permute.xlu0 %934
        %936 = vrot.lane.b32.xlu0 %v863, 104
        %v937 = vpop.permute.xlu0 %936
        %v946 = vpack.c.bf16 %v836, %v836
        %v947 = vpack.c.bf16 %v839, %v839
        %v948 = vpack.c.bf16 %v844, %v844
        %v949 = vpack.c.bf16 %v847, %v847
        %v950 = vpack.c.bf16 %v852, %v852
        %v951 = vpack.c.bf16 %v855, %v855
        %v952 = vpack.c.bf16 %v860, %v860
        %v953 = vpack.c.bf16 %v863, %v863
        %v954 = vpack.c.bf16 %v875, %v875
        %v955 = vpack.c.bf16 %v877, %v877
        %v956 = vpack.c.bf16 %v879, %v879
        %v957 = vpack.c.bf16 %v881, %v881
        %v958 = vpack.c.bf16 %v883, %v883
        %v959 = vpack.c.bf16 %v885, %v885
        %v960 = vpack.c.bf16 %v887, %v887
        %v961 = vpack.c.bf16 %v889, %v889
        %v962 = vpack.c.bf16 %v899, %v899
        %v963 = vpack.c.bf16 %v901, %v901
        %v964 = vpack.c.bf16 %v903, %v903
        %v965 = vpack.c.bf16 %v905, %v905
        %v966 = vpack.c.bf16 %v907, %v907
        %v967 = vpack.c.bf16 %v909, %v909
        %v968 = vpack.c.bf16 %v911, %v911
        %v969 = vpack.c.bf16 %v913, %v913
        %v970 = vpack.c.bf16 %v923, %v923
        %v971 = vpack.c.bf16 %v925, %v925
        %v972 = vpack.c.bf16 %v927, %v927
        %v973 = vpack.c.bf16 %v929, %v929
        %v974 = vpack.c.bf16 %v931, %v931
        %v975 = vpack.c.bf16 %v933, %v933
        %v976 = vpack.c.bf16 %v935, %v935
        %v977 = vpack.c.bf16 %v937, %v937
        %979 = vrot.lane.b32.xlu0 %v946, 96
        %v980 = vpop.permute.xlu0 %979
        %vm981 = vcmask 64512
        %v983 = vsel %vm981, %v946, 0
        %v986 = vsel %vm981, %v980, 0
        %988 = vmatprep.subr.bf16.mxu0 0
        %989 = vmatpush1.bf16.xpose.msra.mxu0 %v986
        %990 = vmatprep.subr.bf16.mxu0 0
        %991 = vmatpush1.bf16.xpose.msra.mxu0 0
        %992 = vmatprep.subr.bf16.mxu0 0
        %993 = vmatpush1.bf16.xpose.msra.mxu0 0
        %994 = vmatprep.subr.bf16.mxu0 0
        %995 = vmatpush1.bf16.xpose.msra.mxu0 0
        %996 = vmatprep.subr.bf16.mxu0 0
        %997 = vmatpush1.bf16.xpose.msra.mxu0 0
        %998 = vmatprep.subr.bf16.mxu0 0
        %999 = vmatpush1.bf16.xpose.msra.mxu0 0
        %1000 = vmatprep.subr.bf16.mxu0 0
        %1001 = vmatpush1.bf16.xpose.msra.mxu0 0
        %1002 = vmatprep.subr.bf16.mxu0 0
        %1003 = vmatpush1.bf16.xpose.msra.mxu0 0
        %1004 = vmatprep.subr.bf16.mxu0 0
        %1005 = vmatpush1.bf16.xpose.msra.mxu0 0
        %1006 = vmatprep.subr.bf16.mxu0 0
        %1007 = vmatpush1.bf16.xpose.msra.mxu0 0
        %1008 = vmatprep.subr.bf16.mxu0 0
        %1009 = vmatpush1.bf16.xpose.msra.mxu0 0
        %1010 = vmatprep.subr.bf16.mxu0 0
        %1011 = vmatpush1.bf16.xpose.msra.mxu0 0
        %1012 = vmatprep.subr.bf16.mxu0 0
        %1013 = vmatpush1.bf16.xpose.msra.mxu0 0
        %1014 = vmatprep.subr.bf16.mxu0 0
        %1015 = vmatpush1.bf16.xpose.msra.mxu0 0
        %1016 = vmatprep.subr.bf16.mxu0 0
        %1017 = vmatpush1.bf16.xpose.msra.mxu0 0
        %1018 = vmatprep.subr.bf16.mxu0 0
        %1019 = vmatpush1.bf16.xpose.msra.mxu0 0
        %1020 = vmatprep.mubr.bf16.mxu0 0
        %1021 = vmatmul.mubr.bf16.gmra.mrb[0].mxu0 %v983
        %v1022 = vpop.f32.mrb[0].mxu0
        %v1023 = vadd.f32 0.0, %v1022
        %v1024 = vpop.f32.mrb[0].mxu0
        %v1025 = vpop.f32.mrb[0].mxu0
        %v1026 = vpop.f32.mrb[0].mxu0
        %1027 = vdwg.mxu0
        %1029 = vrot.lane.b32.xlu0 %v947, 96
        %v1030 = vpop.permute.xlu0 %1029
        %v1032 = vsel %vm981, %v947, 0
        %v1035 = vsel %vm981, %v1030, 0
        %1037 = vmatprep.subr.bf16.mxu0 0
        %1038 = vmatpush1.bf16.xpose.msra.mxu0 %v1035
        %1039 = vmatprep.subr.bf16.mxu0 0
        %1040 = vmatpush1.bf16.xpose.msra.mxu0 0
        %1041 = vmatprep.subr.bf16.mxu0 0
        %1042 = vmatpush1.bf16.xpose.msra.mxu0 0
        %1043 = vmatprep.subr.bf16.mxu0 0
        %1044 = vmatpush1.bf16.xpose.msra.mxu0 0
        %1045 = vmatprep.subr.bf16.mxu0 0
        %1046 = vmatpush1.bf16.xpose.msra.mxu0 0
        %1047 = vmatprep.subr.bf16.mxu0 0
        %1048 = vmatpush1.bf16.xpose.msra.mxu0 0
        %1049 = vmatprep.subr.bf16.mxu0 0
        %1050 = vmatpush1.bf16.xpose.msra.mxu0 0
        %1051 = vmatprep.subr.bf16.mxu0 0
        %1052 = vmatpush1.bf16.xpose.msra.mxu0 0
        %1053 = vmatprep.subr.bf16.mxu0 0
        %1054 = vmatpush1.bf16.xpose.msra.mxu0 0
        %1055 = vmatprep.subr.bf16.mxu0 0
        %1056 = vmatpush1.bf16.xpose.msra.mxu0 0
        %1057 = vmatprep.subr.bf16.mxu0 0
        %1058 = vmatpush1.bf16.xpose.msra.mxu0 0
        %1059 = vmatprep.subr.bf16.mxu0 0
        %1060 = vmatpush1.bf16.xpose.msra.mxu0 0
        %1061 = vmatprep.subr.bf16.mxu0 0
        %1062 = vmatpush1.bf16.xpose.msra.mxu0 0
        %1063 = vmatprep.subr.bf16.mxu0 0
        %1064 = vmatpush1.bf16.xpose.msra.mxu0 0
        %1065 = vmatprep.subr.bf16.mxu0 0
        %1066 = vmatpush1.bf16.xpose.msra.mxu0 0
        %1067 = vmatprep.subr.bf16.mxu0 0
        %1068 = vmatpush1.bf16.xpose.msra.mxu0 0
        %1069 = vmatprep.mubr.bf16.mxu0 0
        %1070 = vmatmul.mubr.bf16.gmra.mrb[0].mxu0 %v1032
        %v1071 = vpop.f32.mrb[0].mxu0
        %v1072 = vadd.f32 0.0, %v1071
        %v1073 = vpop.f32.mrb[0].mxu0
        %v1074 = vpop.f32.mrb[0].mxu0
        %v1075 = vpop.f32.mrb[0].mxu0
        %1076 = vdwg.mxu0
        %1078 = vrot.lane.b32.xlu0 %v948, 96
        %v1079 = vpop.permute.xlu0 %1078
        %v1081 = vsel %vm981, %v948, 0
        %v1084 = vsel %vm981, %v1079, 0
        %1086 = vmatprep.subr.bf16.mxu0 0
        %1087 = vmatpush1.bf16.xpose.msra.mxu0 %v1084
        %1088 = vmatprep.subr.bf16.mxu0 0
        %1089 = vmatpush1.bf16.xpose.msra.mxu0 0
        %1090 = vmatprep.subr.bf16.mxu0 0
        %1091 = vmatpush1.bf16.xpose.msra.mxu0 0
        %1092 = vmatprep.subr.bf16.mxu0 0
        %1093 = vmatpush1.bf16.xpose.msra.mxu0 0
        %1094 = vmatprep.subr.bf16.mxu0 0
        %1095 = vmatpush1.bf16.xpose.msra.mxu0 0
        %1096 = vmatprep.subr.bf16.mxu0 0
        %1097 = vmatpush1.bf16.xpose.msra.mxu0 0
        %1098 = vmatprep.subr.bf16.mxu0 0
        %1099 = vmatpush1.bf16.xpose.msra.mxu0 0
        %1100 = vmatprep.subr.bf16.mxu0 0
        %1101 = vmatpush1.bf16.xpose.msra.mxu0 0
        %1102 = vmatprep.subr.bf16.mxu0 0
        %1103 = vmatpush1.bf16.xpose.msra.mxu0 0
        %1104 = vmatprep.subr.bf16.mxu0 0
        %1105 = vmatpush1.bf16.xpose.msra.mxu0 0
        %1106 = vmatprep.subr.bf16.mxu0 0
        %1107 = vmatpush1.bf16.xpose.msra.mxu0 0
        %1108 = vmatprep.subr.bf16.mxu0 0
        %1109 = vmatpush1.bf16.xpose.msra.mxu0 0
        %1110 = vmatprep.subr.bf16.mxu0 0
        %1111 = vmatpush1.bf16.xpose.msra.mxu0 0
        %1112 = vmatprep.subr.bf16.mxu0 0
        %1113 = vmatpush1.bf16.xpose.msra.mxu0 0
        %1114 = vmatprep.subr.bf16.mxu0 0
        %1115 = vmatpush1.bf16.xpose.msra.mxu0 0
        %1116 = vmatprep.subr.bf16.mxu0 0
        %1117 = vmatpush1.bf16.xpose.msra.mxu0 0
        %1118 = vmatprep.mubr.bf16.mxu0 0
        %1119 = vmatmul.mubr.bf16.gmra.mrb[0].mxu0 %v1081
        %v1120 = vpop.f32.mrb[0].mxu0
        %v1121 = vadd.f32 0.0, %v1120
        %v1122 = vpop.f32.mrb[0].mxu0
        %v1123 = vpop.f32.mrb[0].mxu0
        %v1124 = vpop.f32.mrb[0].mxu0
        %1125 = vdwg.mxu0
        %1127 = vrot.lane.b32.xlu0 %v949, 96
        %v1128 = vpop.permute.xlu0 %1127
        %v1130 = vsel %vm981, %v949, 0
        %v1133 = vsel %vm981, %v1128, 0
        %1135 = vmatprep.subr.bf16.mxu0 0
        %1136 = vmatpush1.bf16.xpose.msra.mxu0 %v1133
        %1137 = vmatprep.subr.bf16.mxu0 0
        %1138 = vmatpush1.bf16.xpose.msra.mxu0 0
        %1139 = vmatprep.subr.bf16.mxu0 0
        %1140 = vmatpush1.bf16.xpose.msra.mxu0 0
        %1141 = vmatprep.subr.bf16.mxu0 0
        %1142 = vmatpush1.bf16.xpose.msra.mxu0 0
        %1143 = vmatprep.subr.bf16.mxu0 0
        %1144 = vmatpush1.bf16.xpose.msra.mxu0 0
        %1145 = vmatprep.subr.bf16.mxu0 0
        %1146 = vmatpush1.bf16.xpose.msra.mxu0 0
        %1147 = vmatprep.subr.bf16.mxu0 0
        %1148 = vmatpush1.bf16.xpose.msra.mxu0 0
        %1149 = vmatprep.subr.bf16.mxu0 0
        %1150 = vmatpush1.bf16.xpose.msra.mxu0 0
        %1151 = vmatprep.subr.bf16.mxu0 0
        %1152 = vmatpush1.bf16.xpose.msra.mxu0 0
        %1153 = vmatprep.subr.bf16.mxu0 0
        %1154 = vmatpush1.bf16.xpose.msra.mxu0 0
        %1155 = vmatprep.subr.bf16.mxu0 0
        %1156 = vmatpush1.bf16.xpose.msra.mxu0 0
        %1157 = vmatprep.subr.bf16.mxu0 0
        %1158 = vmatpush1.bf16.xpose.msra.mxu0 0
        %1159 = vmatprep.subr.bf16.mxu0 0
        %1160 = vmatpush1.bf16.xpose.msra.mxu0 0
        %1161 = vmatprep.subr.bf16.mxu0 0
        %1162 = vmatpush1.bf16.xpose.msra.mxu0 0
        %1163 = vmatprep.subr.bf16.mxu0 0
        %1164 = vmatpush1.bf16.xpose.msra.mxu0 0
        %1165 = vmatprep.subr.bf16.mxu0 0
        %1166 = vmatpush1.bf16.xpose.msra.mxu0 0
        %1167 = vmatprep.mubr.bf16.mxu0 0
        %1168 = vmatmul.mubr.bf16.gmra.mrb[0].mxu0 %v1130
        %v1169 = vpop.f32.mrb[0].mxu0
        %v1170 = vadd.f32 0.0, %v1169
        %v1171 = vpop.f32.mrb[0].mxu0
        %v1172 = vpop.f32.mrb[0].mxu0
        %v1173 = vpop.f32.mrb[0].mxu0
        %1174 = vdwg.mxu0
        %1176 = vrot.lane.b32.xlu0 %v950, 96
        %v1177 = vpop.permute.xlu0 %1176
        %v1179 = vsel %vm981, %v950, 0
        %v1182 = vsel %vm981, %v1177, 0
        %1184 = vmatprep.subr.bf16.mxu0 0
        %1185 = vmatpush1.bf16.xpose.msra.mxu0 %v1182
        %1186 = vmatprep.subr.bf16.mxu0 0
        %1187 = vmatpush1.bf16.xpose.msra.mxu0 0
        %1188 = vmatprep.subr.bf16.mxu0 0
        %1189 = vmatpush1.bf16.xpose.msra.mxu0 0
        %1190 = vmatprep.subr.bf16.mxu0 0
        %1191 = vmatpush1.bf16.xpose.msra.mxu0 0
        %1192 = vmatprep.subr.bf16.mxu0 0
        %1193 = vmatpush1.bf16.xpose.msra.mxu0 0
        %1194 = vmatprep.subr.bf16.mxu0 0
        %1195 = vmatpush1.bf16.xpose.msra.mxu0 0
        %1196 = vmatprep.subr.bf16.mxu0 0
        %1197 = vmatpush1.bf16.xpose.msra.mxu0 0
        %1198 = vmatprep.subr.bf16.mxu0 0
        %1199 = vmatpush1.bf16.xpose.msra.mxu0 0
        %1200 = vmatprep.subr.bf16.mxu0 0
        %1201 = vmatpush1.bf16.xpose.msra.mxu0 0
        %1202 = vmatprep.subr.bf16.mxu0 0
        %1203 = vmatpush1.bf16.xpose.msra.mxu0 0
        %1204 = vmatprep.subr.bf16.mxu0 0
        %1205 = vmatpush1.bf16.xpose.msra.mxu0 0
        %1206 = vmatprep.subr.bf16.mxu0 0
        %1207 = vmatpush1.bf16.xpose.msra.mxu0 0
        %1208 = vmatprep.subr.bf16.mxu0 0
        %1209 = vmatpush1.bf16.xpose.msra.mxu0 0
        %1210 = vmatprep.subr.bf16.mxu0 0
        %1211 = vmatpush1.bf16.xpose.msra.mxu0 0
        %1212 = vmatprep.subr.bf16.mxu0 0
        %1213 = vmatpush1.bf16.xpose.msra.mxu0 0
        %1214 = vmatprep.subr.bf16.mxu0 0
        %1215 = vmatpush1.bf16.xpose.msra.mxu0 0
        %1216 = vmatprep.mubr.bf16.mxu0 0
        %1217 = vmatmul.mubr.bf16.gmra.mrb[0].mxu0 %v1179
        %v1218 = vpop.f32.mrb[0].mxu0
        %v1219 = vadd.f32 0.0, %v1218
        %v1220 = vpop.f32.mrb[0].mxu0
        %v1221 = vpop.f32.mrb[0].mxu0
        %v1222 = vpop.f32.mrb[0].mxu0
        %1223 = vdwg.mxu0
        %1225 = vrot.lane.b32.xlu0 %v951, 96
        %v1226 = vpop.permute.xlu0 %1225
        %v1228 = vsel %vm981, %v951, 0
        %v1231 = vsel %vm981, %v1226, 0
        %1233 = vmatprep.subr.bf16.mxu0 0
        %1234 = vmatpush1.bf16.xpose.msra.mxu0 %v1231
        %1235 = vmatprep.subr.bf16.mxu0 0
        %1236 = vmatpush1.bf16.xpose.msra.mxu0 0
        %1237 = vmatprep.subr.bf16.mxu0 0
        %1238 = vmatpush1.bf16.xpose.msra.mxu0 0
        %1239 = vmatprep.subr.bf16.mxu0 0
        %1240 = vmatpush1.bf16.xpose.msra.mxu0 0
        %1241 = vmatprep.subr.bf16.mxu0 0
        %1242 = vmatpush1.bf16.xpose.msra.mxu0 0
        %1243 = vmatprep.subr.bf16.mxu0 0
        %1244 = vmatpush1.bf16.xpose.msra.mxu0 0
        %1245 = vmatprep.subr.bf16.mxu0 0
        %1246 = vmatpush1.bf16.xpose.msra.mxu0 0
        %1247 = vmatprep.subr.bf16.mxu0 0
        %1248 = vmatpush1.bf16.xpose.msra.mxu0 0
        %1249 = vmatprep.subr.bf16.mxu0 0
        %1250 = vmatpush1.bf16.xpose.msra.mxu0 0
        %1251 = vmatprep.subr.bf16.mxu0 0
        %1252 = vmatpush1.bf16.xpose.msra.mxu0 0
        %1253 = vmatprep.subr.bf16.mxu0 0
        %1254 = vmatpush1.bf16.xpose.msra.mxu0 0
        %1255 = vmatprep.subr.bf16.mxu0 0
        %1256 = vmatpush1.bf16.xpose.msra.mxu0 0
        %1257 = vmatprep.subr.bf16.mxu0 0
        %1258 = vmatpush1.bf16.xpose.msra.mxu0 0
        %1259 = vmatprep.subr.bf16.mxu0 0
        %1260 = vmatpush1.bf16.xpose.msra.mxu0 0
        %1261 = vmatprep.subr.bf16.mxu0 0
        %1262 = vmatpush1.bf16.xpose.msra.mxu0 0
        %1263 = vmatprep.subr.bf16.mxu0 0
        %1264 = vmatpush1.bf16.xpose.msra.mxu0 0
        %1265 = vmatprep.mubr.bf16.mxu0 0
        %1266 = vmatmul.mubr.bf16.gmra.mrb[0].mxu0 %v1228
        %v1267 = vpop.f32.mrb[0].mxu0
        %v1268 = vadd.f32 0.0, %v1267
        %v1269 = vpop.f32.mrb[0].mxu0
        %v1270 = vpop.f32.mrb[0].mxu0
        %v1271 = vpop.f32.mrb[0].mxu0
        %1272 = vdwg.mxu0
        %1274 = vrot.lane.b32.xlu0 %v952, 96
        %v1275 = vpop.permute.xlu0 %1274
        %v1277 = vsel %vm981, %v952, 0
        %v1280 = vsel %vm981, %v1275, 0
        %1282 = vmatprep.subr.bf16.mxu0 0
        %1283 = vmatpush1.bf16.xpose.msra.mxu0 %v1280
        %1284 = vmatprep.subr.bf16.mxu0 0
        %1285 = vmatpush1.bf16.xpose.msra.mxu0 0
        %1286 = vmatprep.subr.bf16.mxu0 0
        %1287 = vmatpush1.bf16.xpose.msra.mxu0 0
        %1288 = vmatprep.subr.bf16.mxu0 0
        %1289 = vmatpush1.bf16.xpose.msra.mxu0 0
        %1290 = vmatprep.subr.bf16.mxu0 0
        %1291 = vmatpush1.bf16.xpose.msra.mxu0 0
        %1292 = vmatprep.subr.bf16.mxu0 0
        %1293 = vmatpush1.bf16.xpose.msra.mxu0 0
        %1294 = vmatprep.subr.bf16.mxu0 0
        %1295 = vmatpush1.bf16.xpose.msra.mxu0 0
        %1296 = vmatprep.subr.bf16.mxu0 0
        %1297 = vmatpush1.bf16.xpose.msra.mxu0 0
        %1298 = vmatprep.subr.bf16.mxu0 0
        %1299 = vmatpush1.bf16.xpose.msra.mxu0 0
        %1300 = vmatprep.subr.bf16.mxu0 0
        %1301 = vmatpush1.bf16.xpose.msra.mxu0 0
        %1302 = vmatprep.subr.bf16.mxu0 0
        %1303 = vmatpush1.bf16.xpose.msra.mxu0 0
        %1304 = vmatprep.subr.bf16.mxu0 0
        %1305 = vmatpush1.bf16.xpose.msra.mxu0 0
        %1306 = vmatprep.subr.bf16.mxu0 0
        %1307 = vmatpush1.bf16.xpose.msra.mxu0 0
        %1308 = vmatprep.subr.bf16.mxu0 0
        %1309 = vmatpush1.bf16.xpose.msra.mxu0 0
        %1310 = vmatprep.subr.bf16.mxu0 0
        %1311 = vmatpush1.bf16.xpose.msra.mxu0 0
        %1312 = vmatprep.subr.bf16.mxu0 0
        %1313 = vmatpush1.bf16.xpose.msra.mxu0 0
        %1314 = vmatprep.mubr.bf16.mxu0 0
        %1315 = vmatmul.mubr.bf16.gmra.mrb[0].mxu0 %v1277
        %v1316 = vpop.f32.mrb[0].mxu0
        %v1317 = vadd.f32 0.0, %v1316
        %v1318 = vpop.f32.mrb[0].mxu0
        %v1319 = vpop.f32.mrb[0].mxu0
        %v1320 = vpop.f32.mrb[0].mxu0
        %1321 = vdwg.mxu0
        %1323 = vrot.lane.b32.xlu0 %v953, 96
        %v1324 = vpop.permute.xlu0 %1323
        %v1326 = vsel %vm981, %v953, 0
        %v1329 = vsel %vm981, %v1324, 0
        %1331 = vmatprep.subr.bf16.mxu0 0
        %1332 = vmatpush1.bf16.xpose.msra.mxu0 %v1329
        %1333 = vmatprep.subr.bf16.mxu0 0
        %1334 = vmatpush1.bf16.xpose.msra.mxu0 0
        %1335 = vmatprep.subr.bf16.mxu0 0
        %1336 = vmatpush1.bf16.xpose.msra.mxu0 0
        %1337 = vmatprep.subr.bf16.mxu0 0
        %1338 = vmatpush1.bf16.xpose.msra.mxu0 0
        %1339 = vmatprep.subr.bf16.mxu0 0
        %1340 = vmatpush1.bf16.xpose.msra.mxu0 0
        %1341 = vmatprep.subr.bf16.mxu0 0
        %1342 = vmatpush1.bf16.xpose.msra.mxu0 0
        %1343 = vmatprep.subr.bf16.mxu0 0
        %1344 = vmatpush1.bf16.xpose.msra.mxu0 0
        %1345 = vmatprep.subr.bf16.mxu0 0
        %1346 = vmatpush1.bf16.xpose.msra.mxu0 0
        %1347 = vmatprep.subr.bf16.mxu0 0
        %1348 = vmatpush1.bf16.xpose.msra.mxu0 0
        %1349 = vmatprep.subr.bf16.mxu0 0
        %1350 = vmatpush1.bf16.xpose.msra.mxu0 0
        %1351 = vmatprep.subr.bf16.mxu0 0
        %1352 = vmatpush1.bf16.xpose.msra.mxu0 0
        %1353 = vmatprep.subr.bf16.mxu0 0
        %1354 = vmatpush1.bf16.xpose.msra.mxu0 0
        %1355 = vmatprep.subr.bf16.mxu0 0
        %1356 = vmatpush1.bf16.xpose.msra.mxu0 0
        %1357 = vmatprep.subr.bf16.mxu0 0
        %1358 = vmatpush1.bf16.xpose.msra.mxu0 0
        %1359 = vmatprep.subr.bf16.mxu0 0
        %1360 = vmatpush1.bf16.xpose.msra.mxu0 0
        %1361 = vmatprep.subr.bf16.mxu0 0
        %1362 = vmatpush1.bf16.xpose.msra.mxu0 0
        %1363 = vmatprep.mubr.bf16.mxu0 0
        %1364 = vmatmul.mubr.bf16.gmra.mrb[0].mxu0 %v1326
        %v1365 = vpop.f32.mrb[0].mxu0
        %v1366 = vadd.f32 0.0, %v1365
        %v1367 = vpop.f32.mrb[0].mxu0
        %v1368 = vpop.f32.mrb[0].mxu0
        %v1369 = vpop.f32.mrb[0].mxu0
        %1370 = vdwg.mxu0
        %1372 = vrot.lane.b32.xlu0 %v954, 96
        %v1373 = vpop.permute.xlu0 %1372
        %v1375 = vsel %vm981, %v954, 0
        %v1378 = vsel %vm981, %v1373, 0
        %1380 = vmatprep.subr.bf16.mxu0 0
        %1381 = vmatpush1.bf16.xpose.msra.mxu0 %v1378
        %1382 = vmatprep.subr.bf16.mxu0 0
        %1383 = vmatpush1.bf16.xpose.msra.mxu0 0
        %1384 = vmatprep.subr.bf16.mxu0 0
        %1385 = vmatpush1.bf16.xpose.msra.mxu0 0
        %1386 = vmatprep.subr.bf16.mxu0 0
        %1387 = vmatpush1.bf16.xpose.msra.mxu0 0
        %1388 = vmatprep.subr.bf16.mxu0 0
        %1389 = vmatpush1.bf16.xpose.msra.mxu0 0
        %1390 = vmatprep.subr.bf16.mxu0 0
        %1391 = vmatpush1.bf16.xpose.msra.mxu0 0
        %1392 = vmatprep.subr.bf16.mxu0 0
        %1393 = vmatpush1.bf16.xpose.msra.mxu0 0
        %1394 = vmatprep.subr.bf16.mxu0 0
        %1395 = vmatpush1.bf16.xpose.msra.mxu0 0
        %1396 = vmatprep.subr.bf16.mxu0 0
        %1397 = vmatpush1.bf16.xpose.msra.mxu0 0
        %1398 = vmatprep.subr.bf16.mxu0 0
        %1399 = vmatpush1.bf16.xpose.msra.mxu0 0
        %1400 = vmatprep.subr.bf16.mxu0 0
        %1401 = vmatpush1.bf16.xpose.msra.mxu0 0
        %1402 = vmatprep.subr.bf16.mxu0 0
        %1403 = vmatpush1.bf16.xpose.msra.mxu0 0
        %1404 = vmatprep.subr.bf16.mxu0 0
        %1405 = vmatpush1.bf16.xpose.msra.mxu0 0
        %1406 = vmatprep.subr.bf16.mxu0 0
        %1407 = vmatpush1.bf16.xpose.msra.mxu0 0
        %1408 = vmatprep.subr.bf16.mxu0 0
        %1409 = vmatpush1.bf16.xpose.msra.mxu0 0
        %1410 = vmatprep.subr.bf16.mxu0 0
        %1411 = vmatpush1.bf16.xpose.msra.mxu0 0
        %1412 = vmatprep.mubr.bf16.mxu0 0
        %1413 = vmatmul.mubr.bf16.gmra.mrb[0].mxu0 %v1375
        %v1414 = vpop.f32.mrb[0].mxu0
        %v1415 = vadd.f32 0.0, %v1414
        %v1416 = vpop.f32.mrb[0].mxu0
        %v1417 = vpop.f32.mrb[0].mxu0
        %v1418 = vpop.f32.mrb[0].mxu0
        %1419 = vdwg.mxu0
        %1421 = vrot.lane.b32.xlu0 %v955, 96
        %v1422 = vpop.permute.xlu0 %1421
        %v1424 = vsel %vm981, %v955, 0
        %v1427 = vsel %vm981, %v1422, 0
        %1429 = vmatprep.subr.bf16.mxu0 0
        %1430 = vmatpush1.bf16.xpose.msra.mxu0 %v1427
        %1431 = vmatprep.subr.bf16.mxu0 0
        %1432 = vmatpush1.bf16.xpose.msra.mxu0 0
        %1433 = vmatprep.subr.bf16.mxu0 0
        %1434 = vmatpush1.bf16.xpose.msra.mxu0 0
        %1435 = vmatprep.subr.bf16.mxu0 0
        %1436 = vmatpush1.bf16.xpose.msra.mxu0 0
        %1437 = vmatprep.subr.bf16.mxu0 0
        %1438 = vmatpush1.bf16.xpose.msra.mxu0 0
        %1439 = vmatprep.subr.bf16.mxu0 0
        %1440 = vmatpush1.bf16.xpose.msra.mxu0 0
        %1441 = vmatprep.subr.bf16.mxu0 0
        %1442 = vmatpush1.bf16.xpose.msra.mxu0 0
        %1443 = vmatprep.subr.bf16.mxu0 0
        %1444 = vmatpush1.bf16.xpose.msra.mxu0 0
        %1445 = vmatprep.subr.bf16.mxu0 0
        %1446 = vmatpush1.bf16.xpose.msra.mxu0 0
        %1447 = vmatprep.subr.bf16.mxu0 0
        %1448 = vmatpush1.bf16.xpose.msra.mxu0 0
        %1449 = vmatprep.subr.bf16.mxu0 0
        %1450 = vmatpush1.bf16.xpose.msra.mxu0 0
        %1451 = vmatprep.subr.bf16.mxu0 0
        %1452 = vmatpush1.bf16.xpose.msra.mxu0 0
        %1453 = vmatprep.subr.bf16.mxu0 0
        %1454 = vmatpush1.bf16.xpose.msra.mxu0 0
        %1455 = vmatprep.subr.bf16.mxu0 0
        %1456 = vmatpush1.bf16.xpose.msra.mxu0 0
        %1457 = vmatprep.subr.bf16.mxu0 0
        %1458 = vmatpush1.bf16.xpose.msra.mxu0 0
        %1459 = vmatprep.subr.bf16.mxu0 0
        %1460 = vmatpush1.bf16.xpose.msra.mxu0 0
        %1461 = vmatprep.mubr.bf16.mxu0 0
        %1462 = vmatmul.mubr.bf16.gmra.mrb[0].mxu0 %v1424
        %v1463 = vpop.f32.mrb[0].mxu0
        %v1464 = vadd.f32 0.0, %v1463
        %v1465 = vpop.f32.mrb[0].mxu0
        %v1466 = vpop.f32.mrb[0].mxu0
        %v1467 = vpop.f32.mrb[0].mxu0
        %1468 = vdwg.mxu0
        %1470 = vrot.lane.b32.xlu0 %v956, 96
        %v1471 = vpop.permute.xlu0 %1470
        %v1473 = vsel %vm981, %v956, 0
        %v1476 = vsel %vm981, %v1471, 0
        %1478 = vmatprep.subr.bf16.mxu0 0
        %1479 = vmatpush1.bf16.xpose.msra.mxu0 %v1476
        %1480 = vmatprep.subr.bf16.mxu0 0
        %1481 = vmatpush1.bf16.xpose.msra.mxu0 0
        %1482 = vmatprep.subr.bf16.mxu0 0
        %1483 = vmatpush1.bf16.xpose.msra.mxu0 0
        %1484 = vmatprep.subr.bf16.mxu0 0
        %1485 = vmatpush1.bf16.xpose.msra.mxu0 0
        %1486 = vmatprep.subr.bf16.mxu0 0
        %1487 = vmatpush1.bf16.xpose.msra.mxu0 0
        %1488 = vmatprep.subr.bf16.mxu0 0
        %1489 = vmatpush1.bf16.xpose.msra.mxu0 0
        %1490 = vmatprep.subr.bf16.mxu0 0
        %1491 = vmatpush1.bf16.xpose.msra.mxu0 0
        %1492 = vmatprep.subr.bf16.mxu0 0
        %1493 = vmatpush1.bf16.xpose.msra.mxu0 0
        %1494 = vmatprep.subr.bf16.mxu0 0
        %1495 = vmatpush1.bf16.xpose.msra.mxu0 0
        %1496 = vmatprep.subr.bf16.mxu0 0
        %1497 = vmatpush1.bf16.xpose.msra.mxu0 0
        %1498 = vmatprep.subr.bf16.mxu0 0
        %1499 = vmatpush1.bf16.xpose.msra.mxu0 0
        %1500 = vmatprep.subr.bf16.mxu0 0
        %1501 = vmatpush1.bf16.xpose.msra.mxu0 0
        %1502 = vmatprep.subr.bf16.mxu0 0
        %1503 = vmatpush1.bf16.xpose.msra.mxu0 0
        %1504 = vmatprep.subr.bf16.mxu0 0
        %1505 = vmatpush1.bf16.xpose.msra.mxu0 0
        %1506 = vmatprep.subr.bf16.mxu0 0
        %1507 = vmatpush1.bf16.xpose.msra.mxu0 0
        %1508 = vmatprep.subr.bf16.mxu0 0
        %1509 = vmatpush1.bf16.xpose.msra.mxu0 0
        %1510 = vmatprep.mubr.bf16.mxu0 0
        %1511 = vmatmul.mubr.bf16.gmra.mrb[0].mxu0 %v1473
        %v1512 = vpop.f32.mrb[0].mxu0
        %v1513 = vadd.f32 0.0, %v1512
        %v1514 = vpop.f32.mrb[0].mxu0
        %v1515 = vpop.f32.mrb[0].mxu0
        %v1516 = vpop.f32.mrb[0].mxu0
        %1517 = vdwg.mxu0
        %1519 = vrot.lane.b32.xlu0 %v957, 96
        %v1520 = vpop.permute.xlu0 %1519
        %v1522 = vsel %vm981, %v957, 0
        %v1525 = vsel %vm981, %v1520, 0
        %1527 = vmatprep.subr.bf16.mxu0 0
        %1528 = vmatpush1.bf16.xpose.msra.mxu0 %v1525
        %1529 = vmatprep.subr.bf16.mxu0 0
        %1530 = vmatpush1.bf16.xpose.msra.mxu0 0
        %1531 = vmatprep.subr.bf16.mxu0 0
        %1532 = vmatpush1.bf16.xpose.msra.mxu0 0
        %1533 = vmatprep.subr.bf16.mxu0 0
        %1534 = vmatpush1.bf16.xpose.msra.mxu0 0
        %1535 = vmatprep.subr.bf16.mxu0 0
        %1536 = vmatpush1.bf16.xpose.msra.mxu0 0
        %1537 = vmatprep.subr.bf16.mxu0 0
        %1538 = vmatpush1.bf16.xpose.msra.mxu0 0
        %1539 = vmatprep.subr.bf16.mxu0 0
        %1540 = vmatpush1.bf16.xpose.msra.mxu0 0
        %1541 = vmatprep.subr.bf16.mxu0 0
        %1542 = vmatpush1.bf16.xpose.msra.mxu0 0
        %1543 = vmatprep.subr.bf16.mxu0 0
        %1544 = vmatpush1.bf16.xpose.msra.mxu0 0
        %1545 = vmatprep.subr.bf16.mxu0 0
        %1546 = vmatpush1.bf16.xpose.msra.mxu0 0
        %1547 = vmatprep.subr.bf16.mxu0 0
        %1548 = vmatpush1.bf16.xpose.msra.mxu0 0
        %1549 = vmatprep.subr.bf16.mxu0 0
        %1550 = vmatpush1.bf16.xpose.msra.mxu0 0
        %1551 = vmatprep.subr.bf16.mxu0 0
        %1552 = vmatpush1.bf16.xpose.msra.mxu0 0
        %1553 = vmatprep.subr.bf16.mxu0 0
        %1554 = vmatpush1.bf16.xpose.msra.mxu0 0
        %1555 = vmatprep.subr.bf16.mxu0 0
        %1556 = vmatpush1.bf16.xpose.msra.mxu0 0
        %1557 = vmatprep.subr.bf16.mxu0 0
        %1558 = vmatpush1.bf16.xpose.msra.mxu0 0
        %1559 = vmatprep.mubr.bf16.mxu0 0
        %1560 = vmatmul.mubr.bf16.gmra.mrb[0].mxu0 %v1522
        %v1561 = vpop.f32.mrb[0].mxu0
        %v1562 = vadd.f32 0.0, %v1561
        %v1563 = vpop.f32.mrb[0].mxu0
        %v1564 = vpop.f32.mrb[0].mxu0
        %v1565 = vpop.f32.mrb[0].mxu0
        %1566 = vdwg.mxu0
        %1568 = vrot.lane.b32.xlu0 %v958, 96
        %v1569 = vpop.permute.xlu0 %1568
        %v1571 = vsel %vm981, %v958, 0
        %v1574 = vsel %vm981, %v1569, 0
        %1576 = vmatprep.subr.bf16.mxu0 0
        %1577 = vmatpush1.bf16.xpose.msra.mxu0 %v1574
        %1578 = vmatprep.subr.bf16.mxu0 0
        %1579 = vmatpush1.bf16.xpose.msra.mxu0 0
        %1580 = vmatprep.subr.bf16.mxu0 0
        %1581 = vmatpush1.bf16.xpose.msra.mxu0 0
        %1582 = vmatprep.subr.bf16.mxu0 0
        %1583 = vmatpush1.bf16.xpose.msra.mxu0 0
        %1584 = vmatprep.subr.bf16.mxu0 0
        %1585 = vmatpush1.bf16.xpose.msra.mxu0 0
        %1586 = vmatprep.subr.bf16.mxu0 0
        %1587 = vmatpush1.bf16.xpose.msra.mxu0 0
        %1588 = vmatprep.subr.bf16.mxu0 0
        %1589 = vmatpush1.bf16.xpose.msra.mxu0 0
        %1590 = vmatprep.subr.bf16.mxu0 0
        %1591 = vmatpush1.bf16.xpose.msra.mxu0 0
        %1592 = vmatprep.subr.bf16.mxu0 0
        %1593 = vmatpush1.bf16.xpose.msra.mxu0 0
        %1594 = vmatprep.subr.bf16.mxu0 0
        %1595 = vmatpush1.bf16.xpose.msra.mxu0 0
        %1596 = vmatprep.subr.bf16.mxu0 0
        %1597 = vmatpush1.bf16.xpose.msra.mxu0 0
        %1598 = vmatprep.subr.bf16.mxu0 0
        %1599 = vmatpush1.bf16.xpose.msra.mxu0 0
        %1600 = vmatprep.subr.bf16.mxu0 0
        %1601 = vmatpush1.bf16.xpose.msra.mxu0 0
        %1602 = vmatprep.subr.bf16.mxu0 0
        %1603 = vmatpush1.bf16.xpose.msra.mxu0 0
        %1604 = vmatprep.subr.bf16.mxu0 0
        %1605 = vmatpush1.bf16.xpose.msra.mxu0 0
        %1606 = vmatprep.subr.bf16.mxu0 0
        %1607 = vmatpush1.bf16.xpose.msra.mxu0 0
        %1608 = vmatprep.mubr.bf16.mxu0 0
        %1609 = vmatmul.mubr.bf16.gmra.mrb[0].mxu0 %v1571
        %v1610 = vpop.f32.mrb[0].mxu0
        %v1611 = vadd.f32 0.0, %v1610
        %v1612 = vpop.f32.mrb[0].mxu0
        %v1613 = vpop.f32.mrb[0].mxu0
        %v1614 = vpop.f32.mrb[0].mxu0
        %1615 = vdwg.mxu0
        %1617 = vrot.lane.b32.xlu0 %v959, 96
        %v1618 = vpop.permute.xlu0 %1617
        %v1620 = vsel %vm981, %v959, 0
        %v1623 = vsel %vm981, %v1618, 0
        %1625 = vmatprep.subr.bf16.mxu0 0
        %1626 = vmatpush1.bf16.xpose.msra.mxu0 %v1623
        %1627 = vmatprep.subr.bf16.mxu0 0
        %1628 = vmatpush1.bf16.xpose.msra.mxu0 0
        %1629 = vmatprep.subr.bf16.mxu0 0
        %1630 = vmatpush1.bf16.xpose.msra.mxu0 0
        %1631 = vmatprep.subr.bf16.mxu0 0
        %1632 = vmatpush1.bf16.xpose.msra.mxu0 0
        %1633 = vmatprep.subr.bf16.mxu0 0
        %1634 = vmatpush1.bf16.xpose.msra.mxu0 0
        %1635 = vmatprep.subr.bf16.mxu0 0
        %1636 = vmatpush1.bf16.xpose.msra.mxu0 0
        %1637 = vmatprep.subr.bf16.mxu0 0
        %1638 = vmatpush1.bf16.xpose.msra.mxu0 0
        %1639 = vmatprep.subr.bf16.mxu0 0
        %1640 = vmatpush1.bf16.xpose.msra.mxu0 0
        %1641 = vmatprep.subr.bf16.mxu0 0
        %1642 = vmatpush1.bf16.xpose.msra.mxu0 0
        %1643 = vmatprep.subr.bf16.mxu0 0
        %1644 = vmatpush1.bf16.xpose.msra.mxu0 0
        %1645 = vmatprep.subr.bf16.mxu0 0
        %1646 = vmatpush1.bf16.xpose.msra.mxu0 0
        %1647 = vmatprep.subr.bf16.mxu0 0
        %1648 = vmatpush1.bf16.xpose.msra.mxu0 0
        %1649 = vmatprep.subr.bf16.mxu0 0
        %1650 = vmatpush1.bf16.xpose.msra.mxu0 0
        %1651 = vmatprep.subr.bf16.mxu0 0
        %1652 = vmatpush1.bf16.xpose.msra.mxu0 0
        %1653 = vmatprep.subr.bf16.mxu0 0
        %1654 = vmatpush1.bf16.xpose.msra.mxu0 0
        %1655 = vmatprep.subr.bf16.mxu0 0
        %1656 = vmatpush1.bf16.xpose.msra.mxu0 0
        %1657 = vmatprep.mubr.bf16.mxu0 0
        %1658 = vmatmul.mubr.bf16.gmra.mrb[0].mxu0 %v1620
        %v1659 = vpop.f32.mrb[0].mxu0
        %v1660 = vadd.f32 0.0, %v1659
        %v1661 = vpop.f32.mrb[0].mxu0
        %v1662 = vpop.f32.mrb[0].mxu0
        %v1663 = vpop.f32.mrb[0].mxu0
        %1664 = vdwg.mxu0
        %1666 = vrot.lane.b32.xlu0 %v960, 96
        %v1667 = vpop.permute.xlu0 %1666
        %v1669 = vsel %vm981, %v960, 0
        %v1672 = vsel %vm981, %v1667, 0
        %1674 = vmatprep.subr.bf16.mxu0 0
        %1675 = vmatpush1.bf16.xpose.msra.mxu0 %v1672
        %1676 = vmatprep.subr.bf16.mxu0 0
        %1677 = vmatpush1.bf16.xpose.msra.mxu0 0
        %1678 = vmatprep.subr.bf16.mxu0 0
        %1679 = vmatpush1.bf16.xpose.msra.mxu0 0
        %1680 = vmatprep.subr.bf16.mxu0 0
        %1681 = vmatpush1.bf16.xpose.msra.mxu0 0
        %1682 = vmatprep.subr.bf16.mxu0 0
        %1683 = vmatpush1.bf16.xpose.msra.mxu0 0
        %1684 = vmatprep.subr.bf16.mxu0 0
        %1685 = vmatpush1.bf16.xpose.msra.mxu0 0
        %1686 = vmatprep.subr.bf16.mxu0 0
        %1687 = vmatpush1.bf16.xpose.msra.mxu0 0
        %1688 = vmatprep.subr.bf16.mxu0 0
        %1689 = vmatpush1.bf16.xpose.msra.mxu0 0
        %1690 = vmatprep.subr.bf16.mxu0 0
        %1691 = vmatpush1.bf16.xpose.msra.mxu0 0
        %1692 = vmatprep.subr.bf16.mxu0 0
        %1693 = vmatpush1.bf16.xpose.msra.mxu0 0
        %1694 = vmatprep.subr.bf16.mxu0 0
        %1695 = vmatpush1.bf16.xpose.msra.mxu0 0
        %1696 = vmatprep.subr.bf16.mxu0 0
        %1697 = vmatpush1.bf16.xpose.msra.mxu0 0
        %1698 = vmatprep.subr.bf16.mxu0 0
        %1699 = vmatpush1.bf16.xpose.msra.mxu0 0
        %1700 = vmatprep.subr.bf16.mxu0 0
        %1701 = vmatpush1.bf16.xpose.msra.mxu0 0
        %1702 = vmatprep.subr.bf16.mxu0 0
        %1703 = vmatpush1.bf16.xpose.msra.mxu0 0
        %1704 = vmatprep.subr.bf16.mxu0 0
        %1705 = vmatpush1.bf16.xpose.msra.mxu0 0
        %1706 = vmatprep.mubr.bf16.mxu0 0
        %1707 = vmatmul.mubr.bf16.gmra.mrb[0].mxu0 %v1669
        %v1708 = vpop.f32.mrb[0].mxu0
        %v1709 = vadd.f32 0.0, %v1708
        %v1710 = vpop.f32.mrb[0].mxu0
        %v1711 = vpop.f32.mrb[0].mxu0
        %v1712 = vpop.f32.mrb[0].mxu0
        %1713 = vdwg.mxu0
        %1715 = vrot.lane.b32.xlu0 %v961, 96
        %v1716 = vpop.permute.xlu0 %1715
        %v1718 = vsel %vm981, %v961, 0
        %v1721 = vsel %vm981, %v1716, 0
        %1723 = vmatprep.subr.bf16.mxu0 0
        %1724 = vmatpush1.bf16.xpose.msra.mxu0 %v1721
        %1725 = vmatprep.subr.bf16.mxu0 0
        %1726 = vmatpush1.bf16.xpose.msra.mxu0 0
        %1727 = vmatprep.subr.bf16.mxu0 0
        %1728 = vmatpush1.bf16.xpose.msra.mxu0 0
        %1729 = vmatprep.subr.bf16.mxu0 0
        %1730 = vmatpush1.bf16.xpose.msra.mxu0 0
        %1731 = vmatprep.subr.bf16.mxu0 0
        %1732 = vmatpush1.bf16.xpose.msra.mxu0 0
        %1733 = vmatprep.subr.bf16.mxu0 0
        %1734 = vmatpush1.bf16.xpose.msra.mxu0 0
        %1735 = vmatprep.subr.bf16.mxu0 0
        %1736 = vmatpush1.bf16.xpose.msra.mxu0 0
        %1737 = vmatprep.subr.bf16.mxu0 0
        %1738 = vmatpush1.bf16.xpose.msra.mxu0 0
        %1739 = vmatprep.subr.bf16.mxu0 0
        %1740 = vmatpush1.bf16.xpose.msra.mxu0 0
        %1741 = vmatprep.subr.bf16.mxu0 0
        %1742 = vmatpush1.bf16.xpose.msra.mxu0 0
        %1743 = vmatprep.subr.bf16.mxu0 0
        %1744 = vmatpush1.bf16.xpose.msra.mxu0 0
        %1745 = vmatprep.subr.bf16.mxu0 0
        %1746 = vmatpush1.bf16.xpose.msra.mxu0 0
        %1747 = vmatprep.subr.bf16.mxu0 0
        %1748 = vmatpush1.bf16.xpose.msra.mxu0 0
        %1749 = vmatprep.subr.bf16.mxu0 0
        %1750 = vmatpush1.bf16.xpose.msra.mxu0 0
        %1751 = vmatprep.subr.bf16.mxu0 0
        %1752 = vmatpush1.bf16.xpose.msra.mxu0 0
        %1753 = vmatprep.subr.bf16.mxu0 0
        %1754 = vmatpush1.bf16.xpose.msra.mxu0 0
        %1755 = vmatprep.mubr.bf16.mxu0 0
        %1756 = vmatmul.mubr.bf16.gmra.mrb[0].mxu0 %v1718
        %v1757 = vpop.f32.mrb[0].mxu0
        %v1758 = vadd.f32 0.0, %v1757
        %v1759 = vpop.f32.mrb[0].mxu0
        %v1760 = vpop.f32.mrb[0].mxu0
        %v1761 = vpop.f32.mrb[0].mxu0
        %1762 = vdwg.mxu0
        %1764 = vrot.lane.b32.xlu0 %v962, 96
        %v1765 = vpop.permute.xlu0 %1764
        %v1767 = vsel %vm981, %v962, 0
        %v1770 = vsel %vm981, %v1765, 0
        %1772 = vmatprep.subr.bf16.mxu0 0
        %1773 = vmatpush1.bf16.xpose.msra.mxu0 %v1770
        %1774 = vmatprep.subr.bf16.mxu0 0
        %1775 = vmatpush1.bf16.xpose.msra.mxu0 0
        %1776 = vmatprep.subr.bf16.mxu0 0
        %1777 = vmatpush1.bf16.xpose.msra.mxu0 0
        %1778 = vmatprep.subr.bf16.mxu0 0
        %1779 = vmatpush1.bf16.xpose.msra.mxu0 0
        %1780 = vmatprep.subr.bf16.mxu0 0
        %1781 = vmatpush1.bf16.xpose.msra.mxu0 0
        %1782 = vmatprep.subr.bf16.mxu0 0
        %1783 = vmatpush1.bf16.xpose.msra.mxu0 0
        %1784 = vmatprep.subr.bf16.mxu0 0
        %1785 = vmatpush1.bf16.xpose.msra.mxu0 0
        %1786 = vmatprep.subr.bf16.mxu0 0
        %1787 = vmatpush1.bf16.xpose.msra.mxu0 0
        %1788 = vmatprep.subr.bf16.mxu0 0
        %1789 = vmatpush1.bf16.xpose.msra.mxu0 0
        %1790 = vmatprep.subr.bf16.mxu0 0
        %1791 = vmatpush1.bf16.xpose.msra.mxu0 0
        %1792 = vmatprep.subr.bf16.mxu0 0
        %1793 = vmatpush1.bf16.xpose.msra.mxu0 0
        %1794 = vmatprep.subr.bf16.mxu0 0
        %1795 = vmatpush1.bf16.xpose.msra.mxu0 0
        %1796 = vmatprep.subr.bf16.mxu0 0
        %1797 = vmatpush1.bf16.xpose.msra.mxu0 0
        %1798 = vmatprep.subr.bf16.mxu0 0
        %1799 = vmatpush1.bf16.xpose.msra.mxu0 0
        %1800 = vmatprep.subr.bf16.mxu0 0
        %1801 = vmatpush1.bf16.xpose.msra.mxu0 0
        %1802 = vmatprep.subr.bf16.mxu0 0
        %1803 = vmatpush1.bf16.xpose.msra.mxu0 0
        %1804 = vmatprep.mubr.bf16.mxu0 0
        %1805 = vmatmul.mubr.bf16.gmra.mrb[0].mxu0 %v1767
        %v1806 = vpop.f32.mrb[0].mxu0
        %v1807 = vadd.f32 0.0, %v1806
        %v1808 = vpop.f32.mrb[0].mxu0
        %v1809 = vpop.f32.mrb[0].mxu0
        %v1810 = vpop.f32.mrb[0].mxu0
        %1811 = vdwg.mxu0
        %1813 = vrot.lane.b32.xlu0 %v963, 96
        %v1814 = vpop.permute.xlu0 %1813
        %v1816 = vsel %vm981, %v963, 0
        %v1819 = vsel %vm981, %v1814, 0
        %1821 = vmatprep.subr.bf16.mxu0 0
        %1822 = vmatpush1.bf16.xpose.msra.mxu0 %v1819
        %1823 = vmatprep.subr.bf16.mxu0 0
        %1824 = vmatpush1.bf16.xpose.msra.mxu0 0
        %1825 = vmatprep.subr.bf16.mxu0 0
        %1826 = vmatpush1.bf16.xpose.msra.mxu0 0
        %1827 = vmatprep.subr.bf16.mxu0 0
        %1828 = vmatpush1.bf16.xpose.msra.mxu0 0
        %1829 = vmatprep.subr.bf16.mxu0 0
        %1830 = vmatpush1.bf16.xpose.msra.mxu0 0
        %1831 = vmatprep.subr.bf16.mxu0 0
        %1832 = vmatpush1.bf16.xpose.msra.mxu0 0
        %1833 = vmatprep.subr.bf16.mxu0 0
        %1834 = vmatpush1.bf16.xpose.msra.mxu0 0
        %1835 = vmatprep.subr.bf16.mxu0 0
        %1836 = vmatpush1.bf16.xpose.msra.mxu0 0
        %1837 = vmatprep.subr.bf16.mxu0 0
        %1838 = vmatpush1.bf16.xpose.msra.mxu0 0
        %1839 = vmatprep.subr.bf16.mxu0 0
        %1840 = vmatpush1.bf16.xpose.msra.mxu0 0
        %1841 = vmatprep.subr.bf16.mxu0 0
        %1842 = vmatpush1.bf16.xpose.msra.mxu0 0
        %1843 = vmatprep.subr.bf16.mxu0 0
        %1844 = vmatpush1.bf16.xpose.msra.mxu0 0
        %1845 = vmatprep.subr.bf16.mxu0 0
        %1846 = vmatpush1.bf16.xpose.msra.mxu0 0
        %1847 = vmatprep.subr.bf16.mxu0 0
        %1848 = vmatpush1.bf16.xpose.msra.mxu0 0
        %1849 = vmatprep.subr.bf16.mxu0 0
        %1850 = vmatpush1.bf16.xpose.msra.mxu0 0
        %1851 = vmatprep.subr.bf16.mxu0 0
        %1852 = vmatpush1.bf16.xpose.msra.mxu0 0
        %1853 = vmatprep.mubr.bf16.mxu0 0
        %1854 = vmatmul.mubr.bf16.gmra.mrb[0].mxu0 %v1816
        %v1855 = vpop.f32.mrb[0].mxu0
        %v1856 = vadd.f32 0.0, %v1855
        %v1857 = vpop.f32.mrb[0].mxu0
        %v1858 = vpop.f32.mrb[0].mxu0
        %v1859 = vpop.f32.mrb[0].mxu0
        %1860 = vdwg.mxu0
        %1862 = vrot.lane.b32.xlu0 %v964, 96
        %v1863 = vpop.permute.xlu0 %1862
        %v1865 = vsel %vm981, %v964, 0
        %v1868 = vsel %vm981, %v1863, 0
        %1870 = vmatprep.subr.bf16.mxu0 0
        %1871 = vmatpush1.bf16.xpose.msra.mxu0 %v1868
        %1872 = vmatprep.subr.bf16.mxu0 0
        %1873 = vmatpush1.bf16.xpose.msra.mxu0 0
        %1874 = vmatprep.subr.bf16.mxu0 0
        %1875 = vmatpush1.bf16.xpose.msra.mxu0 0
        %1876 = vmatprep.subr.bf16.mxu0 0
        %1877 = vmatpush1.bf16.xpose.msra.mxu0 0
        %1878 = vmatprep.subr.bf16.mxu0 0
        %1879 = vmatpush1.bf16.xpose.msra.mxu0 0
        %1880 = vmatprep.subr.bf16.mxu0 0
        %1881 = vmatpush1.bf16.xpose.msra.mxu0 0
        %1882 = vmatprep.subr.bf16.mxu0 0
        %1883 = vmatpush1.bf16.xpose.msra.mxu0 0
        %1884 = vmatprep.subr.bf16.mxu0 0
        %1885 = vmatpush1.bf16.xpose.msra.mxu0 0
        %1886 = vmatprep.subr.bf16.mxu0 0
        %1887 = vmatpush1.bf16.xpose.msra.mxu0 0
        %1888 = vmatprep.subr.bf16.mxu0 0
        %1889 = vmatpush1.bf16.xpose.msra.mxu0 0
        %1890 = vmatprep.subr.bf16.mxu0 0
        %1891 = vmatpush1.bf16.xpose.msra.mxu0 0
        %1892 = vmatprep.subr.bf16.mxu0 0
        %1893 = vmatpush1.bf16.xpose.msra.mxu0 0
        %1894 = vmatprep.subr.bf16.mxu0 0
        %1895 = vmatpush1.bf16.xpose.msra.mxu0 0
        %1896 = vmatprep.subr.bf16.mxu0 0
        %1897 = vmatpush1.bf16.xpose.msra.mxu0 0
        %1898 = vmatprep.subr.bf16.mxu0 0
        %1899 = vmatpush1.bf16.xpose.msra.mxu0 0
        %1900 = vmatprep.subr.bf16.mxu0 0
        %1901 = vmatpush1.bf16.xpose.msra.mxu0 0
        %1902 = vmatprep.mubr.bf16.mxu0 0
        %1903 = vmatmul.mubr.bf16.gmra.mrb[0].mxu0 %v1865
        %v1904 = vpop.f32.mrb[0].mxu0
        %v1905 = vadd.f32 0.0, %v1904
        %v1906 = vpop.f32.mrb[0].mxu0
        %v1907 = vpop.f32.mrb[0].mxu0
        %v1908 = vpop.f32.mrb[0].mxu0
        %1909 = vdwg.mxu0
        %1911 = vrot.lane.b32.xlu0 %v965, 96
        %v1912 = vpop.permute.xlu0 %1911
        %v1914 = vsel %vm981, %v965, 0
        %v1917 = vsel %vm981, %v1912, 0
        %1919 = vmatprep.subr.bf16.mxu0 0
        %1920 = vmatpush1.bf16.xpose.msra.mxu0 %v1917
        %1921 = vmatprep.subr.bf16.mxu0 0
        %1922 = vmatpush1.bf16.xpose.msra.mxu0 0
        %1923 = vmatprep.subr.bf16.mxu0 0
        %1924 = vmatpush1.bf16.xpose.msra.mxu0 0
        %1925 = vmatprep.subr.bf16.mxu0 0
        %1926 = vmatpush1.bf16.xpose.msra.mxu0 0
        %1927 = vmatprep.subr.bf16.mxu0 0
        %1928 = vmatpush1.bf16.xpose.msra.mxu0 0
        %1929 = vmatprep.subr.bf16.mxu0 0
        %1930 = vmatpush1.bf16.xpose.msra.mxu0 0
        %1931 = vmatprep.subr.bf16.mxu0 0
        %1932 = vmatpush1.bf16.xpose.msra.mxu0 0
        %1933 = vmatprep.subr.bf16.mxu0 0
        %1934 = vmatpush1.bf16.xpose.msra.mxu0 0
        %1935 = vmatprep.subr.bf16.mxu0 0
        %1936 = vmatpush1.bf16.xpose.msra.mxu0 0
        %1937 = vmatprep.subr.bf16.mxu0 0
        %1938 = vmatpush1.bf16.xpose.msra.mxu0 0
        %1939 = vmatprep.subr.bf16.mxu0 0
        %1940 = vmatpush1.bf16.xpose.msra.mxu0 0
        %1941 = vmatprep.subr.bf16.mxu0 0
        %1942 = vmatpush1.bf16.xpose.msra.mxu0 0
        %1943 = vmatprep.subr.bf16.mxu0 0
        %1944 = vmatpush1.bf16.xpose.msra.mxu0 0
        %1945 = vmatprep.subr.bf16.mxu0 0
        %1946 = vmatpush1.bf16.xpose.msra.mxu0 0
        %1947 = vmatprep.subr.bf16.mxu0 0
        %1948 = vmatpush1.bf16.xpose.msra.mxu0 0
        %1949 = vmatprep.subr.bf16.mxu0 0
        %1950 = vmatpush1.bf16.xpose.msra.mxu0 0
        %1951 = vmatprep.mubr.bf16.mxu0 0
        %1952 = vmatmul.mubr.bf16.gmra.mrb[0].mxu0 %v1914
        %v1953 = vpop.f32.mrb[0].mxu0
        %v1954 = vadd.f32 0.0, %v1953
        %v1955 = vpop.f32.mrb[0].mxu0
        %v1956 = vpop.f32.mrb[0].mxu0
        %v1957 = vpop.f32.mrb[0].mxu0
        %1958 = vdwg.mxu0
        %1960 = vrot.lane.b32.xlu0 %v966, 96
        %v1961 = vpop.permute.xlu0 %1960
        %v1963 = vsel %vm981, %v966, 0
        %v1966 = vsel %vm981, %v1961, 0
        %1968 = vmatprep.subr.bf16.mxu0 0
        %1969 = vmatpush1.bf16.xpose.msra.mxu0 %v1966
        %1970 = vmatprep.subr.bf16.mxu0 0
        %1971 = vmatpush1.bf16.xpose.msra.mxu0 0
        %1972 = vmatprep.subr.bf16.mxu0 0
        %1973 = vmatpush1.bf16.xpose.msra.mxu0 0
        %1974 = vmatprep.subr.bf16.mxu0 0
        %1975 = vmatpush1.bf16.xpose.msra.mxu0 0
        %1976 = vmatprep.subr.bf16.mxu0 0
        %1977 = vmatpush1.bf16.xpose.msra.mxu0 0
        %1978 = vmatprep.subr.bf16.mxu0 0
        %1979 = vmatpush1.bf16.xpose.msra.mxu0 0
        %1980 = vmatprep.subr.bf16.mxu0 0
        %1981 = vmatpush1.bf16.xpose.msra.mxu0 0
        %1982 = vmatprep.subr.bf16.mxu0 0
        %1983 = vmatpush1.bf16.xpose.msra.mxu0 0
        %1984 = vmatprep.subr.bf16.mxu0 0
        %1985 = vmatpush1.bf16.xpose.msra.mxu0 0
        %1986 = vmatprep.subr.bf16.mxu0 0
        %1987 = vmatpush1.bf16.xpose.msra.mxu0 0
        %1988 = vmatprep.subr.bf16.mxu0 0
        %1989 = vmatpush1.bf16.xpose.msra.mxu0 0
        %1990 = vmatprep.subr.bf16.mxu0 0
        %1991 = vmatpush1.bf16.xpose.msra.mxu0 0
        %1992 = vmatprep.subr.bf16.mxu0 0
        %1993 = vmatpush1.bf16.xpose.msra.mxu0 0
        %1994 = vmatprep.subr.bf16.mxu0 0
        %1995 = vmatpush1.bf16.xpose.msra.mxu0 0
        %1996 = vmatprep.subr.bf16.mxu0 0
        %1997 = vmatpush1.bf16.xpose.msra.mxu0 0
        %1998 = vmatprep.subr.bf16.mxu0 0
        %1999 = vmatpush1.bf16.xpose.msra.mxu0 0
        %2000 = vmatprep.mubr.bf16.mxu0 0
        %2001 = vmatmul.mubr.bf16.gmra.mrb[0].mxu0 %v1963
        %v2002 = vpop.f32.mrb[0].mxu0
        %v2003 = vadd.f32 0.0, %v2002
        %v2004 = vpop.f32.mrb[0].mxu0
        %v2005 = vpop.f32.mrb[0].mxu0
        %v2006 = vpop.f32.mrb[0].mxu0
        %2007 = vdwg.mxu0
        %2009 = vrot.lane.b32.xlu0 %v967, 96
        %v2010 = vpop.permute.xlu0 %2009
        %v2012 = vsel %vm981, %v967, 0
        %v2015 = vsel %vm981, %v2010, 0
        %2017 = vmatprep.subr.bf16.mxu0 0
        %2018 = vmatpush1.bf16.xpose.msra.mxu0 %v2015
        %2019 = vmatprep.subr.bf16.mxu0 0
        %2020 = vmatpush1.bf16.xpose.msra.mxu0 0
        %2021 = vmatprep.subr.bf16.mxu0 0
        %2022 = vmatpush1.bf16.xpose.msra.mxu0 0
        %2023 = vmatprep.subr.bf16.mxu0 0
        %2024 = vmatpush1.bf16.xpose.msra.mxu0 0
        %2025 = vmatprep.subr.bf16.mxu0 0
        %2026 = vmatpush1.bf16.xpose.msra.mxu0 0
        %2027 = vmatprep.subr.bf16.mxu0 0
        %2028 = vmatpush1.bf16.xpose.msra.mxu0 0
        %2029 = vmatprep.subr.bf16.mxu0 0
        %2030 = vmatpush1.bf16.xpose.msra.mxu0 0
        %2031 = vmatprep.subr.bf16.mxu0 0
        %2032 = vmatpush1.bf16.xpose.msra.mxu0 0
        %2033 = vmatprep.subr.bf16.mxu0 0
        %2034 = vmatpush1.bf16.xpose.msra.mxu0 0
        %2035 = vmatprep.subr.bf16.mxu0 0
        %2036 = vmatpush1.bf16.xpose.msra.mxu0 0
        %2037 = vmatprep.subr.bf16.mxu0 0
        %2038 = vmatpush1.bf16.xpose.msra.mxu0 0
        %2039 = vmatprep.subr.bf16.mxu0 0
        %2040 = vmatpush1.bf16.xpose.msra.mxu0 0
        %2041 = vmatprep.subr.bf16.mxu0 0
        %2042 = vmatpush1.bf16.xpose.msra.mxu0 0
        %2043 = vmatprep.subr.bf16.mxu0 0
        %2044 = vmatpush1.bf16.xpose.msra.mxu0 0
        %2045 = vmatprep.subr.bf16.mxu0 0
        %2046 = vmatpush1.bf16.xpose.msra.mxu0 0
        %2047 = vmatprep.subr.bf16.mxu0 0
        %2048 = vmatpush1.bf16.xpose.msra.mxu0 0
        %2049 = vmatprep.mubr.bf16.mxu0 0
        %2050 = vmatmul.mubr.bf16.gmra.mrb[0].mxu0 %v2012
        %v2051 = vpop.f32.mrb[0].mxu0
        %v2052 = vadd.f32 0.0, %v2051
        %v2053 = vpop.f32.mrb[0].mxu0
        %v2054 = vpop.f32.mrb[0].mxu0
        %v2055 = vpop.f32.mrb[0].mxu0
        %2056 = vdwg.mxu0
        %2058 = vrot.lane.b32.xlu0 %v968, 96
        %v2059 = vpop.permute.xlu0 %2058
        %v2061 = vsel %vm981, %v968, 0
        %v2064 = vsel %vm981, %v2059, 0
        %2066 = vmatprep.subr.bf16.mxu0 0
        %2067 = vmatpush1.bf16.xpose.msra.mxu0 %v2064
        %2068 = vmatprep.subr.bf16.mxu0 0
        %2069 = vmatpush1.bf16.xpose.msra.mxu0 0
        %2070 = vmatprep.subr.bf16.mxu0 0
        %2071 = vmatpush1.bf16.xpose.msra.mxu0 0
        %2072 = vmatprep.subr.bf16.mxu0 0
        %2073 = vmatpush1.bf16.xpose.msra.mxu0 0
        %2074 = vmatprep.subr.bf16.mxu0 0
        %2075 = vmatpush1.bf16.xpose.msra.mxu0 0
        %2076 = vmatprep.subr.bf16.mxu0 0
        %2077 = vmatpush1.bf16.xpose.msra.mxu0 0
        %2078 = vmatprep.subr.bf16.mxu0 0
        %2079 = vmatpush1.bf16.xpose.msra.mxu0 0
        %2080 = vmatprep.subr.bf16.mxu0 0
        %2081 = vmatpush1.bf16.xpose.msra.mxu0 0
        %2082 = vmatprep.subr.bf16.mxu0 0
        %2083 = vmatpush1.bf16.xpose.msra.mxu0 0
        %2084 = vmatprep.subr.bf16.mxu0 0
        %2085 = vmatpush1.bf16.xpose.msra.mxu0 0
        %2086 = vmatprep.subr.bf16.mxu0 0
        %2087 = vmatpush1.bf16.xpose.msra.mxu0 0
        %2088 = vmatprep.subr.bf16.mxu0 0
        %2089 = vmatpush1.bf16.xpose.msra.mxu0 0
        %2090 = vmatprep.subr.bf16.mxu0 0
        %2091 = vmatpush1.bf16.xpose.msra.mxu0 0
        %2092 = vmatprep.subr.bf16.mxu0 0
        %2093 = vmatpush1.bf16.xpose.msra.mxu0 0
        %2094 = vmatprep.subr.bf16.mxu0 0
        %2095 = vmatpush1.bf16.xpose.msra.mxu0 0
        %2096 = vmatprep.subr.bf16.mxu0 0
        %2097 = vmatpush1.bf16.xpose.msra.mxu0 0
        %2098 = vmatprep.mubr.bf16.mxu0 0
        %2099 = vmatmul.mubr.bf16.gmra.mrb[0].mxu0 %v2061
        %v2100 = vpop.f32.mrb[0].mxu0
        %v2101 = vadd.f32 0.0, %v2100
        %v2102 = vpop.f32.mrb[0].mxu0
        %v2103 = vpop.f32.mrb[0].mxu0
        %v2104 = vpop.f32.mrb[0].mxu0
        %2105 = vdwg.mxu0
        %2107 = vrot.lane.b32.xlu0 %v969, 96
        %v2108 = vpop.permute.xlu0 %2107
        %v2110 = vsel %vm981, %v969, 0
        %v2113 = vsel %vm981, %v2108, 0
        %2115 = vmatprep.subr.bf16.mxu0 0
        %2116 = vmatpush1.bf16.xpose.msra.mxu0 %v2113
        %2117 = vmatprep.subr.bf16.mxu0 0
        %2118 = vmatpush1.bf16.xpose.msra.mxu0 0
        %2119 = vmatprep.subr.bf16.mxu0 0
        %2120 = vmatpush1.bf16.xpose.msra.mxu0 0
        %2121 = vmatprep.subr.bf16.mxu0 0
        %2122 = vmatpush1.bf16.xpose.msra.mxu0 0
        %2123 = vmatprep.subr.bf16.mxu0 0
        %2124 = vmatpush1.bf16.xpose.msra.mxu0 0
        %2125 = vmatprep.subr.bf16.mxu0 0
        %2126 = vmatpush1.bf16.xpose.msra.mxu0 0
        %2127 = vmatprep.subr.bf16.mxu0 0
        %2128 = vmatpush1.bf16.xpose.msra.mxu0 0
        %2129 = vmatprep.subr.bf16.mxu0 0
        %2130 = vmatpush1.bf16.xpose.msra.mxu0 0
        %2131 = vmatprep.subr.bf16.mxu0 0
        %2132 = vmatpush1.bf16.xpose.msra.mxu0 0
        %2133 = vmatprep.subr.bf16.mxu0 0
        %2134 = vmatpush1.bf16.xpose.msra.mxu0 0
        %2135 = vmatprep.subr.bf16.mxu0 0
        %2136 = vmatpush1.bf16.xpose.msra.mxu0 0
        %2137 = vmatprep.subr.bf16.mxu0 0
        %2138 = vmatpush1.bf16.xpose.msra.mxu0 0
        %2139 = vmatprep.subr.bf16.mxu0 0
        %2140 = vmatpush1.bf16.xpose.msra.mxu0 0
        %2141 = vmatprep.subr.bf16.mxu0 0
        %2142 = vmatpush1.bf16.xpose.msra.mxu0 0
        %2143 = vmatprep.subr.bf16.mxu0 0
        %2144 = vmatpush1.bf16.xpose.msra.mxu0 0
        %2145 = vmatprep.subr.bf16.mxu0 0
        %2146 = vmatpush1.bf16.xpose.msra.mxu0 0
        %2147 = vmatprep.mubr.bf16.mxu0 0
        %2148 = vmatmul.mubr.bf16.gmra.mrb[0].mxu0 %v2110
        %v2149 = vpop.f32.mrb[0].mxu0
        %v2150 = vadd.f32 0.0, %v2149
        %v2151 = vpop.f32.mrb[0].mxu0
        %v2152 = vpop.f32.mrb[0].mxu0
        %v2153 = vpop.f32.mrb[0].mxu0
        %2154 = vdwg.mxu0
        %2156 = vrot.lane.b32.xlu0 %v970, 96
        %v2157 = vpop.permute.xlu0 %2156
        %v2159 = vsel %vm981, %v970, 0
        %v2162 = vsel %vm981, %v2157, 0
        %2164 = vmatprep.subr.bf16.mxu0 0
        %2165 = vmatpush1.bf16.xpose.msra.mxu0 %v2162
        %2166 = vmatprep.subr.bf16.mxu0 0
        %2167 = vmatpush1.bf16.xpose.msra.mxu0 0
        %2168 = vmatprep.subr.bf16.mxu0 0
        %2169 = vmatpush1.bf16.xpose.msra.mxu0 0
        %2170 = vmatprep.subr.bf16.mxu0 0
        %2171 = vmatpush1.bf16.xpose.msra.mxu0 0
        %2172 = vmatprep.subr.bf16.mxu0 0
        %2173 = vmatpush1.bf16.xpose.msra.mxu0 0
        %2174 = vmatprep.subr.bf16.mxu0 0
        %2175 = vmatpush1.bf16.xpose.msra.mxu0 0
        %2176 = vmatprep.subr.bf16.mxu0 0
        %2177 = vmatpush1.bf16.xpose.msra.mxu0 0
        %2178 = vmatprep.subr.bf16.mxu0 0
        %2179 = vmatpush1.bf16.xpose.msra.mxu0 0
        %2180 = vmatprep.subr.bf16.mxu0 0
        %2181 = vmatpush1.bf16.xpose.msra.mxu0 0
        %2182 = vmatprep.subr.bf16.mxu0 0
        %2183 = vmatpush1.bf16.xpose.msra.mxu0 0
        %2184 = vmatprep.subr.bf16.mxu0 0
        %2185 = vmatpush1.bf16.xpose.msra.mxu0 0
        %2186 = vmatprep.subr.bf16.mxu0 0
        %2187 = vmatpush1.bf16.xpose.msra.mxu0 0
        %2188 = vmatprep.subr.bf16.mxu0 0
        %2189 = vmatpush1.bf16.xpose.msra.mxu0 0
        %2190 = vmatprep.subr.bf16.mxu0 0
        %2191 = vmatpush1.bf16.xpose.msra.mxu0 0
        %2192 = vmatprep.subr.bf16.mxu0 0
        %2193 = vmatpush1.bf16.xpose.msra.mxu0 0
        %2194 = vmatprep.subr.bf16.mxu0 0
        %2195 = vmatpush1.bf16.xpose.msra.mxu0 0
        %2196 = vmatprep.mubr.bf16.mxu0 0
        %2197 = vmatmul.mubr.bf16.gmra.mrb[0].mxu0 %v2159
        %v2198 = vpop.f32.mrb[0].mxu0
        %v2199 = vadd.f32 0.0, %v2198
        %v2200 = vpop.f32.mrb[0].mxu0
        %v2201 = vpop.f32.mrb[0].mxu0
        %v2202 = vpop.f32.mrb[0].mxu0
        %2203 = vdwg.mxu0
        %2205 = vrot.lane.b32.xlu0 %v971, 96
        %v2206 = vpop.permute.xlu0 %2205
        %v2208 = vsel %vm981, %v971, 0
        %v2211 = vsel %vm981, %v2206, 0
        %2213 = vmatprep.subr.bf16.mxu0 0
        %2214 = vmatpush1.bf16.xpose.msra.mxu0 %v2211
        %2215 = vmatprep.subr.bf16.mxu0 0
        %2216 = vmatpush1.bf16.xpose.msra.mxu0 0
        %2217 = vmatprep.subr.bf16.mxu0 0
        %2218 = vmatpush1.bf16.xpose.msra.mxu0 0
        %2219 = vmatprep.subr.bf16.mxu0 0
        %2220 = vmatpush1.bf16.xpose.msra.mxu0 0
        %2221 = vmatprep.subr.bf16.mxu0 0
        %2222 = vmatpush1.bf16.xpose.msra.mxu0 0
        %2223 = vmatprep.subr.bf16.mxu0 0
        %2224 = vmatpush1.bf16.xpose.msra.mxu0 0
        %2225 = vmatprep.subr.bf16.mxu0 0
        %2226 = vmatpush1.bf16.xpose.msra.mxu0 0
        %2227 = vmatprep.subr.bf16.mxu0 0
        %2228 = vmatpush1.bf16.xpose.msra.mxu0 0
        %2229 = vmatprep.subr.bf16.mxu0 0
        %2230 = vmatpush1.bf16.xpose.msra.mxu0 0
        %2231 = vmatprep.subr.bf16.mxu0 0
        %2232 = vmatpush1.bf16.xpose.msra.mxu0 0
        %2233 = vmatprep.subr.bf16.mxu0 0
        %2234 = vmatpush1.bf16.xpose.msra.mxu0 0
        %2235 = vmatprep.subr.bf16.mxu0 0
        %2236 = vmatpush1.bf16.xpose.msra.mxu0 0
        %2237 = vmatprep.subr.bf16.mxu0 0
        %2238 = vmatpush1.bf16.xpose.msra.mxu0 0
        %2239 = vmatprep.subr.bf16.mxu0 0
        %2240 = vmatpush1.bf16.xpose.msra.mxu0 0
        %2241 = vmatprep.subr.bf16.mxu0 0
        %2242 = vmatpush1.bf16.xpose.msra.mxu0 0
        %2243 = vmatprep.subr.bf16.mxu0 0
        %2244 = vmatpush1.bf16.xpose.msra.mxu0 0
        %2245 = vmatprep.mubr.bf16.mxu0 0
        %2246 = vmatmul.mubr.bf16.gmra.mrb[0].mxu0 %v2208
        %v2247 = vpop.f32.mrb[0].mxu0
        %v2248 = vadd.f32 0.0, %v2247
        %v2249 = vpop.f32.mrb[0].mxu0
        %v2250 = vpop.f32.mrb[0].mxu0
        %v2251 = vpop.f32.mrb[0].mxu0
        %2252 = vdwg.mxu0
        %2254 = vrot.lane.b32.xlu0 %v972, 96
        %v2255 = vpop.permute.xlu0 %2254
        %v2257 = vsel %vm981, %v972, 0
        %v2260 = vsel %vm981, %v2255, 0
        %2262 = vmatprep.subr.bf16.mxu0 0
        %2263 = vmatpush1.bf16.xpose.msra.mxu0 %v2260
        %2264 = vmatprep.subr.bf16.mxu0 0
        %2265 = vmatpush1.bf16.xpose.msra.mxu0 0
        %2266 = vmatprep.subr.bf16.mxu0 0
        %2267 = vmatpush1.bf16.xpose.msra.mxu0 0
        %2268 = vmatprep.subr.bf16.mxu0 0
        %2269 = vmatpush1.bf16.xpose.msra.mxu0 0
        %2270 = vmatprep.subr.bf16.mxu0 0
        %2271 = vmatpush1.bf16.xpose.msra.mxu0 0
        %2272 = vmatprep.subr.bf16.mxu0 0
        %2273 = vmatpush1.bf16.xpose.msra.mxu0 0
        %2274 = vmatprep.subr.bf16.mxu0 0
        %2275 = vmatpush1.bf16.xpose.msra.mxu0 0
        %2276 = vmatprep.subr.bf16.mxu0 0
        %2277 = vmatpush1.bf16.xpose.msra.mxu0 0
        %2278 = vmatprep.subr.bf16.mxu0 0
        %2279 = vmatpush1.bf16.xpose.msra.mxu0 0
        %2280 = vmatprep.subr.bf16.mxu0 0
        %2281 = vmatpush1.bf16.xpose.msra.mxu0 0
        %2282 = vmatprep.subr.bf16.mxu0 0
        %2283 = vmatpush1.bf16.xpose.msra.mxu0 0
        %2284 = vmatprep.subr.bf16.mxu0 0
        %2285 = vmatpush1.bf16.xpose.msra.mxu0 0
        %2286 = vmatprep.subr.bf16.mxu0 0
        %2287 = vmatpush1.bf16.xpose.msra.mxu0 0
        %2288 = vmatprep.subr.bf16.mxu0 0
        %2289 = vmatpush1.bf16.xpose.msra.mxu0 0
        %2290 = vmatprep.subr.bf16.mxu0 0
        %2291 = vmatpush1.bf16.xpose.msra.mxu0 0
        %2292 = vmatprep.subr.bf16.mxu0 0
        %2293 = vmatpush1.bf16.xpose.msra.mxu0 0
        %2294 = vmatprep.mubr.bf16.mxu0 0
        %2295 = vmatmul.mubr.bf16.gmra.mrb[0].mxu0 %v2257
        %v2296 = vpop.f32.mrb[0].mxu0
        %v2297 = vadd.f32 0.0, %v2296
        %v2298 = vpop.f32.mrb[0].mxu0
        %v2299 = vpop.f32.mrb[0].mxu0
        %v2300 = vpop.f32.mrb[0].mxu0
        %2301 = vdwg.mxu0
        %2303 = vrot.lane.b32.xlu0 %v973, 96
        %v2304 = vpop.permute.xlu0 %2303
        %v2306 = vsel %vm981, %v973, 0
        %v2309 = vsel %vm981, %v2304, 0
        %2311 = vmatprep.subr.bf16.mxu0 0
        %2312 = vmatpush1.bf16.xpose.msra.mxu0 %v2309
        %2313 = vmatprep.subr.bf16.mxu0 0
        %2314 = vmatpush1.bf16.xpose.msra.mxu0 0
        %2315 = vmatprep.subr.bf16.mxu0 0
        %2316 = vmatpush1.bf16.xpose.msra.mxu0 0
        %2317 = vmatprep.subr.bf16.mxu0 0
        %2318 = vmatpush1.bf16.xpose.msra.mxu0 0
        %2319 = vmatprep.subr.bf16.mxu0 0
        %2320 = vmatpush1.bf16.xpose.msra.mxu0 0
        %2321 = vmatprep.subr.bf16.mxu0 0
        %2322 = vmatpush1.bf16.xpose.msra.mxu0 0
        %2323 = vmatprep.subr.bf16.mxu0 0
        %2324 = vmatpush1.bf16.xpose.msra.mxu0 0
        %2325 = vmatprep.subr.bf16.mxu0 0
        %2326 = vmatpush1.bf16.xpose.msra.mxu0 0
        %2327 = vmatprep.subr.bf16.mxu0 0
        %2328 = vmatpush1.bf16.xpose.msra.mxu0 0
        %2329 = vmatprep.subr.bf16.mxu0 0
        %2330 = vmatpush1.bf16.xpose.msra.mxu0 0
        %2331 = vmatprep.subr.bf16.mxu0 0
        %2332 = vmatpush1.bf16.xpose.msra.mxu0 0
        %2333 = vmatprep.subr.bf16.mxu0 0
        %2334 = vmatpush1.bf16.xpose.msra.mxu0 0
        %2335 = vmatprep.subr.bf16.mxu0 0
        %2336 = vmatpush1.bf16.xpose.msra.mxu0 0
        %2337 = vmatprep.subr.bf16.mxu0 0
        %2338 = vmatpush1.bf16.xpose.msra.mxu0 0
        %2339 = vmatprep.subr.bf16.mxu0 0
        %2340 = vmatpush1.bf16.xpose.msra.mxu0 0
        %2341 = vmatprep.subr.bf16.mxu0 0
        %2342 = vmatpush1.bf16.xpose.msra.mxu0 0
        %2343 = vmatprep.mubr.bf16.mxu0 0
        %2344 = vmatmul.mubr.bf16.gmra.mrb[0].mxu0 %v2306
        %v2345 = vpop.f32.mrb[0].mxu0
        %v2346 = vadd.f32 0.0, %v2345
        %v2347 = vpop.f32.mrb[0].mxu0
        %v2348 = vpop.f32.mrb[0].mxu0
        %v2349 = vpop.f32.mrb[0].mxu0
        %2350 = vdwg.mxu0
        %2352 = vrot.lane.b32.xlu0 %v974, 96
        %v2353 = vpop.permute.xlu0 %2352
        %v2355 = vsel %vm981, %v974, 0
        %v2358 = vsel %vm981, %v2353, 0
        %2360 = vmatprep.subr.bf16.mxu0 0
        %2361 = vmatpush1.bf16.xpose.msra.mxu0 %v2358
        %2362 = vmatprep.subr.bf16.mxu0 0
        %2363 = vmatpush1.bf16.xpose.msra.mxu0 0
        %2364 = vmatprep.subr.bf16.mxu0 0
        %2365 = vmatpush1.bf16.xpose.msra.mxu0 0
        %2366 = vmatprep.subr.bf16.mxu0 0
        %2367 = vmatpush1.bf16.xpose.msra.mxu0 0
        %2368 = vmatprep.subr.bf16.mxu0 0
        %2369 = vmatpush1.bf16.xpose.msra.mxu0 0
        %2370 = vmatprep.subr.bf16.mxu0 0
        %2371 = vmatpush1.bf16.xpose.msra.mxu0 0
        %2372 = vmatprep.subr.bf16.mxu0 0
        %2373 = vmatpush1.bf16.xpose.msra.mxu0 0
        %2374 = vmatprep.subr.bf16.mxu0 0
        %2375 = vmatpush1.bf16.xpose.msra.mxu0 0
        %2376 = vmatprep.subr.bf16.mxu0 0
        %2377 = vmatpush1.bf16.xpose.msra.mxu0 0
        %2378 = vmatprep.subr.bf16.mxu0 0
        %2379 = vmatpush1.bf16.xpose.msra.mxu0 0
        %2380 = vmatprep.subr.bf16.mxu0 0
        %2381 = vmatpush1.bf16.xpose.msra.mxu0 0
        %2382 = vmatprep.subr.bf16.mxu0 0
        %2383 = vmatpush1.bf16.xpose.msra.mxu0 0
        %2384 = vmatprep.subr.bf16.mxu0 0
        %2385 = vmatpush1.bf16.xpose.msra.mxu0 0
        %2386 = vmatprep.subr.bf16.mxu0 0
        %2387 = vmatpush1.bf16.xpose.msra.mxu0 0
        %2388 = vmatprep.subr.bf16.mxu0 0
        %2389 = vmatpush1.bf16.xpose.msra.mxu0 0
        %2390 = vmatprep.subr.bf16.mxu0 0
        %2391 = vmatpush1.bf16.xpose.msra.mxu0 0
        %2392 = vmatprep.mubr.bf16.mxu0 0
        %2393 = vmatmul.mubr.bf16.gmra.mrb[0].mxu0 %v2355
        %v2394 = vpop.f32.mrb[0].mxu0
        %v2395 = vadd.f32 0.0, %v2394
        %v2396 = vpop.f32.mrb[0].mxu0
        %v2397 = vpop.f32.mrb[0].mxu0
        %v2398 = vpop.f32.mrb[0].mxu0
        %2399 = vdwg.mxu0
        %2401 = vrot.lane.b32.xlu0 %v975, 96
        %v2402 = vpop.permute.xlu0 %2401
        %v2404 = vsel %vm981, %v975, 0
        %v2407 = vsel %vm981, %v2402, 0
        %2409 = vmatprep.subr.bf16.mxu0 0
        %2410 = vmatpush1.bf16.xpose.msra.mxu0 %v2407
        %2411 = vmatprep.subr.bf16.mxu0 0
        %2412 = vmatpush1.bf16.xpose.msra.mxu0 0
        %2413 = vmatprep.subr.bf16.mxu0 0
        %2414 = vmatpush1.bf16.xpose.msra.mxu0 0
        %2415 = vmatprep.subr.bf16.mxu0 0
        %2416 = vmatpush1.bf16.xpose.msra.mxu0 0
        %2417 = vmatprep.subr.bf16.mxu0 0
        %2418 = vmatpush1.bf16.xpose.msra.mxu0 0
        %2419 = vmatprep.subr.bf16.mxu0 0
        %2420 = vmatpush1.bf16.xpose.msra.mxu0 0
        %2421 = vmatprep.subr.bf16.mxu0 0
        %2422 = vmatpush1.bf16.xpose.msra.mxu0 0
        %2423 = vmatprep.subr.bf16.mxu0 0
        %2424 = vmatpush1.bf16.xpose.msra.mxu0 0
        %2425 = vmatprep.subr.bf16.mxu0 0
        %2426 = vmatpush1.bf16.xpose.msra.mxu0 0
        %2427 = vmatprep.subr.bf16.mxu0 0
        %2428 = vmatpush1.bf16.xpose.msra.mxu0 0
        %2429 = vmatprep.subr.bf16.mxu0 0
        %2430 = vmatpush1.bf16.xpose.msra.mxu0 0
        %2431 = vmatprep.subr.bf16.mxu0 0
        %2432 = vmatpush1.bf16.xpose.msra.mxu0 0
        %2433 = vmatprep.subr.bf16.mxu0 0
        %2434 = vmatpush1.bf16.xpose.msra.mxu0 0
        %2435 = vmatprep.subr.bf16.mxu0 0
        %2436 = vmatpush1.bf16.xpose.msra.mxu0 0
        %2437 = vmatprep.subr.bf16.mxu0 0
        %2438 = vmatpush1.bf16.xpose.msra.mxu0 0
        %2439 = vmatprep.subr.bf16.mxu0 0
        %2440 = vmatpush1.bf16.xpose.msra.mxu0 0
        %2441 = vmatprep.mubr.bf16.mxu0 0
        %2442 = vmatmul.mubr.bf16.gmra.mrb[0].mxu0 %v2404
        %v2443 = vpop.f32.mrb[0].mxu0
        %v2444 = vadd.f32 0.0, %v2443
        %v2445 = vpop.f32.mrb[0].mxu0
        %v2446 = vpop.f32.mrb[0].mxu0
        %v2447 = vpop.f32.mrb[0].mxu0
        %2448 = vdwg.mxu0
        %2450 = vrot.lane.b32.xlu0 %v976, 96
        %v2451 = vpop.permute.xlu0 %2450
        %v2453 = vsel %vm981, %v976, 0
        %v2456 = vsel %vm981, %v2451, 0
        %2458 = vmatprep.subr.bf16.mxu0 0
        %2459 = vmatpush1.bf16.xpose.msra.mxu0 %v2456
        %2460 = vmatprep.subr.bf16.mxu0 0
        %2461 = vmatpush1.bf16.xpose.msra.mxu0 0
        %2462 = vmatprep.subr.bf16.mxu0 0
        %2463 = vmatpush1.bf16.xpose.msra.mxu0 0
        %2464 = vmatprep.subr.bf16.mxu0 0
        %2465 = vmatpush1.bf16.xpose.msra.mxu0 0
        %2466 = vmatprep.subr.bf16.mxu0 0
        %2467 = vmatpush1.bf16.xpose.msra.mxu0 0
        %2468 = vmatprep.subr.bf16.mxu0 0
        %2469 = vmatpush1.bf16.xpose.msra.mxu0 0
        %2470 = vmatprep.subr.bf16.mxu0 0
        %2471 = vmatpush1.bf16.xpose.msra.mxu0 0
        %2472 = vmatprep.subr.bf16.mxu0 0
        %2473 = vmatpush1.bf16.xpose.msra.mxu0 0
        %2474 = vmatprep.subr.bf16.mxu0 0
        %2475 = vmatpush1.bf16.xpose.msra.mxu0 0
        %2476 = vmatprep.subr.bf16.mxu0 0
        %2477 = vmatpush1.bf16.xpose.msra.mxu0 0
        %2478 = vmatprep.subr.bf16.mxu0 0
        %2479 = vmatpush1.bf16.xpose.msra.mxu0 0
        %2480 = vmatprep.subr.bf16.mxu0 0
        %2481 = vmatpush1.bf16.xpose.msra.mxu0 0
        %2482 = vmatprep.subr.bf16.mxu0 0
        %2483 = vmatpush1.bf16.xpose.msra.mxu0 0
        %2484 = vmatprep.subr.bf16.mxu0 0
        %2485 = vmatpush1.bf16.xpose.msra.mxu0 0
        %2486 = vmatprep.subr.bf16.mxu0 0
        %2487 = vmatpush1.bf16.xpose.msra.mxu0 0
        %2488 = vmatprep.subr.bf16.mxu0 0
        %2489 = vmatpush1.bf16.xpose.msra.mxu0 0
        %2490 = vmatprep.mubr.bf16.mxu0 0
        %2491 = vmatmul.mubr.bf16.gmra.mrb[0].mxu0 %v2453
        %v2492 = vpop.f32.mrb[0].mxu0
        %v2493 = vadd.f32 0.0, %v2492
        %v2494 = vpop.f32.mrb[0].mxu0
        %v2495 = vpop.f32.mrb[0].mxu0
        %v2496 = vpop.f32.mrb[0].mxu0
        %2497 = vdwg.mxu0
        %2499 = vrot.lane.b32.xlu0 %v977, 96
        %v2500 = vpop.permute.xlu0 %2499
        %v2502 = vsel %vm981, %v977, 0
        %v2505 = vsel %vm981, %v2500, 0
        %2507 = vmatprep.subr.bf16.mxu0 0
        %2508 = vmatpush1.bf16.xpose.msra.mxu0 %v2505
        %2509 = vmatprep.subr.bf16.mxu0 0
        %2510 = vmatpush1.bf16.xpose.msra.mxu0 0
        %2511 = vmatprep.subr.bf16.mxu0 0
        %2512 = vmatpush1.bf16.xpose.msra.mxu0 0
        %2513 = vmatprep.subr.bf16.mxu0 0
        %2514 = vmatpush1.bf16.xpose.msra.mxu0 0
        %2515 = vmatprep.subr.bf16.mxu0 0
        %2516 = vmatpush1.bf16.xpose.msra.mxu0 0
        %2517 = vmatprep.subr.bf16.mxu0 0
        %2518 = vmatpush1.bf16.xpose.msra.mxu0 0
        %2519 = vmatprep.subr.bf16.mxu0 0
        %2520 = vmatpush1.bf16.xpose.msra.mxu0 0
        %2521 = vmatprep.subr.bf16.mxu0 0
        %2522 = vmatpush1.bf16.xpose.msra.mxu0 0
        %2523 = vmatprep.subr.bf16.mxu0 0
        %2524 = vmatpush1.bf16.xpose.msra.mxu0 0
        %2525 = vmatprep.subr.bf16.mxu0 0
        %2526 = vmatpush1.bf16.xpose.msra.mxu0 0
        %2527 = vmatprep.subr.bf16.mxu0 0
        %2528 = vmatpush1.bf16.xpose.msra.mxu0 0
        %2529 = vmatprep.subr.bf16.mxu0 0
        %2530 = vmatpush1.bf16.xpose.msra.mxu0 0
        %2531 = vmatprep.subr.bf16.mxu0 0
        %2532 = vmatpush1.bf16.xpose.msra.mxu0 0
        %2533 = vmatprep.subr.bf16.mxu0 0
        %2534 = vmatpush1.bf16.xpose.msra.mxu0 0
        %2535 = vmatprep.subr.bf16.mxu0 0
        %2536 = vmatpush1.bf16.xpose.msra.mxu0 0
        %2537 = vmatprep.subr.bf16.mxu0 0
        %2538 = vmatpush1.bf16.xpose.msra.mxu0 0
        %2539 = vmatprep.mubr.bf16.mxu0 0
        %2540 = vmatmul.mubr.bf16.gmra.mrb[0].mxu0 %v2502
        %v2541 = vpop.f32.mrb[0].mxu0
        %v2542 = vadd.f32 0.0, %v2541
        %v2543 = vpop.f32.mrb[0].mxu0
        %v2544 = vpop.f32.mrb[0].mxu0
        %v2545 = vpop.f32.mrb[0].mxu0
        %2546 = vdwg.mxu0
        %v2547 = vmul.f32 %v1023, 0.35355338
        %v2548 = vmul.f32 %v1072, 0.35355338
        %v2549 = vmul.f32 %v1121, 0.35355338
        %v2550 = vmul.f32 %v1170, 0.35355338
        %v2551 = vmul.f32 %v1219, 0.35355338
        %v2552 = vmul.f32 %v1268, 0.35355338
        %v2553 = vmul.f32 %v1317, 0.35355338
        %v2554 = vmul.f32 %v1366, 0.35355338
        %v2555 = vmul.f32 %v1415, 0.35355338
        %v2556 = vmul.f32 %v1464, 0.35355338
        %v2557 = vmul.f32 %v1513, 0.35355338
        %v2558 = vmul.f32 %v1562, 0.35355338
        %v2559 = vmul.f32 %v1611, 0.35355338
        %v2560 = vmul.f32 %v1660, 0.35355338
        %v2561 = vmul.f32 %v1709, 0.35355338
        %v2562 = vmul.f32 %v1758, 0.35355338
        %v2563 = vmul.f32 %v1807, 0.35355338
        %v2564 = vmul.f32 %v1856, 0.35355338
        %v2565 = vmul.f32 %v1905, 0.35355338
        %v2566 = vmul.f32 %v1954, 0.35355338
        %v2567 = vmul.f32 %v2003, 0.35355338
        %v2568 = vmul.f32 %v2052, 0.35355338
        %v2569 = vmul.f32 %v2101, 0.35355338
        %v2570 = vmul.f32 %v2150, 0.35355338
        %v2571 = vmul.f32 %v2199, 0.35355338
        %v2572 = vmul.f32 %v2248, 0.35355338
        %v2573 = vmul.f32 %v2297, 0.35355338
        %v2574 = vmul.f32 %v2346, 0.35355338
        %v2575 = vmul.f32 %v2395, 0.35355338
        %v2576 = vmul.f32 %v2444, 0.35355338
        %v2577 = vmul.f32 %v2493, 0.35355338
        %v2578 = vmul.f32 %v2542, 0.35355338
        %v2579 = vld [vmem:[#allocation3] sm:$0xff]
        %v2580 = vld [vmem:[#allocation3 + $0x8] sm:$0xff]
        %v2581 = vld [vmem:[#allocation3 + $0x10] sm:$0xff]
        %v2582 = vld [vmem:[#allocation3 + $0x18] sm:$0xff]
        %v2583 = vld [vmem:[#allocation3 + $0x20] sm:$0xff]
        %v2584 = vld [vmem:[#allocation3 + $0x28] sm:$0xff]
        %v2585 = vld [vmem:[#allocation3 + $0x30] sm:$0xff]
        %v2586 = vld [vmem:[#allocation3 + $0x38] sm:$0xff]
        %v2587 = vld [vmem:[#allocation3 + $0x40] sm:$0xff]
        %v2588 = vld [vmem:[#allocation3 + $0x48] sm:$0xff]
        %v2589 = vld [vmem:[#allocation3 + $0x50] sm:$0xff]
        %v2590 = vld [vmem:[#allocation3 + $0x58] sm:$0xff]
        %v2591 = vld [vmem:[#allocation3 + $0x60] sm:$0xff]
        %v2592 = vld [vmem:[#allocation3 + $0x68] sm:$0xff]
        %v2593 = vld [vmem:[#allocation3 + $0x70] sm:$0xff]
        %v2594 = vld [vmem:[#allocation3 + $0x78] sm:$0xff]
        %v2595 = vld [vmem:[#allocation3 + $0x80] sm:$0xff]
        %v2596 = vld [vmem:[#allocation3 + $0x88] sm:$0xff]
        %v2597 = vld [vmem:[#allocation3 + $0x90] sm:$0xff]
        %v2598 = vld [vmem:[#allocation3 + $0x98] sm:$0xff]
        %v2599 = vld [vmem:[#allocation3 + $0xa0] sm:$0xff]
        %v2600 = vld [vmem:[#allocation3 + $0xa8] sm:$0xff]
        %v2601 = vld [vmem:[#allocation3 + $0xb0] sm:$0xff]
        %v2602 = vld [vmem:[#allocation3 + $0xb8] sm:$0xff]
        %v2603 = vld [vmem:[#allocation3 + $0xc0] sm:$0xff]
        %v2604 = vld [vmem:[#allocation3 + $0xc8] sm:$0xff]
        %v2605 = vld [vmem:[#allocation3 + $0xd0] sm:$0xff]
        %v2606 = vld [vmem:[#allocation3 + $0xd8] sm:$0xff]
        %v2607 = vld [vmem:[#allocation3 + $0xe0] sm:$0xff]
        %v2608 = vld [vmem:[#allocation3 + $0xe8] sm:$0xff]
        %v2609 = vld [vmem:[#allocation3 + $0xf0] sm:$0xff]
        %v2610 = vld [vmem:[#allocation3 + $0xf8] sm:$0xff]
        %v2611 = vadd.f32 %v2547, %v2579
        %v2612 = vadd.f32 %v2548, %v2580
        %v2613 = vadd.f32 %v2549, %v2581
        %v2614 = vadd.f32 %v2550, %v2582
        %v2615 = vadd.f32 %v2551, %v2583
        %v2616 = vadd.f32 %v2552, %v2584
        %v2617 = vadd.f32 %v2553, %v2585
        %v2618 = vadd.f32 %v2554, %v2586
        %v2619 = vadd.f32 %v2555, %v2587
        %v2620 = vadd.f32 %v2556, %v2588
        %v2621 = vadd.f32 %v2557, %v2589
        %v2622 = vadd.f32 %v2558, %v2590
        %v2623 = vadd.f32 %v2559, %v2591
        %v2624 = vadd.f32 %v2560, %v2592
        %v2625 = vadd.f32 %v2561, %v2593
        %v2626 = vadd.f32 %v2562, %v2594
        %v2627 = vadd.f32 %v2563, %v2595
        %v2628 = vadd.f32 %v2564, %v2596
        %v2629 = vadd.f32 %v2565, %v2597
        %v2630 = vadd.f32 %v2566, %v2598
        %v2631 = vadd.f32 %v2567, %v2599
        %v2632 = vadd.f32 %v2568, %v2600
        %v2633 = vadd.f32 %v2569, %v2601
        %v2634 = vadd.f32 %v2570, %v2602
        %v2635 = vadd.f32 %v2571, %v2603
        %v2636 = vadd.f32 %v2572, %v2604
        %v2637 = vadd.f32 %v2573, %v2605
        %v2638 = vadd.f32 %v2574, %v2606
        %v2639 = vadd.f32 %v2575, %v2607
        %v2640 = vadd.f32 %v2576, %v2608
        %v2641 = vadd.f32 %v2577, %v2609
        %v2642 = vadd.f32 %v2578, %v2610
        %2643 = vst.msk [vmem:[#allocation3] sm:$0xff] %vm981, %v2611
        %2644 = vst.msk [vmem:[#allocation3 + $0x8] sm:$0xff] %vm981, %v2612
        %2645 = vst.msk [vmem:[#allocation3 + $0x10] sm:$0xff] %vm981, %v2613
        %2646 = vst.msk [vmem:[#allocation3 + $0x18] sm:$0xff] %vm981, %v2614
        %2647 = vst.msk [vmem:[#allocation3 + $0x20] sm:$0xff] %vm981, %v2615
        %2648 = vst.msk [vmem:[#allocation3 + $0x28] sm:$0xff] %vm981, %v2616
        %2649 = vst.msk [vmem:[#allocation3 + $0x30] sm:$0xff] %vm981, %v2617
        %2650 = vst.msk [vmem:[#allocation3 + $0x38] sm:$0xff] %vm981, %v2618
        %2651 = vst.msk [vmem:[#allocation3 + $0x40] sm:$0xff] %vm981, %v2619
        %2652 = vst.msk [vmem:[#allocation3 + $0x48] sm:$0xff] %vm981, %v2620
        %2653 = vst.msk [vmem:[#allocation3 + $0x50] sm:$0xff] %vm981, %v2621
        %2654 = vst.msk [vmem:[#allocation3 + $0x58] sm:$0xff] %vm981, %v2622
        %2655 = vst.msk [vmem:[#allocation3 + $0x60] sm:$0xff] %vm981, %v2623
        %2656 = vst.msk [vmem:[#allocation3 + $0x68] sm:$0xff] %vm981, %v2624
        %2657 = vst.msk [vmem:[#allocation3 + $0x70] sm:$0xff] %vm981, %v2625
        %2658 = vst.msk [vmem:[#allocation3 + $0x78] sm:$0xff] %vm981, %v2626
        %2659 = vst.msk [vmem:[#allocation3 + $0x80] sm:$0xff] %vm981, %v2627
        %2660 = vst.msk [vmem:[#allocation3 + $0x88] sm:$0xff] %vm981, %v2628
        %2661 = vst.msk [vmem:[#allocation3 + $0x90] sm:$0xff] %vm981, %v2629
        %2662 = vst.msk [vmem:[#allocation3 + $0x98] sm:$0xff] %vm981, %v2630
        %2663 = vst.msk [vmem:[#allocation3 + $0xa0] sm:$0xff] %vm981, %v2631
        %2664 = vst.msk [vmem:[#allocation3 + $0xa8] sm:$0xff] %vm981, %v2632
        %2665 = vst.msk [vmem:[#allocation3 + $0xb0] sm:$0xff] %vm981, %v2633
        %2666 = vst.msk [vmem:[#allocation3 + $0xb8] sm:$0xff] %vm981, %v2634
        %2667 = vst.msk [vmem:[#allocation3 + $0xc0] sm:$0xff] %vm981, %v2635
        %2668 = vst.msk [vmem:[#allocation3 + $0xc8] sm:$0xff] %vm981, %v2636
        %2669 = vst.msk [vmem:[#allocation3 + $0xd0] sm:$0xff] %vm981, %v2637
        %2670 = vst.msk [vmem:[#allocation3 + $0xd8] sm:$0xff] %vm981, %v2638
        %2671 = vst.msk [vmem:[#allocation3 + $0xe0] sm:$0xff] %vm981, %v2639
        %2672 = vst.msk [vmem:[#allocation3 + $0xe8] sm:$0xff] %vm981, %v2640
        %2673 = vst.msk [vmem:[#allocation3 + $0xf0] sm:$0xff] %vm981, %v2641
        %2674 = vst.msk [vmem:[#allocation3 + $0xf8] sm:$0xff] %vm981, %v2642
        %v2675 = vsel %vm981, %v2611, -inf
        %2676 = vmax.xlane.f32.xlu0 %v2675
        %v2677 = vpop.xlane.xlu0 %2676
        %v2678 = vsel %vm981, %v2612, -inf
        %2679 = vmax.xlane.f32.xlu0 %v2678
        %v2680 = vpop.xlane.xlu0 %2679
        %v2681 = vsel %vm981, %v2613, -inf
        %2682 = vmax.xlane.f32.xlu0 %v2681
        %v2683 = vpop.xlane.xlu0 %2682
        %v2684 = vsel %vm981, %v2614, -inf
        %2685 = vmax.xlane.f32.xlu0 %v2684
        %v2686 = vpop.xlane.xlu0 %2685
        %v2687 = vsel %vm981, %v2615, -inf
        %2688 = vmax.xlane.f32.xlu0 %v2687
        %v2689 = vpop.xlane.xlu0 %2688
        %v2690 = vsel %vm981, %v2616, -inf
        %2691 = vmax.xlane.f32.xlu0 %v2690
        %v2692 = vpop.xlane.xlu0 %2691
        %v2693 = vsel %vm981, %v2617, -inf
        %2694 = vmax.xlane.f32.xlu0 %v2693
        %v2695 = vpop.xlane.xlu0 %2694
        %v2696 = vsel %vm981, %v2618, -inf
        %2697 = vmax.xlane.f32.xlu0 %v2696
        %v2698 = vpop.xlane.xlu0 %2697
        %v2699 = vsel %vm981, %v2619, -inf
        %2700 = vmax.xlane.f32.xlu0 %v2699
        %v2701 = vpop.xlane.xlu0 %2700
        %v2702 = vsel %vm981, %v2620, -inf
        %2703 = vmax.xlane.f32.xlu0 %v2702
        %v2704 = vpop.xlane.xlu0 %2703
        %v2705 = vsel %vm981, %v2621, -inf
        %2706 = vmax.xlane.f32.xlu0 %v2705
        %v2707 = vpop.xlane.xlu0 %2706
        %v2708 = vsel %vm981, %v2622, -inf
        %2709 = vmax.xlane.f32.xlu0 %v2708
        %v2710 = vpop.xlane.xlu0 %2709
        %v2711 = vsel %vm981, %v2623, -inf
        %2712 = vmax.xlane.f32.xlu0 %v2711
        %v2713 = vpop.xlane.xlu0 %2712
        %v2714 = vsel %vm981, %v2624, -inf
        %2715 = vmax.xlane.f32.xlu0 %v2714
        %v2716 = vpop.xlane.xlu0 %2715
        %v2717 = vsel %vm981, %v2625, -inf
        %2718 = vmax.xlane.f32.xlu0 %v2717
        %v2719 = vpop.xlane.xlu0 %2718
        %v2720 = vsel %vm981, %v2626, -inf
        %2721 = vmax.xlane.f32.xlu0 %v2720
        %v2722 = vpop.xlane.xlu0 %2721
        %v2723 = vsel %vm981, %v2627, -inf
        %2724 = vmax.xlane.f32.xlu0 %v2723
        %v2725 = vpop.xlane.xlu0 %2724
        %v2726 = vsel %vm981, %v2628, -inf
        %2727 = vmax.xlane.f32.xlu0 %v2726
        %v2728 = vpop.xlane.xlu0 %2727
        %v2729 = vsel %vm981, %v2629, -inf
        %2730 = vmax.xlane.f32.xlu0 %v2729
        %v2731 = vpop.xlane.xlu0 %2730
        %v2732 = vsel %vm981, %v2630, -inf
        %2733 = vmax.xlane.f32.xlu0 %v2732
        %v2734 = vpop.xlane.xlu0 %2733
        %v2735 = vsel %vm981, %v2631, -inf
        %2736 = vmax.xlane.f32.xlu0 %v2735
        %v2737 = vpop.xlane.xlu0 %2736
        %v2738 = vsel %vm981, %v2632, -inf
        %2739 = vmax.xlane.f32.xlu0 %v2738
        %v2740 = vpop.xlane.xlu0 %2739
        %v2741 = vsel %vm981, %v2633, -inf
        %2742 = vmax.xlane.f32.xlu0 %v2741
        %v2743 = vpop.xlane.xlu0 %2742
        %v2744 = vsel %vm981, %v2634, -inf
        %2745 = vmax.xlane.f32.xlu0 %v2744
        %v2746 = vpop.xlane.xlu0 %2745
        %v2747 = vsel %vm981, %v2635, -inf
        %2748 = vmax.xlane.f32.xlu0 %v2747
        %v2749 = vpop.xlane.xlu0 %2748
        %v2750 = vsel %vm981, %v2636, -inf
        %2751 = vmax.xlane.f32.xlu0 %v2750
        %v2752 = vpop.xlane.xlu0 %2751
        %v2753 = vsel %vm981, %v2637, -inf
        %2754 = vmax.xlane.f32.xlu0 %v2753
        %v2755 = vpop.xlane.xlu0 %2754
        %v2756 = vsel %vm981, %v2638, -inf
        %2757 = vmax.xlane.f32.xlu0 %v2756
        %v2758 = vpop.xlane.xlu0 %2757
        %v2759 = vsel %vm981, %v2639, -inf
        %2760 = vmax.xlane.f32.xlu0 %v2759
        %v2761 = vpop.xlane.xlu0 %2760
        %v2762 = vsel %vm981, %v2640, -inf
        %2763 = vmax.xlane.f32.xlu0 %v2762
        %v2764 = vpop.xlane.xlu0 %2763
        %v2765 = vsel %vm981, %v2641, -inf
        %2766 = vmax.xlane.f32.xlu0 %v2765
        %v2767 = vpop.xlane.xlu0 %2766
        %v2768 = vsel %vm981, %v2642, -inf
        %2769 = vmax.xlane.f32.xlu0 %v2768
        %v2770 = vpop.xlane.xlu0 %2769
        %v2771 = vsub.f32 %v2611, %v2677
        %v2772 = vsub.f32 %v2612, %v2680
        %v2773 = vsub.f32 %v2613, %v2683
        %v2774 = vsub.f32 %v2614, %v2686
        %v2775 = vsub.f32 %v2615, %v2689
        %v2776 = vsub.f32 %v2616, %v2692
        %v2777 = vsub.f32 %v2617, %v2695
        %v2778 = vsub.f32 %v2618, %v2698
        %v2779 = vsub.f32 %v2619, %v2701
        %v2780 = vsub.f32 %v2620, %v2704
        %v2781 = vsub.f32 %v2621, %v2707
        %v2782 = vsub.f32 %v2622, %v2710
        %v2783 = vsub.f32 %v2623, %v2713
        %v2784 = vsub.f32 %v2624, %v2716
        %v2785 = vsub.f32 %v2625, %v2719
        %v2786 = vsub.f32 %v2626, %v2722
        %v2787 = vsub.f32 %v2627, %v2725
        %v2788 = vsub.f32 %v2628, %v2728
        %v2789 = vsub.f32 %v2629, %v2731
        %v2790 = vsub.f32 %v2630, %v2734
        %v2791 = vsub.f32 %v2631, %v2737
        %v2792 = vsub.f32 %v2632, %v2740
        %v2793 = vsub.f32 %v2633, %v2743
        %v2794 = vsub.f32 %v2634, %v2746
        %v2795 = vsub.f32 %v2635, %v2749
        %v2796 = vsub.f32 %v2636, %v2752
        %v2797 = vsub.f32 %v2637, %v2755
        %v2798 = vsub.f32 %v2638, %v2758
        %v2799 = vsub.f32 %v2639, %v2761
        %v2800 = vsub.f32 %v2640, %v2764
        %v2801 = vsub.f32 %v2641, %v2767
        %v2802 = vsub.f32 %v2642, %v2770
        %v2803 = vmul.f32 %v2771, 1.442695
        %v2804 = vpow.pop %v2803
        %v2805 = vmul.f32 %v2772, 1.442695
        %v2806 = vpow.pop %v2805
        %v2807 = vmul.f32 %v2773, 1.442695
        %v2808 = vpow.pop %v2807
        %v2809 = vmul.f32 %v2774, 1.442695
        %v2810 = vpow.pop %v2809
        %v2811 = vmul.f32 %v2775, 1.442695
        %v2812 = vpow.pop %v2811
        %v2813 = vmul.f32 %v2776, 1.442695
        %v2814 = vpow.pop %v2813
        %v2815 = vmul.f32 %v2777, 1.442695
        %v2816 = vpow.pop %v2815
        %v2817 = vmul.f32 %v2778, 1.442695
        %v2818 = vpow.pop %v2817
        %v2819 = vmul.f32 %v2779, 1.442695
        %v2820 = vpow.pop %v2819
        %v2821 = vmul.f32 %v2780, 1.442695
        %v2822 = vpow.pop %v2821
        %v2823 = vmul.f32 %v2781, 1.442695
        %v2824 = vpow.pop %v2823
        %v2825 = vmul.f32 %v2782, 1.442695
        %v2826 = vpow.pop %v2825
        %v2827 = vmul.f32 %v2783, 1.442695
        %v2828 = vpow.pop %v2827
        %v2829 = vmul.f32 %v2784, 1.442695
        %v2830 = vpow.pop %v2829
        %v2831 = vmul.f32 %v2785, 1.442695
        %v2832 = vpow.pop %v2831
        %v2833 = vmul.f32 %v2786, 1.442695
        %v2834 = vpow.pop %v2833
        %v2835 = vmul.f32 %v2787, 1.442695
        %v2836 = vpow.pop %v2835
        %v2837 = vmul.f32 %v2788, 1.442695
        %v2838 = vpow.pop %v2837
        %v2839 = vmul.f32 %v2789, 1.442695
        %v2840 = vpow.pop %v2839
        %v2841 = vmul.f32 %v2790, 1.442695
        %v2842 = vpow.pop %v2841
        %v2843 = vmul.f32 %v2791, 1.442695
        %v2844 = vpow.pop %v2843
        %v2845 = vmul.f32 %v2792, 1.442695
        %v2846 = vpow.pop %v2845
        %v2847 = vmul.f32 %v2793, 1.442695
        %v2848 = vpow.pop %v2847
        %v2849 = vmul.f32 %v2794, 1.442695
        %v2850 = vpow.pop %v2849
        %v2851 = vmul.f32 %v2795, 1.442695
        %v2852 = vpow.pop %v2851
        %v2853 = vmul.f32 %v2796, 1.442695
        %v2854 = vpow.pop %v2853
        %v2855 = vmul.f32 %v2797, 1.442695
        %v2856 = vpow.pop %v2855
        %v2857 = vmul.f32 %v2798, 1.442695
        %v2858 = vpow.pop %v2857
        %v2859 = vmul.f32 %v2799, 1.442695
        %v2860 = vpow.pop %v2859
        %v2861 = vmul.f32 %v2800, 1.442695
        %v2862 = vpow.pop %v2861
        %v2863 = vmul.f32 %v2801, 1.442695
        %v2864 = vpow.pop %v2863
        %v2865 = vmul.f32 %v2802, 1.442695
        %v2866 = vpow.pop %v2865
        %v2867 = vsel %vm981, %v2804, 0.0
        %2868 = vadd.xlane.f32.xlu0 %v2867
        %v2869 = vpop.xlane.xlu0 %2868
        %v2870 = vsel %vm981, %v2806, 0.0
        %2871 = vadd.xlane.f32.xlu0 %v2870
        %v2872 = vpop.xlane.xlu0 %2871
        %v2873 = vsel %vm981, %v2808, 0.0
        %2874 = vadd.xlane.f32.xlu0 %v2873
        %v2875 = vpop.xlane.xlu0 %2874
        %v2876 = vsel %vm981, %v2810, 0.0
        %2877 = vadd.xlane.f32.xlu0 %v2876
        %v2878 = vpop.xlane.xlu0 %2877
        %v2879 = vsel %vm981, %v2812, 0.0
        %2880 = vadd.xlane.f32.xlu0 %v2879
        %v2881 = vpop.xlane.xlu0 %2880
        %v2882 = vsel %vm981, %v2814, 0.0
        %2883 = vadd.xlane.f32.xlu0 %v2882
        %v2884 = vpop.xlane.xlu0 %2883
        %v2885 = vsel %vm981, %v2816, 0.0
        %2886 = vadd.xlane.f32.xlu0 %v2885
        %v2887 = vpop.xlane.xlu0 %2886
        %v2888 = vsel %vm981, %v2818, 0.0
        %2889 = vadd.xlane.f32.xlu0 %v2888
        %v2890 = vpop.xlane.xlu0 %2889
        %v2891 = vsel %vm981, %v2820, 0.0
        %2892 = vadd.xlane.f32.xlu0 %v2891
        %v2893 = vpop.xlane.xlu0 %2892
        %v2894 = vsel %vm981, %v2822, 0.0
        %2895 = vadd.xlane.f32.xlu0 %v2894
        %v2896 = vpop.xlane.xlu0 %2895
        %v2897 = vsel %vm981, %v2824, 0.0
        %2898 = vadd.xlane.f32.xlu0 %v2897
        %v2899 = vpop.xlane.xlu0 %2898
        %v2900 = vsel %vm981, %v2826, 0.0
        %2901 = vadd.xlane.f32.xlu0 %v2900
        %v2902 = vpop.xlane.xlu0 %2901
        %v2903 = vsel %vm981, %v2828, 0.0
        %2904 = vadd.xlane.f32.xlu0 %v2903
        %v2905 = vpop.xlane.xlu0 %2904
        %v2906 = vsel %vm981, %v2830, 0.0
        %2907 = vadd.xlane.f32.xlu0 %v2906
        %v2908 = vpop.xlane.xlu0 %2907
        %v2909 = vsel %vm981, %v2832, 0.0
        %2910 = vadd.xlane.f32.xlu0 %v2909
        %v2911 = vpop.xlane.xlu0 %2910
        %v2912 = vsel %vm981, %v2834, 0.0
        %2913 = vadd.xlane.f32.xlu0 %v2912
        %v2914 = vpop.xlane.xlu0 %2913
        %v2915 = vsel %vm981, %v2836, 0.0
        %2916 = vadd.xlane.f32.xlu0 %v2915
        %v2917 = vpop.xlane.xlu0 %2916
        %v2918 = vsel %vm981, %v2838, 0.0
        %2919 = vadd.xlane.f32.xlu0 %v2918
        %v2920 = vpop.xlane.xlu0 %2919
        %v2921 = vsel %vm981, %v2840, 0.0
        %2922 = vadd.xlane.f32.xlu0 %v2921
        %v2923 = vpop.xlane.xlu0 %2922
        %v2924 = vsel %vm981, %v2842, 0.0
        %2925 = vadd.xlane.f32.xlu0 %v2924
        %v2926 = vpop.xlane.xlu0 %2925
        %v2927 = vsel %vm981, %v2844, 0.0
        %2928 = vadd.xlane.f32.xlu0 %v2927
        %v2929 = vpop.xlane.xlu0 %2928
        %v2930 = vsel %vm981, %v2846, 0.0
        %2931 = vadd.xlane.f32.xlu0 %v2930
        %v2932 = vpop.xlane.xlu0 %2931
        %v2933 = vsel %vm981, %v2848, 0.0
        %2934 = vadd.xlane.f32.xlu0 %v2933
        %v2935 = vpop.xlane.xlu0 %2934
        %v2936 = vsel %vm981, %v2850, 0.0
        %2937 = vadd.xlane.f32.xlu0 %v2936
        %v2938 = vpop.xlane.xlu0 %2937
        %v2939 = vsel %vm981, %v2852, 0.0
        %2940 = vadd.xlane.f32.xlu0 %v2939
        %v2941 = vpop.xlane.xlu0 %2940
        %v2942 = vsel %vm981, %v2854, 0.0
        %2943 = vadd.xlane.f32.xlu0 %v2942
        %v2944 = vpop.xlane.xlu0 %2943
        %v2945 = vsel %vm981, %v2856, 0.0
        %2946 = vadd.xlane.f32.xlu0 %v2945
        %v2947 = vpop.xlane.xlu0 %2946
        %v2948 = vsel %vm981, %v2858, 0.0
        %2949 = vadd.xlane.f32.xlu0 %v2948
        %v2950 = vpop.xlane.xlu0 %2949
        %v2951 = vsel %vm981, %v2860, 0.0
        %2952 = vadd.xlane.f32.xlu0 %v2951
        %v2953 = vpop.xlane.xlu0 %2952
        %v2954 = vsel %vm981, %v2862, 0.0
        %2955 = vadd.xlane.f32.xlu0 %v2954
        %v2956 = vpop.xlane.xlu0 %2955
        %v2957 = vsel %vm981, %v2864, 0.0
        %2958 = vadd.xlane.f32.xlu0 %v2957
        %v2959 = vpop.xlane.xlu0 %2958
        %v2960 = vsel %vm981, %v2866, 0.0
        %2961 = vadd.xlane.f32.xlu0 %v2960
        %v2962 = vpop.xlane.xlu0 %2961
        %v2963 = vrcp.pop %v2869
        %v2964 = vrcp.pop %v2872
        %v2965 = vrcp.pop %v2875
        %v2966 = vrcp.pop %v2878
        %v2967 = vrcp.pop %v2881
        %v2968 = vrcp.pop %v2884
        %v2969 = vrcp.pop %v2887
        %v2970 = vrcp.pop %v2890
        %v2971 = vrcp.pop %v2893
        %v2972 = vrcp.pop %v2896
        %v2973 = vrcp.pop %v2899
        %v2974 = vrcp.pop %v2902
        %v2975 = vrcp.pop %v2905
        %v2976 = vrcp.pop %v2908
        %v2977 = vrcp.pop %v2911
        %v2978 = vrcp.pop %v2914
        %v2979 = vrcp.pop %v2917
        %v2980 = vrcp.pop %v2920
        %v2981 = vrcp.pop %v2923
        %v2982 = vrcp.pop %v2926
        %v2983 = vrcp.pop %v2929
        %v2984 = vrcp.pop %v2932
        %v2985 = vrcp.pop %v2935
        %v2986 = vrcp.pop %v2938
        %v2987 = vrcp.pop %v2941
        %v2988 = vrcp.pop %v2944
        %v2989 = vrcp.pop %v2947
        %v2990 = vrcp.pop %v2950
        %v2991 = vrcp.pop %v2953
        %v2992 = vrcp.pop %v2956
        %v2993 = vrcp.pop %v2959
        %v2994 = vrcp.pop %v2962
        %v2995 = vmul.f32 %v2804, %v2963
        %v2996 = vmul.f32 %v2806, %v2964
        %v2997 = vmul.f32 %v2808, %v2965
        %v2998 = vmul.f32 %v2810, %v2966
        %v2999 = vmul.f32 %v2812, %v2967
        %v3000 = vmul.f32 %v2814, %v2968
        %v3001 = vmul.f32 %v2816, %v2969
        %v3002 = vmul.f32 %v2818, %v2970
        %v3003 = vmul.f32 %v2820, %v2971
        %v3004 = vmul.f32 %v2822, %v2972
        %v3005 = vmul.f32 %v2824, %v2973
        %v3006 = vmul.f32 %v2826, %v2974
        %v3007 = vmul.f32 %v2828, %v2975
        %v3008 = vmul.f32 %v2830, %v2976
        %v3009 = vmul.f32 %v2832, %v2977
        %v3010 = vmul.f32 %v2834, %v2978
        %v3011 = vmul.f32 %v2836, %v2979
        %v3012 = vmul.f32 %v2838, %v2980
        %v3013 = vmul.f32 %v2840, %v2981
        %v3014 = vmul.f32 %v2842, %v2982
        %v3015 = vmul.f32 %v2844, %v2983
        %v3016 = vmul.f32 %v2846, %v2984
        %v3017 = vmul.f32 %v2848, %v2985
        %v3018 = vmul.f32 %v2850, %v2986
        %v3019 = vmul.f32 %v2852, %v2987
        %v3020 = vmul.f32 %v2854, %v2988
        %v3021 = vmul.f32 %v2856, %v2989
        %v3022 = vmul.f32 %v2858, %v2990
        %v3023 = vmul.f32 %v2860, %v2991
        %v3024 = vmul.f32 %v2862, %v2992
        %v3025 = vmul.f32 %v2864, %v2993
        %v3026 = vmul.f32 %v2866, %v2994
        %v3027 = vpack.c.bf16 %v2995, %v2995
        %v3028 = vpack.c.bf16 %v2996, %v2996
        %v3029 = vpack.c.bf16 %v2997, %v2997
        %v3030 = vpack.c.bf16 %v2998, %v2998
        %v3031 = vpack.c.bf16 %v2999, %v2999
        %v3032 = vpack.c.bf16 %v3000, %v3000
        %v3033 = vpack.c.bf16 %v3001, %v3001
        %v3034 = vpack.c.bf16 %v3002, %v3002
        %v3035 = vpack.c.bf16 %v3003, %v3003
        %v3036 = vpack.c.bf16 %v3004, %v3004
        %v3037 = vpack.c.bf16 %v3005, %v3005
        %v3038 = vpack.c.bf16 %v3006, %v3006
        %v3039 = vpack.c.bf16 %v3007, %v3007
        %v3040 = vpack.c.bf16 %v3008, %v3008
        %v3041 = vpack.c.bf16 %v3009, %v3009
        %v3042 = vpack.c.bf16 %v3010, %v3010
        %v3043 = vpack.c.bf16 %v3011, %v3011
        %v3044 = vpack.c.bf16 %v3012, %v3012
        %v3045 = vpack.c.bf16 %v3013, %v3013
        %v3046 = vpack.c.bf16 %v3014, %v3014
        %v3047 = vpack.c.bf16 %v3015, %v3015
        %v3048 = vpack.c.bf16 %v3016, %v3016
        %v3049 = vpack.c.bf16 %v3017, %v3017
        %v3050 = vpack.c.bf16 %v3018, %v3018
        %v3051 = vpack.c.bf16 %v3019, %v3019
        %v3052 = vpack.c.bf16 %v3020, %v3020
        %v3053 = vpack.c.bf16 %v3021, %v3021
        %v3054 = vpack.c.bf16 %v3022, %v3022
        %v3055 = vpack.c.bf16 %v3023, %v3023
        %v3056 = vpack.c.bf16 %v3024, %v3024
        %v3057 = vpack.c.bf16 %v3025, %v3025
        %v3058 = vpack.c.bf16 %v3026, %v3026
        %3059 = vrot.lane.b32.xlu0 %v946, 64
        %v3060 = vpop.permute.xlu0 %3059
        %v3062 = vsel %vm981, %v3027, 0
        %vm3064 = vcmask 1043456
        %v3066 = vsel %vm3064, %v3060, 0
        %3068 = vmatprep.subr.bf16.mxu0 0
        %3069 = vmatpush1.bf16.msra.mxu0 %v3066
        %3070 = vmatprep.subr.bf16.mxu0 0
        %3071 = vmatpush1.bf16.msra.mxu0 0
        %3072 = vmatprep.subr.bf16.mxu0 0
        %3073 = vmatpush1.bf16.msra.mxu0 0
        %3074 = vmatprep.subr.bf16.mxu0 0
        %3075 = vmatpush1.bf16.msra.mxu0 0
        %3076 = vmatprep.subr.bf16.mxu0 0
        %3077 = vmatpush1.bf16.msra.mxu0 0
        %3078 = vmatprep.subr.bf16.mxu0 0
        %3079 = vmatpush1.bf16.msra.mxu0 0
        %3080 = vmatprep.subr.bf16.mxu0 0
        %3081 = vmatpush1.bf16.msra.mxu0 0
        %3082 = vmatprep.subr.bf16.mxu0 0
        %3083 = vmatpush1.bf16.msra.mxu0 0
        %3084 = vmatprep.subr.bf16.mxu0 0
        %3085 = vmatpush1.bf16.msra.mxu0 0
        %3086 = vmatprep.subr.bf16.mxu0 0
        %3087 = vmatpush1.bf16.msra.mxu0 0
        %3088 = vmatprep.subr.bf16.mxu0 0
        %3089 = vmatpush1.bf16.msra.mxu0 0
        %3090 = vmatprep.subr.bf16.mxu0 0
        %3091 = vmatpush1.bf16.msra.mxu0 0
        %3092 = vmatprep.subr.bf16.mxu0 0
        %3093 = vmatpush1.bf16.msra.mxu0 0
        %3094 = vmatprep.subr.bf16.mxu0 0
        %3095 = vmatpush1.bf16.msra.mxu0 0
        %3096 = vmatprep.subr.bf16.mxu0 0
        %3097 = vmatpush1.bf16.msra.mxu0 0
        %3098 = vmatprep.subr.bf16.mxu0 0
        %3099 = vmatpush1.bf16.msra.mxu0 0
        %3100 = vmatprep.mubr.bf16.mxu0 0
        %3101 = vmatmul.mubr.bf16.gmra.mrb[0].mxu0 %v3062
        %v3102 = vpop.f32.mrb[0].mxu0
        %v3103 = vadd.f32 0.0, %v3102
        %v3104 = vpop.f32.mrb[0].mxu0
        %v3105 = vpop.f32.mrb[0].mxu0
        %v3106 = vpop.f32.mrb[0].mxu0
        %3107 = vdwg.mxu0
        %3108 = vrot.lane.b32.xlu0 %v947, 64
        %v3109 = vpop.permute.xlu0 %3108
        %v3111 = vsel %vm981, %v3028, 0
        %v3114 = vsel %vm3064, %v3109, 0
        %3116 = vmatprep.subr.bf16.mxu0 0
        %3117 = vmatpush1.bf16.msra.mxu0 %v3114
        %3118 = vmatprep.subr.bf16.mxu0 0
        %3119 = vmatpush1.bf16.msra.mxu0 0
        %3120 = vmatprep.subr.bf16.mxu0 0
        %3121 = vmatpush1.bf16.msra.mxu0 0
        %3122 = vmatprep.subr.bf16.mxu0 0
        %3123 = vmatpush1.bf16.msra.mxu0 0
        %3124 = vmatprep.subr.bf16.mxu0 0
        %3125 = vmatpush1.bf16.msra.mxu0 0
        %3126 = vmatprep.subr.bf16.mxu0 0
        %3127 = vmatpush1.bf16.msra.mxu0 0
        %3128 = vmatprep.subr.bf16.mxu0 0
        %3129 = vmatpush1.bf16.msra.mxu0 0
        %3130 = vmatprep.subr.bf16.mxu0 0
        %3131 = vmatpush1.bf16.msra.mxu0 0
        %3132 = vmatprep.subr.bf16.mxu0 0
        %3133 = vmatpush1.bf16.msra.mxu0 0
        %3134 = vmatprep.subr.bf16.mxu0 0
        %3135 = vmatpush1.bf16.msra.mxu0 0
        %3136 = vmatprep.subr.bf16.mxu0 0
        %3137 = vmatpush1.bf16.msra.mxu0 0
        %3138 = vmatprep.subr.bf16.mxu0 0
        %3139 = vmatpush1.bf16.msra.mxu0 0
        %3140 = vmatprep.subr.bf16.mxu0 0
        %3141 = vmatpush1.bf16.msra.mxu0 0
        %3142 = vmatprep.subr.bf16.mxu0 0
        %3143 = vmatpush1.bf16.msra.mxu0 0
        %3144 = vmatprep.subr.bf16.mxu0 0
        %3145 = vmatpush1.bf16.msra.mxu0 0
        %3146 = vmatprep.subr.bf16.mxu0 0
        %3147 = vmatpush1.bf16.msra.mxu0 0
        %3148 = vmatprep.mubr.bf16.mxu0 0
        %3149 = vmatmul.mubr.bf16.gmra.mrb[0].mxu0 %v3111
        %v3150 = vpop.f32.mrb[0].mxu0
        %v3151 = vadd.f32 0.0, %v3150
        %v3152 = vpop.f32.mrb[0].mxu0
        %v3153 = vpop.f32.mrb[0].mxu0
        %v3154 = vpop.f32.mrb[0].mxu0
        %3155 = vdwg.mxu0
        %3156 = vrot.lane.b32.xlu0 %v948, 64
        %v3157 = vpop.permute.xlu0 %3156
        %v3159 = vsel %vm981, %v3029, 0
        %v3162 = vsel %vm3064, %v3157, 0
        %3164 = vmatprep.subr.bf16.mxu0 0
        %3165 = vmatpush1.bf16.msra.mxu0 %v3162
        %3166 = vmatprep.subr.bf16.mxu0 0
        %3167 = vmatpush1.bf16.msra.mxu0 0
        %3168 = vmatprep.subr.bf16.mxu0 0
        %3169 = vmatpush1.bf16.msra.mxu0 0
        %3170 = vmatprep.subr.bf16.mxu0 0
        %3171 = vmatpush1.bf16.msra.mxu0 0
        %3172 = vmatprep.subr.bf16.mxu0 0
        %3173 = vmatpush1.bf16.msra.mxu0 0
        %3174 = vmatprep.subr.bf16.mxu0 0
        %3175 = vmatpush1.bf16.msra.mxu0 0
        %3176 = vmatprep.subr.bf16.mxu0 0
        %3177 = vmatpush1.bf16.msra.mxu0 0
        %3178 = vmatprep.subr.bf16.mxu0 0
        %3179 = vmatpush1.bf16.msra.mxu0 0
        %3180 = vmatprep.subr.bf16.mxu0 0
        %3181 = vmatpush1.bf16.msra.mxu0 0
        %3182 = vmatprep.subr.bf16.mxu0 0
        %3183 = vmatpush1.bf16.msra.mxu0 0
        %3184 = vmatprep.subr.bf16.mxu0 0
        %3185 = vmatpush1.bf16.msra.mxu0 0
        %3186 = vmatprep.subr.bf16.mxu0 0
        %3187 = vmatpush1.bf16.msra.mxu0 0
        %3188 = vmatprep.subr.bf16.mxu0 0
        %3189 = vmatpush1.bf16.msra.mxu0 0
        %3190 = vmatprep.subr.bf16.mxu0 0
        %3191 = vmatpush1.bf16.msra.mxu0 0
        %3192 = vmatprep.subr.bf16.mxu0 0
        %3193 = vmatpush1.bf16.msra.mxu0 0
        %3194 = vmatprep.subr.bf16.mxu0 0
        %3195 = vmatpush1.bf16.msra.mxu0 0
        %3196 = vmatprep.mubr.bf16.mxu0 0
        %3197 = vmatmul.mubr.bf16.gmra.mrb[0].mxu0 %v3159
        %v3198 = vpop.f32.mrb[0].mxu0
        %v3199 = vadd.f32 0.0, %v3198
        %v3200 = vpop.f32.mrb[0].mxu0
        %v3201 = vpop.f32.mrb[0].mxu0
        %v3202 = vpop.f32.mrb[0].mxu0
        %3203 = vdwg.mxu0
        %3204 = vrot.lane.b32.xlu0 %v949, 64
        %v3205 = vpop.permute.xlu0 %3204
        %v3207 = vsel %vm981, %v3030, 0
        %v3210 = vsel %vm3064, %v3205, 0
        %3212 = vmatprep.subr.bf16.mxu0 0
        %3213 = vmatpush1.bf16.msra.mxu0 %v3210
        %3214 = vmatprep.subr.bf16.mxu0 0
        %3215 = vmatpush1.bf16.msra.mxu0 0
        %3216 = vmatprep.subr.bf16.mxu0 0
        %3217 = vmatpush1.bf16.msra.mxu0 0
        %3218 = vmatprep.subr.bf16.mxu0 0
        %3219 = vmatpush1.bf16.msra.mxu0 0
        %3220 = vmatprep.subr.bf16.mxu0 0
        %3221 = vmatpush1.bf16.msra.mxu0 0
        %3222 = vmatprep.subr.bf16.mxu0 0
        %3223 = vmatpush1.bf16.msra.mxu0 0
        %3224 = vmatprep.subr.bf16.mxu0 0
        %3225 = vmatpush1.bf16.msra.mxu0 0
        %3226 = vmatprep.subr.bf16.mxu0 0
        %3227 = vmatpush1.bf16.msra.mxu0 0
        %3228 = vmatprep.subr.bf16.mxu0 0
        %3229 = vmatpush1.bf16.msra.mxu0 0
        %3230 = vmatprep.subr.bf16.mxu0 0
        %3231 = vmatpush1.bf16.msra.mxu0 0
        %3232 = vmatprep.subr.bf16.mxu0 0
        %3233 = vmatpush1.bf16.msra.mxu0 0
        %3234 = vmatprep.subr.bf16.mxu0 0
        %3235 = vmatpush1.bf16.msra.mxu0 0
        %3236 = vmatprep.subr.bf16.mxu0 0
        %3237 = vmatpush1.bf16.msra.mxu0 0
        %3238 = vmatprep.subr.bf16.mxu0 0
        %3239 = vmatpush1.bf16.msra.mxu0 0
        %3240 = vmatprep.subr.bf16.mxu0 0
        %3241 = vmatpush1.bf16.msra.mxu0 0
        %3242 = vmatprep.subr.bf16.mxu0 0
        %3243 = vmatpush1.bf16.msra.mxu0 0
        %3244 = vmatprep.mubr.bf16.mxu0 0
        %3245 = vmatmul.mubr.bf16.gmra.mrb[0].mxu0 %v3207
        %v3246 = vpop.f32.mrb[0].mxu0
        %v3247 = vadd.f32 0.0, %v3246
        %v3248 = vpop.f32.mrb[0].mxu0
        %v3249 = vpop.f32.mrb[0].mxu0
        %v3250 = vpop.f32.mrb[0].mxu0
        %3251 = vdwg.mxu0
        %3252 = vrot.lane.b32.xlu0 %v950, 64
        %v3253 = vpop.permute.xlu0 %3252
        %v3255 = vsel %vm981, %v3031, 0
        %v3258 = vsel %vm3064, %v3253, 0
        %3260 = vmatprep.subr.bf16.mxu0 0
        %3261 = vmatpush1.bf16.msra.mxu0 %v3258
        %3262 = vmatprep.subr.bf16.mxu0 0
        %3263 = vmatpush1.bf16.msra.mxu0 0
        %3264 = vmatprep.subr.bf16.mxu0 0
        %3265 = vmatpush1.bf16.msra.mxu0 0
        %3266 = vmatprep.subr.bf16.mxu0 0
        %3267 = vmatpush1.bf16.msra.mxu0 0
        %3268 = vmatprep.subr.bf16.mxu0 0
        %3269 = vmatpush1.bf16.msra.mxu0 0
        %3270 = vmatprep.subr.bf16.mxu0 0
        %3271 = vmatpush1.bf16.msra.mxu0 0
        %3272 = vmatprep.subr.bf16.mxu0 0
        %3273 = vmatpush1.bf16.msra.mxu0 0
        %3274 = vmatprep.subr.bf16.mxu0 0
        %3275 = vmatpush1.bf16.msra.mxu0 0
        %3276 = vmatprep.subr.bf16.mxu0 0
        %3277 = vmatpush1.bf16.msra.mxu0 0
        %3278 = vmatprep.subr.bf16.mxu0 0
        %3279 = vmatpush1.bf16.msra.mxu0 0
        %3280 = vmatprep.subr.bf16.mxu0 0
        %3281 = vmatpush1.bf16.msra.mxu0 0
        %3282 = vmatprep.subr.bf16.mxu0 0
        %3283 = vmatpush1.bf16.msra.mxu0 0
        %3284 = vmatprep.subr.bf16.mxu0 0
        %3285 = vmatpush1.bf16.msra.mxu0 0
        %3286 = vmatprep.subr.bf16.mxu0 0
        %3287 = vmatpush1.bf16.msra.mxu0 0
        %3288 = vmatprep.subr.bf16.mxu0 0
        %3289 = vmatpush1.bf16.msra.mxu0 0
        %3290 = vmatprep.subr.bf16.mxu0 0
        %3291 = vmatpush1.bf16.msra.mxu0 0
        %3292 = vmatprep.mubr.bf16.mxu0 0
        %3293 = vmatmul.mubr.bf16.gmra.mrb[0].mxu0 %v3255
        %v3294 = vpop.f32.mrb[0].mxu0
        %v3295 = vadd.f32 0.0, %v3294
        %v3296 = vpop.f32.mrb[0].mxu0
        %v3297 = vpop.f32.mrb[0].mxu0
        %v3298 = vpop.f32.mrb[0].mxu0
        %3299 = vdwg.mxu0
        %3300 = vrot.lane.b32.xlu0 %v951, 64
        %v3301 = vpop.permute.xlu0 %3300
        %v3303 = vsel %vm981, %v3032, 0
        %v3306 = vsel %vm3064, %v3301, 0
        %3308 = vmatprep.subr.bf16.mxu0 0
        %3309 = vmatpush1.bf16.msra.mxu0 %v3306
        %3310 = vmatprep.subr.bf16.mxu0 0
        %3311 = vmatpush1.bf16.msra.mxu0 0
        %3312 = vmatprep.subr.bf16.mxu0 0
        %3313 = vmatpush1.bf16.msra.mxu0 0
        %3314 = vmatprep.subr.bf16.mxu0 0
        %3315 = vmatpush1.bf16.msra.mxu0 0
        %3316 = vmatprep.subr.bf16.mxu0 0
        %3317 = vmatpush1.bf16.msra.mxu0 0
        %3318 = vmatprep.subr.bf16.mxu0 0
        %3319 = vmatpush1.bf16.msra.mxu0 0
        %3320 = vmatprep.subr.bf16.mxu0 0
        %3321 = vmatpush1.bf16.msra.mxu0 0
        %3322 = vmatprep.subr.bf16.mxu0 0
        %3323 = vmatpush1.bf16.msra.mxu0 0
        %3324 = vmatprep.subr.bf16.mxu0 0
        %3325 = vmatpush1.bf16.msra.mxu0 0
        %3326 = vmatprep.subr.bf16.mxu0 0
        %3327 = vmatpush1.bf16.msra.mxu0 0
        %3328 = vmatprep.subr.bf16.mxu0 0
        %3329 = vmatpush1.bf16.msra.mxu0 0
        %3330 = vmatprep.subr.bf16.mxu0 0
        %3331 = vmatpush1.bf16.msra.mxu0 0
        %3332 = vmatprep.subr.bf16.mxu0 0
        %3333 = vmatpush1.bf16.msra.mxu0 0
        %3334 = vmatprep.subr.bf16.mxu0 0
        %3335 = vmatpush1.bf16.msra.mxu0 0
        %3336 = vmatprep.subr.bf16.mxu0 0
        %3337 = vmatpush1.bf16.msra.mxu0 0
        %3338 = vmatprep.subr.bf16.mxu0 0
        %3339 = vmatpush1.bf16.msra.mxu0 0
        %3340 = vmatprep.mubr.bf16.mxu0 0
        %3341 = vmatmul.mubr.bf16.gmra.mrb[0].mxu0 %v3303
        %v3342 = vpop.f32.mrb[0].mxu0
        %v3343 = vadd.f32 0.0, %v3342
        %v3344 = vpop.f32.mrb[0].mxu0
        %v3345 = vpop.f32.mrb[0].mxu0
        %v3346 = vpop.f32.mrb[0].mxu0
        %3347 = vdwg.mxu0
        %3348 = vrot.lane.b32.xlu0 %v952, 64
        %v3349 = vpop.permute.xlu0 %3348
        %v3351 = vsel %vm981, %v3033, 0
        %v3354 = vsel %vm3064, %v3349, 0
        %3356 = vmatprep.subr.bf16.mxu0 0
        %3357 = vmatpush1.bf16.msra.mxu0 %v3354
        %3358 = vmatprep.subr.bf16.mxu0 0
        %3359 = vmatpush1.bf16.msra.mxu0 0
        %3360 = vmatprep.subr.bf16.mxu0 0
        %3361 = vmatpush1.bf16.msra.mxu0 0
        %3362 = vmatprep.subr.bf16.mxu0 0
        %3363 = vmatpush1.bf16.msra.mxu0 0
        %3364 = vmatprep.subr.bf16.mxu0 0
        %3365 = vmatpush1.bf16.msra.mxu0 0
        %3366 = vmatprep.subr.bf16.mxu0 0
        %3367 = vmatpush1.bf16.msra.mxu0 0
        %3368 = vmatprep.subr.bf16.mxu0 0
        %3369 = vmatpush1.bf16.msra.mxu0 0
        %3370 = vmatprep.subr.bf16.mxu0 0
        %3371 = vmatpush1.bf16.msra.mxu0 0
        %3372 = vmatprep.subr.bf16.mxu0 0
        %3373 = vmatpush1.bf16.msra.mxu0 0
        %3374 = vmatprep.subr.bf16.mxu0 0
        %3375 = vmatpush1.bf16.msra.mxu0 0
        %3376 = vmatprep.subr.bf16.mxu0 0
        %3377 = vmatpush1.bf16.msra.mxu0 0
        %3378 = vmatprep.subr.bf16.mxu0 0
        %3379 = vmatpush1.bf16.msra.mxu0 0
        %3380 = vmatprep.subr.bf16.mxu0 0
        %3381 = vmatpush1.bf16.msra.mxu0 0
        %3382 = vmatprep.subr.bf16.mxu0 0
        %3383 = vmatpush1.bf16.msra.mxu0 0
        %3384 = vmatprep.subr.bf16.mxu0 0
        %3385 = vmatpush1.bf16.msra.mxu0 0
        %3386 = vmatprep.subr.bf16.mxu0 0
        %3387 = vmatpush1.bf16.msra.mxu0 0
        %3388 = vmatprep.mubr.bf16.mxu0 0
        %3389 = vmatmul.mubr.bf16.gmra.mrb[0].mxu0 %v3351
        %v3390 = vpop.f32.mrb[0].mxu0
        %v3391 = vadd.f32 0.0, %v3390
        %v3392 = vpop.f32.mrb[0].mxu0
        %v3393 = vpop.f32.mrb[0].mxu0
        %v3394 = vpop.f32.mrb[0].mxu0
        %3395 = vdwg.mxu0
        %3396 = vrot.lane.b32.xlu0 %v953, 64
        %v3397 = vpop.permute.xlu0 %3396
        %v3399 = vsel %vm981, %v3034, 0
        %v3402 = vsel %vm3064, %v3397, 0
        %3404 = vmatprep.subr.bf16.mxu0 0
        %3405 = vmatpush1.bf16.msra.mxu0 %v3402
        %3406 = vmatprep.subr.bf16.mxu0 0
        %3407 = vmatpush1.bf16.msra.mxu0 0
        %3408 = vmatprep.subr.bf16.mxu0 0
        %3409 = vmatpush1.bf16.msra.mxu0 0
        %3410 = vmatprep.subr.bf16.mxu0 0
        %3411 = vmatpush1.bf16.msra.mxu0 0
        %3412 = vmatprep.subr.bf16.mxu0 0
        %3413 = vmatpush1.bf16.msra.mxu0 0
        %3414 = vmatprep.subr.bf16.mxu0 0
        %3415 = vmatpush1.bf16.msra.mxu0 0
        %3416 = vmatprep.subr.bf16.mxu0 0
        %3417 = vmatpush1.bf16.msra.mxu0 0
        %3418 = vmatprep.subr.bf16.mxu0 0
        %3419 = vmatpush1.bf16.msra.mxu0 0
        %3420 = vmatprep.subr.bf16.mxu0 0
        %3421 = vmatpush1.bf16.msra.mxu0 0
        %3422 = vmatprep.subr.bf16.mxu0 0
        %3423 = vmatpush1.bf16.msra.mxu0 0
        %3424 = vmatprep.subr.bf16.mxu0 0
        %3425 = vmatpush1.bf16.msra.mxu0 0
        %3426 = vmatprep.subr.bf16.mxu0 0
        %3427 = vmatpush1.bf16.msra.mxu0 0
        %3428 = vmatprep.subr.bf16.mxu0 0
        %3429 = vmatpush1.bf16.msra.mxu0 0
        %3430 = vmatprep.subr.bf16.mxu0 0
        %3431 = vmatpush1.bf16.msra.mxu0 0
        %3432 = vmatprep.subr.bf16.mxu0 0
        %3433 = vmatpush1.bf16.msra.mxu0 0
        %3434 = vmatprep.subr.bf16.mxu0 0
        %3435 = vmatpush1.bf16.msra.mxu0 0
        %3436 = vmatprep.mubr.bf16.mxu0 0
        %3437 = vmatmul.mubr.bf16.gmra.mrb[0].mxu0 %v3399
        %v3438 = vpop.f32.mrb[0].mxu0
        %v3439 = vadd.f32 0.0, %v3438
        %v3440 = vpop.f32.mrb[0].mxu0
        %v3441 = vpop.f32.mrb[0].mxu0
        %v3442 = vpop.f32.mrb[0].mxu0
        %3443 = vdwg.mxu0
        %3444 = vrot.lane.b32.xlu0 %v954, 64
        %v3445 = vpop.permute.xlu0 %3444
        %v3447 = vsel %vm981, %v3035, 0
        %v3450 = vsel %vm3064, %v3445, 0
        %3452 = vmatprep.subr.bf16.mxu0 0
        %3453 = vmatpush1.bf16.msra.mxu0 %v3450
        %3454 = vmatprep.subr.bf16.mxu0 0
        %3455 = vmatpush1.bf16.msra.mxu0 0
        %3456 = vmatprep.subr.bf16.mxu0 0
        %3457 = vmatpush1.bf16.msra.mxu0 0
        %3458 = vmatprep.subr.bf16.mxu0 0
        %3459 = vmatpush1.bf16.msra.mxu0 0
        %3460 = vmatprep.subr.bf16.mxu0 0
        %3461 = vmatpush1.bf16.msra.mxu0 0
        %3462 = vmatprep.subr.bf16.mxu0 0
        %3463 = vmatpush1.bf16.msra.mxu0 0
        %3464 = vmatprep.subr.bf16.mxu0 0
        %3465 = vmatpush1.bf16.msra.mxu0 0
        %3466 = vmatprep.subr.bf16.mxu0 0
        %3467 = vmatpush1.bf16.msra.mxu0 0
        %3468 = vmatprep.subr.bf16.mxu0 0
        %3469 = vmatpush1.bf16.msra.mxu0 0
        %3470 = vmatprep.subr.bf16.mxu0 0
        %3471 = vmatpush1.bf16.msra.mxu0 0
        %3472 = vmatprep.subr.bf16.mxu0 0
        %3473 = vmatpush1.bf16.msra.mxu0 0
        %3474 = vmatprep.subr.bf16.mxu0 0
        %3475 = vmatpush1.bf16.msra.mxu0 0
        %3476 = vmatprep.subr.bf16.mxu0 0
        %3477 = vmatpush1.bf16.msra.mxu0 0
        %3478 = vmatprep.subr.bf16.mxu0 0
        %3479 = vmatpush1.bf16.msra.mxu0 0
        %3480 = vmatprep.subr.bf16.mxu0 0
        %3481 = vmatpush1.bf16.msra.mxu0 0
        %3482 = vmatprep.subr.bf16.mxu0 0
        %3483 = vmatpush1.bf16.msra.mxu0 0
        %3484 = vmatprep.mubr.bf16.mxu0 0
        %3485 = vmatmul.mubr.bf16.gmra.mrb[0].mxu0 %v3447
        %v3486 = vpop.f32.mrb[0].mxu0
        %v3487 = vadd.f32 0.0, %v3486
        %v3488 = vpop.f32.mrb[0].mxu0
        %v3489 = vpop.f32.mrb[0].mxu0
        %v3490 = vpop.f32.mrb[0].mxu0
        %3491 = vdwg.mxu0
        %3492 = vrot.lane.b32.xlu0 %v955, 64
        %v3493 = vpop.permute.xlu0 %3492
        %v3495 = vsel %vm981, %v3036, 0
        %v3498 = vsel %vm3064, %v3493, 0
        %3500 = vmatprep.subr.bf16.mxu0 0
        %3501 = vmatpush1.bf16.msra.mxu0 %v3498
        %3502 = vmatprep.subr.bf16.mxu0 0
        %3503 = vmatpush1.bf16.msra.mxu0 0
        %3504 = vmatprep.subr.bf16.mxu0 0
        %3505 = vmatpush1.bf16.msra.mxu0 0
        %3506 = vmatprep.subr.bf16.mxu0 0
        %3507 = vmatpush1.bf16.msra.mxu0 0
        %3508 = vmatprep.subr.bf16.mxu0 0
        %3509 = vmatpush1.bf16.msra.mxu0 0
        %3510 = vmatprep.subr.bf16.mxu0 0
        %3511 = vmatpush1.bf16.msra.mxu0 0
        %3512 = vmatprep.subr.bf16.mxu0 0
        %3513 = vmatpush1.bf16.msra.mxu0 0
        %3514 = vmatprep.subr.bf16.mxu0 0
        %3515 = vmatpush1.bf16.msra.mxu0 0
        %3516 = vmatprep.subr.bf16.mxu0 0
        %3517 = vmatpush1.bf16.msra.mxu0 0
        %3518 = vmatprep.subr.bf16.mxu0 0
        %3519 = vmatpush1.bf16.msra.mxu0 0
        %3520 = vmatprep.subr.bf16.mxu0 0
        %3521 = vmatpush1.bf16.msra.mxu0 0
        %3522 = vmatprep.subr.bf16.mxu0 0
        %3523 = vmatpush1.bf16.msra.mxu0 0
        %3524 = vmatprep.subr.bf16.mxu0 0
        %3525 = vmatpush1.bf16.msra.mxu0 0
        %3526 = vmatprep.subr.bf16.mxu0 0
        %3527 = vmatpush1.bf16.msra.mxu0 0
        %3528 = vmatprep.subr.bf16.mxu0 0
        %3529 = vmatpush1.bf16.msra.mxu0 0
        %3530 = vmatprep.subr.bf16.mxu0 0
        %3531 = vmatpush1.bf16.msra.mxu0 0
        %3532 = vmatprep.mubr.bf16.mxu0 0
        %3533 = vmatmul.mubr.bf16.gmra.mrb[0].mxu0 %v3495
        %v3534 = vpop.f32.mrb[0].mxu0
        %v3535 = vadd.f32 0.0, %v3534
        %v3536 = vpop.f32.mrb[0].mxu0
        %v3537 = vpop.f32.mrb[0].mxu0
        %v3538 = vpop.f32.mrb[0].mxu0
        %3539 = vdwg.mxu0
        %3540 = vrot.lane.b32.xlu0 %v956, 64
        %v3541 = vpop.permute.xlu0 %3540
        %v3543 = vsel %vm981, %v3037, 0
        %v3546 = vsel %vm3064, %v3541, 0
        %3548 = vmatprep.subr.bf16.mxu0 0
        %3549 = vmatpush1.bf16.msra.mxu0 %v3546
        %3550 = vmatprep.subr.bf16.mxu0 0
        %3551 = vmatpush1.bf16.msra.mxu0 0
        %3552 = vmatprep.subr.bf16.mxu0 0
        %3553 = vmatpush1.bf16.msra.mxu0 0
        %3554 = vmatprep.subr.bf16.mxu0 0
        %3555 = vmatpush1.bf16.msra.mxu0 0
        %3556 = vmatprep.subr.bf16.mxu0 0
        %3557 = vmatpush1.bf16.msra.mxu0 0
        %3558 = vmatprep.subr.bf16.mxu0 0
        %3559 = vmatpush1.bf16.msra.mxu0 0
        %3560 = vmatprep.subr.bf16.mxu0 0
        %3561 = vmatpush1.bf16.msra.mxu0 0
        %3562 = vmatprep.subr.bf16.mxu0 0
        %3563 = vmatpush1.bf16.msra.mxu0 0
        %3564 = vmatprep.subr.bf16.mxu0 0
        %3565 = vmatpush1.bf16.msra.mxu0 0
        %3566 = vmatprep.subr.bf16.mxu0 0
        %3567 = vmatpush1.bf16.msra.mxu0 0
        %3568 = vmatprep.subr.bf16.mxu0 0
        %3569 = vmatpush1.bf16.msra.mxu0 0
        %3570 = vmatprep.subr.bf16.mxu0 0
        %3571 = vmatpush1.bf16.msra.mxu0 0
        %3572 = vmatprep.subr.bf16.mxu0 0
        %3573 = vmatpush1.bf16.msra.mxu0 0
        %3574 = vmatprep.subr.bf16.mxu0 0
        %3575 = vmatpush1.bf16.msra.mxu0 0
        %3576 = vmatprep.subr.bf16.mxu0 0
        %3577 = vmatpush1.bf16.msra.mxu0 0
        %3578 = vmatprep.subr.bf16.mxu0 0
        %3579 = vmatpush1.bf16.msra.mxu0 0
        %3580 = vmatprep.mubr.bf16.mxu0 0
        %3581 = vmatmul.mubr.bf16.gmra.mrb[0].mxu0 %v3543
        %v3582 = vpop.f32.mrb[0].mxu0
        %v3583 = vadd.f32 0.0, %v3582
        %v3584 = vpop.f32.mrb[0].mxu0
        %v3585 = vpop.f32.mrb[0].mxu0
        %v3586 = vpop.f32.mrb[0].mxu0
        %3587 = vdwg.mxu0
        %3588 = vrot.lane.b32.xlu0 %v957, 64
        %v3589 = vpop.permute.xlu0 %3588
        %v3591 = vsel %vm981, %v3038, 0
        %v3594 = vsel %vm3064, %v3589, 0
        %3596 = vmatprep.subr.bf16.mxu0 0
        %3597 = vmatpush1.bf16.msra.mxu0 %v3594
        %3598 = vmatprep.subr.bf16.mxu0 0
        %3599 = vmatpush1.bf16.msra.mxu0 0
        %3600 = vmatprep.subr.bf16.mxu0 0
        %3601 = vmatpush1.bf16.msra.mxu0 0
        %3602 = vmatprep.subr.bf16.mxu0 0
        %3603 = vmatpush1.bf16.msra.mxu0 0
        %3604 = vmatprep.subr.bf16.mxu0 0
        %3605 = vmatpush1.bf16.msra.mxu0 0
        %3606 = vmatprep.subr.bf16.mxu0 0
        %3607 = vmatpush1.bf16.msra.mxu0 0
        %3608 = vmatprep.subr.bf16.mxu0 0
        %3609 = vmatpush1.bf16.msra.mxu0 0
        %3610 = vmatprep.subr.bf16.mxu0 0
        %3611 = vmatpush1.bf16.msra.mxu0 0
        %3612 = vmatprep.subr.bf16.mxu0 0
        %3613 = vmatpush1.bf16.msra.mxu0 0
        %3614 = vmatprep.subr.bf16.mxu0 0
        %3615 = vmatpush1.bf16.msra.mxu0 0
        %3616 = vmatprep.subr.bf16.mxu0 0
        %3617 = vmatpush1.bf16.msra.mxu0 0
        %3618 = vmatprep.subr.bf16.mxu0 0
        %3619 = vmatpush1.bf16.msra.mxu0 0
        %3620 = vmatprep.subr.bf16.mxu0 0
        %3621 = vmatpush1.bf16.msra.mxu0 0
        %3622 = vmatprep.subr.bf16.mxu0 0
        %3623 = vmatpush1.bf16.msra.mxu0 0
        %3624 = vmatprep.subr.bf16.mxu0 0
        %3625 = vmatpush1.bf16.msra.mxu0 0
        %3626 = vmatprep.subr.bf16.mxu0 0
        %3627 = vmatpush1.bf16.msra.mxu0 0
        %3628 = vmatprep.mubr.bf16.mxu0 0
        %3629 = vmatmul.mubr.bf16.gmra.mrb[0].mxu0 %v3591
        %v3630 = vpop.f32.mrb[0].mxu0
        %v3631 = vadd.f32 0.0, %v3630
        %v3632 = vpop.f32.mrb[0].mxu0
        %v3633 = vpop.f32.mrb[0].mxu0
        %v3634 = vpop.f32.mrb[0].mxu0
        %3635 = vdwg.mxu0
        %3636 = vrot.lane.b32.xlu0 %v958, 64
        %v3637 = vpop.permute.xlu0 %3636
        %v3639 = vsel %vm981, %v3039, 0
        %v3642 = vsel %vm3064, %v3637, 0
        %3644 = vmatprep.subr.bf16.mxu0 0
        %3645 = vmatpush1.bf16.msra.mxu0 %v3642
        %3646 = vmatprep.subr.bf16.mxu0 0
        %3647 = vmatpush1.bf16.msra.mxu0 0
        %3648 = vmatprep.subr.bf16.mxu0 0
        %3649 = vmatpush1.bf16.msra.mxu0 0
        %3650 = vmatprep.subr.bf16.mxu0 0
        %3651 = vmatpush1.bf16.msra.mxu0 0
        %3652 = vmatprep.subr.bf16.mxu0 0
        %3653 = vmatpush1.bf16.msra.mxu0 0
        %3654 = vmatprep.subr.bf16.mxu0 0
        %3655 = vmatpush1.bf16.msra.mxu0 0
        %3656 = vmatprep.subr.bf16.mxu0 0
        %3657 = vmatpush1.bf16.msra.mxu0 0
        %3658 = vmatprep.subr.bf16.mxu0 0
        %3659 = vmatpush1.bf16.msra.mxu0 0
        %3660 = vmatprep.subr.bf16.mxu0 0
        %3661 = vmatpush1.bf16.msra.mxu0 0
        %3662 = vmatprep.subr.bf16.mxu0 0
        %3663 = vmatpush1.bf16.msra.mxu0 0
        %3664 = vmatprep.subr.bf16.mxu0 0
        %3665 = vmatpush1.bf16.msra.mxu0 0
        %3666 = vmatprep.subr.bf16.mxu0 0
        %3667 = vmatpush1.bf16.msra.mxu0 0
        %3668 = vmatprep.subr.bf16.mxu0 0
        %3669 = vmatpush1.bf16.msra.mxu0 0
        %3670 = vmatprep.subr.bf16.mxu0 0
        %3671 = vmatpush1.bf16.msra.mxu0 0
        %3672 = vmatprep.subr.bf16.mxu0 0
        %3673 = vmatpush1.bf16.msra.mxu0 0
        %3674 = vmatprep.subr.bf16.mxu0 0
        %3675 = vmatpush1.bf16.msra.mxu0 0
        %3676 = vmatprep.mubr.bf16.mxu0 0
        %3677 = vmatmul.mubr.bf16.gmra.mrb[0].mxu0 %v3639
        %v3678 = vpop.f32.mrb[0].mxu0
        %v3679 = vadd.f32 0.0, %v3678
        %v3680 = vpop.f32.mrb[0].mxu0
        %v3681 = vpop.f32.mrb[0].mxu0
        %v3682 = vpop.f32.mrb[0].mxu0
        %3683 = vdwg.mxu0
        %3684 = vrot.lane.b32.xlu0 %v959, 64
        %v3685 = vpop.permute.xlu0 %3684
        %v3687 = vsel %vm981, %v3040, 0
        %v3690 = vsel %vm3064, %v3685, 0
        %3692 = vmatprep.subr.bf16.mxu0 0
        %3693 = vmatpush1.bf16.msra.mxu0 %v3690
        %3694 = vmatprep.subr.bf16.mxu0 0
        %3695 = vmatpush1.bf16.msra.mxu0 0
        %3696 = vmatprep.subr.bf16.mxu0 0
        %3697 = vmatpush1.bf16.msra.mxu0 0
        %3698 = vmatprep.subr.bf16.mxu0 0
        %3699 = vmatpush1.bf16.msra.mxu0 0
        %3700 = vmatprep.subr.bf16.mxu0 0
        %3701 = vmatpush1.bf16.msra.mxu0 0
        %3702 = vmatprep.subr.bf16.mxu0 0
        %3703 = vmatpush1.bf16.msra.mxu0 0
        %3704 = vmatprep.subr.bf16.mxu0 0
        %3705 = vmatpush1.bf16.msra.mxu0 0
        %3706 = vmatprep.subr.bf16.mxu0 0
        %3707 = vmatpush1.bf16.msra.mxu0 0
        %3708 = vmatprep.subr.bf16.mxu0 0
        %3709 = vmatpush1.bf16.msra.mxu0 0
        %3710 = vmatprep.subr.bf16.mxu0 0
        %3711 = vmatpush1.bf16.msra.mxu0 0
        %3712 = vmatprep.subr.bf16.mxu0 0
        %3713 = vmatpush1.bf16.msra.mxu0 0
        %3714 = vmatprep.subr.bf16.mxu0 0
        %3715 = vmatpush1.bf16.msra.mxu0 0
        %3716 = vmatprep.subr.bf16.mxu0 0
        %3717 = vmatpush1.bf16.msra.mxu0 0
        %3718 = vmatprep.subr.bf16.mxu0 0
        %3719 = vmatpush1.bf16.msra.mxu0 0
        %3720 = vmatprep.subr.bf16.mxu0 0
        %3721 = vmatpush1.bf16.msra.mxu0 0
        %3722 = vmatprep.subr.bf16.mxu0 0
        %3723 = vmatpush1.bf16.msra.mxu0 0
        %3724 = vmatprep.mubr.bf16.mxu0 0
        %3725 = vmatmul.mubr.bf16.gmra.mrb[0].mxu0 %v3687
        %v3726 = vpop.f32.mrb[0].mxu0
        %v3727 = vadd.f32 0.0, %v3726
        %v3728 = vpop.f32.mrb[0].mxu0
        %v3729 = vpop.f32.mrb[0].mxu0
        %v3730 = vpop.f32.mrb[0].mxu0
        %3731 = vdwg.mxu0
        %3732 = vrot.lane.b32.xlu0 %v960, 64
        %v3733 = vpop.permute.xlu0 %3732
        %v3735 = vsel %vm981, %v3041, 0
        %v3738 = vsel %vm3064, %v3733, 0
        %3740 = vmatprep.subr.bf16.mxu0 0
        %3741 = vmatpush1.bf16.msra.mxu0 %v3738
        %3742 = vmatprep.subr.bf16.mxu0 0
        %3743 = vmatpush1.bf16.msra.mxu0 0
        %3744 = vmatprep.subr.bf16.mxu0 0
        %3745 = vmatpush1.bf16.msra.mxu0 0
        %3746 = vmatprep.subr.bf16.mxu0 0
        %3747 = vmatpush1.bf16.msra.mxu0 0
        %3748 = vmatprep.subr.bf16.mxu0 0
        %3749 = vmatpush1.bf16.msra.mxu0 0
        %3750 = vmatprep.subr.bf16.mxu0 0
        %3751 = vmatpush1.bf16.msra.mxu0 0
        %3752 = vmatprep.subr.bf16.mxu0 0
        %3753 = vmatpush1.bf16.msra.mxu0 0
        %3754 = vmatprep.subr.bf16.mxu0 0
        %3755 = vmatpush1.bf16.msra.mxu0 0
        %3756 = vmatprep.subr.bf16.mxu0 0
        %3757 = vmatpush1.bf16.msra.mxu0 0
        %3758 = vmatprep.subr.bf16.mxu0 0
        %3759 = vmatpush1.bf16.msra.mxu0 0
        %3760 = vmatprep.subr.bf16.mxu0 0
        %3761 = vmatpush1.bf16.msra.mxu0 0
        %3762 = vmatprep.subr.bf16.mxu0 0
        %3763 = vmatpush1.bf16.msra.mxu0 0
        %3764 = vmatprep.subr.bf16.mxu0 0
        %3765 = vmatpush1.bf16.msra.mxu0 0
        %3766 = vmatprep.subr.bf16.mxu0 0
        %3767 = vmatpush1.bf16.msra.mxu0 0
        %3768 = vmatprep.subr.bf16.mxu0 0
        %3769 = vmatpush1.bf16.msra.mxu0 0
        %3770 = vmatprep.subr.bf16.mxu0 0
        %3771 = vmatpush1.bf16.msra.mxu0 0
        %3772 = vmatprep.mubr.bf16.mxu0 0
        %3773 = vmatmul.mubr.bf16.gmra.mrb[0].mxu0 %v3735
        %v3774 = vpop.f32.mrb[0].mxu0
        %v3775 = vadd.f32 0.0, %v3774
        %v3776 = vpop.f32.mrb[0].mxu0
        %v3777 = vpop.f32.mrb[0].mxu0
        %v3778 = vpop.f32.mrb[0].mxu0
        %3779 = vdwg.mxu0
        %3780 = vrot.lane.b32.xlu0 %v961, 64
        %v3781 = vpop.permute.xlu0 %3780
        %v3783 = vsel %vm981, %v3042, 0
        %v3786 = vsel %vm3064, %v3781, 0
        %3788 = vmatprep.subr.bf16.mxu0 0
        %3789 = vmatpush1.bf16.msra.mxu0 %v3786
        %3790 = vmatprep.subr.bf16.mxu0 0
        %3791 = vmatpush1.bf16.msra.mxu0 0
        %3792 = vmatprep.subr.bf16.mxu0 0
        %3793 = vmatpush1.bf16.msra.mxu0 0
        %3794 = vmatprep.subr.bf16.mxu0 0
        %3795 = vmatpush1.bf16.msra.mxu0 0
        %3796 = vmatprep.subr.bf16.mxu0 0
        %3797 = vmatpush1.bf16.msra.mxu0 0
        %3798 = vmatprep.subr.bf16.mxu0 0
        %3799 = vmatpush1.bf16.msra.mxu0 0
        %3800 = vmatprep.subr.bf16.mxu0 0
        %3801 = vmatpush1.bf16.msra.mxu0 0
        %3802 = vmatprep.subr.bf16.mxu0 0
        %3803 = vmatpush1.bf16.msra.mxu0 0
        %3804 = vmatprep.subr.bf16.mxu0 0
        %3805 = vmatpush1.bf16.msra.mxu0 0
        %3806 = vmatprep.subr.bf16.mxu0 0
        %3807 = vmatpush1.bf16.msra.mxu0 0
        %3808 = vmatprep.subr.bf16.mxu0 0
        %3809 = vmatpush1.bf16.msra.mxu0 0
        %3810 = vmatprep.subr.bf16.mxu0 0
        %3811 = vmatpush1.bf16.msra.mxu0 0
        %3812 = vmatprep.subr.bf16.mxu0 0
        %3813 = vmatpush1.bf16.msra.mxu0 0
        %3814 = vmatprep.subr.bf16.mxu0 0
        %3815 = vmatpush1.bf16.msra.mxu0 0
        %3816 = vmatprep.subr.bf16.mxu0 0
        %3817 = vmatpush1.bf16.msra.mxu0 0
        %3818 = vmatprep.subr.bf16.mxu0 0
        %3819 = vmatpush1.bf16.msra.mxu0 0
        %3820 = vmatprep.mubr.bf16.mxu0 0
        %3821 = vmatmul.mubr.bf16.gmra.mrb[0].mxu0 %v3783
        %v3822 = vpop.f32.mrb[0].mxu0
        %v3823 = vadd.f32 0.0, %v3822
        %v3824 = vpop.f32.mrb[0].mxu0
        %v3825 = vpop.f32.mrb[0].mxu0
        %v3826 = vpop.f32.mrb[0].mxu0
        %3827 = vdwg.mxu0
        %3828 = vrot.lane.b32.xlu0 %v962, 64
        %v3829 = vpop.permute.xlu0 %3828
        %v3831 = vsel %vm981, %v3043, 0
        %v3834 = vsel %vm3064, %v3829, 0
        %3836 = vmatprep.subr.bf16.mxu0 0
        %3837 = vmatpush1.bf16.msra.mxu0 %v3834
        %3838 = vmatprep.subr.bf16.mxu0 0
        %3839 = vmatpush1.bf16.msra.mxu0 0
        %3840 = vmatprep.subr.bf16.mxu0 0
        %3841 = vmatpush1.bf16.msra.mxu0 0
        %3842 = vmatprep.subr.bf16.mxu0 0
        %3843 = vmatpush1.bf16.msra.mxu0 0
        %3844 = vmatprep.subr.bf16.mxu0 0
        %3845 = vmatpush1.bf16.msra.mxu0 0
        %3846 = vmatprep.subr.bf16.mxu0 0
        %3847 = vmatpush1.bf16.msra.mxu0 0
        %3848 = vmatprep.subr.bf16.mxu0 0
        %3849 = vmatpush1.bf16.msra.mxu0 0
        %3850 = vmatprep.subr.bf16.mxu0 0
        %3851 = vmatpush1.bf16.msra.mxu0 0
        %3852 = vmatprep.subr.bf16.mxu0 0
        %3853 = vmatpush1.bf16.msra.mxu0 0
        %3854 = vmatprep.subr.bf16.mxu0 0
        %3855 = vmatpush1.bf16.msra.mxu0 0
        %3856 = vmatprep.subr.bf16.mxu0 0
        %3857 = vmatpush1.bf16.msra.mxu0 0
        %3858 = vmatprep.subr.bf16.mxu0 0
        %3859 = vmatpush1.bf16.msra.mxu0 0
        %3860 = vmatprep.subr.bf16.mxu0 0
        %3861 = vmatpush1.bf16.msra.mxu0 0
        %3862 = vmatprep.subr.bf16.mxu0 0
        %3863 = vmatpush1.bf16.msra.mxu0 0
        %3864 = vmatprep.subr.bf16.mxu0 0
        %3865 = vmatpush1.bf16.msra.mxu0 0
        %3866 = vmatprep.subr.bf16.mxu0 0
        %3867 = vmatpush1.bf16.msra.mxu0 0
        %3868 = vmatprep.mubr.bf16.mxu0 0
        %3869 = vmatmul.mubr.bf16.gmra.mrb[0].mxu0 %v3831
        %v3870 = vpop.f32.mrb[0].mxu0
        %v3871 = vadd.f32 0.0, %v3870
        %v3872 = vpop.f32.mrb[0].mxu0
        %v3873 = vpop.f32.mrb[0].mxu0
        %v3874 = vpop.f32.mrb[0].mxu0
        %3875 = vdwg.mxu0
        %3876 = vrot.lane.b32.xlu0 %v963, 64
        %v3877 = vpop.permute.xlu0 %3876
        %v3879 = vsel %vm981, %v3044, 0
        %v3882 = vsel %vm3064, %v3877, 0
        %3884 = vmatprep.subr.bf16.mxu0 0
        %3885 = vmatpush1.bf16.msra.mxu0 %v3882
        %3886 = vmatprep.subr.bf16.mxu0 0
        %3887 = vmatpush1.bf16.msra.mxu0 0
        %3888 = vmatprep.subr.bf16.mxu0 0
        %3889 = vmatpush1.bf16.msra.mxu0 0
        %3890 = vmatprep.subr.bf16.mxu0 0
        %3891 = vmatpush1.bf16.msra.mxu0 0
        %3892 = vmatprep.subr.bf16.mxu0 0
        %3893 = vmatpush1.bf16.msra.mxu0 0
        %3894 = vmatprep.subr.bf16.mxu0 0
        %3895 = vmatpush1.bf16.msra.mxu0 0
        %3896 = vmatprep.subr.bf16.mxu0 0
        %3897 = vmatpush1.bf16.msra.mxu0 0
        %3898 = vmatprep.subr.bf16.mxu0 0
        %3899 = vmatpush1.bf16.msra.mxu0 0
        %3900 = vmatprep.subr.bf16.mxu0 0
        %3901 = vmatpush1.bf16.msra.mxu0 0
        %3902 = vmatprep.subr.bf16.mxu0 0
        %3903 = vmatpush1.bf16.msra.mxu0 0
        %3904 = vmatprep.subr.bf16.mxu0 0
        %3905 = vmatpush1.bf16.msra.mxu0 0
        %3906 = vmatprep.subr.bf16.mxu0 0
        %3907 = vmatpush1.bf16.msra.mxu0 0
        %3908 = vmatprep.subr.bf16.mxu0 0
        %3909 = vmatpush1.bf16.msra.mxu0 0
        %3910 = vmatprep.subr.bf16.mxu0 0
        %3911 = vmatpush1.bf16.msra.mxu0 0
        %3912 = vmatprep.subr.bf16.mxu0 0
        %3913 = vmatpush1.bf16.msra.mxu0 0
        %3914 = vmatprep.subr.bf16.mxu0 0
        %3915 = vmatpush1.bf16.msra.mxu0 0
        %3916 = vmatprep.mubr.bf16.mxu0 0
        %3917 = vmatmul.mubr.bf16.gmra.mrb[0].mxu0 %v3879
        %v3918 = vpop.f32.mrb[0].mxu0
        %v3919 = vadd.f32 0.0, %v3918
        %v3920 = vpop.f32.mrb[0].mxu0
        %v3921 = vpop.f32.mrb[0].mxu0
        %v3922 = vpop.f32.mrb[0].mxu0
        %3923 = vdwg.mxu0
        %3924 = vrot.lane.b32.xlu0 %v964, 64
        %v3925 = vpop.permute.xlu0 %3924
        %v3927 = vsel %vm981, %v3045, 0
        %v3930 = vsel %vm3064, %v3925, 0
        %3932 = vmatprep.subr.bf16.mxu0 0
        %3933 = vmatpush1.bf16.msra.mxu0 %v3930
        %3934 = vmatprep.subr.bf16.mxu0 0
        %3935 = vmatpush1.bf16.msra.mxu0 0
        %3936 = vmatprep.subr.bf16.mxu0 0
        %3937 = vmatpush1.bf16.msra.mxu0 0
        %3938 = vmatprep.subr.bf16.mxu0 0
        %3939 = vmatpush1.bf16.msra.mxu0 0
        %3940 = vmatprep.subr.bf16.mxu0 0
        %3941 = vmatpush1.bf16.msra.mxu0 0
        %3942 = vmatprep.subr.bf16.mxu0 0
        %3943 = vmatpush1.bf16.msra.mxu0 0
        %3944 = vmatprep.subr.bf16.mxu0 0
        %3945 = vmatpush1.bf16.msra.mxu0 0
        %3946 = vmatprep.subr.bf16.mxu0 0
        %3947 = vmatpush1.bf16.msra.mxu0 0
        %3948 = vmatprep.subr.bf16.mxu0 0
        %3949 = vmatpush1.bf16.msra.mxu0 0
        %3950 = vmatprep.subr.bf16.mxu0 0
        %3951 = vmatpush1.bf16.msra.mxu0 0
        %3952 = vmatprep.subr.bf16.mxu0 0
        %3953 = vmatpush1.bf16.msra.mxu0 0
        %3954 = vmatprep.subr.bf16.mxu0 0
        %3955 = vmatpush1.bf16.msra.mxu0 0
        %3956 = vmatprep.subr.bf16.mxu0 0
        %3957 = vmatpush1.bf16.msra.mxu0 0
        %3958 = vmatprep.subr.bf16.mxu0 0
        %3959 = vmatpush1.bf16.msra.mxu0 0
        %3960 = vmatprep.subr.bf16.mxu0 0
        %3961 = vmatpush1.bf16.msra.mxu0 0
        %3962 = vmatprep.subr.bf16.mxu0 0
        %3963 = vmatpush1.bf16.msra.mxu0 0
        %3964 = vmatprep.mubr.bf16.mxu0 0
        %3965 = vmatmul.mubr.bf16.gmra.mrb[0].mxu0 %v3927
        %v3966 = vpop.f32.mrb[0].mxu0
        %v3967 = vadd.f32 0.0, %v3966
        %v3968 = vpop.f32.mrb[0].mxu0
        %v3969 = vpop.f32.mrb[0].mxu0
        %v3970 = vpop.f32.mrb[0].mxu0
        %3971 = vdwg.mxu0
        %3972 = vrot.lane.b32.xlu0 %v965, 64
        %v3973 = vpop.permute.xlu0 %3972
        %v3975 = vsel %vm981, %v3046, 0
        %v3978 = vsel %vm3064, %v3973, 0
        %3980 = vmatprep.subr.bf16.mxu0 0
        %3981 = vmatpush1.bf16.msra.mxu0 %v3978
        %3982 = vmatprep.subr.bf16.mxu0 0
        %3983 = vmatpush1.bf16.msra.mxu0 0
        %3984 = vmatprep.subr.bf16.mxu0 0
        %3985 = vmatpush1.bf16.msra.mxu0 0
        %3986 = vmatprep.subr.bf16.mxu0 0
        %3987 = vmatpush1.bf16.msra.mxu0 0
        %3988 = vmatprep.subr.bf16.mxu0 0
        %3989 = vmatpush1.bf16.msra.mxu0 0
        %3990 = vmatprep.subr.bf16.mxu0 0
        %3991 = vmatpush1.bf16.msra.mxu0 0
        %3992 = vmatprep.subr.bf16.mxu0 0
        %3993 = vmatpush1.bf16.msra.mxu0 0
        %3994 = vmatprep.subr.bf16.mxu0 0
        %3995 = vmatpush1.bf16.msra.mxu0 0
        %3996 = vmatprep.subr.bf16.mxu0 0
        %3997 = vmatpush1.bf16.msra.mxu0 0
        %3998 = vmatprep.subr.bf16.mxu0 0
        %3999 = vmatpush1.bf16.msra.mxu0 0
        %4000 = vmatprep.subr.bf16.mxu0 0
        %4001 = vmatpush1.bf16.msra.mxu0 0
        %4002 = vmatprep.subr.bf16.mxu0 0
        %4003 = vmatpush1.bf16.msra.mxu0 0
        %4004 = vmatprep.subr.bf16.mxu0 0
        %4005 = vmatpush1.bf16.msra.mxu0 0
        %4006 = vmatprep.subr.bf16.mxu0 0
        %4007 = vmatpush1.bf16.msra.mxu0 0
        %4008 = vmatprep.subr.bf16.mxu0 0
        %4009 = vmatpush1.bf16.msra.mxu0 0
        %4010 = vmatprep.subr.bf16.mxu0 0
        %4011 = vmatpush1.bf16.msra.mxu0 0
        %4012 = vmatprep.mubr.bf16.mxu0 0
        %4013 = vmatmul.mubr.bf16.gmra.mrb[0].mxu0 %v3975
        %v4014 = vpop.f32.mrb[0].mxu0
        %v4015 = vadd.f32 0.0, %v4014
        %v4016 = vpop.f32.mrb[0].mxu0
        %v4017 = vpop.f32.mrb[0].mxu0
        %v4018 = vpop.f32.mrb[0].mxu0
        %4019 = vdwg.mxu0
        %4020 = vrot.lane.b32.xlu0 %v966, 64
        %v4021 = vpop.permute.xlu0 %4020
        %v4023 = vsel %vm981, %v3047, 0
        %v4026 = vsel %vm3064, %v4021, 0
        %4028 = vmatprep.subr.bf16.mxu0 0
        %4029 = vmatpush1.bf16.msra.mxu0 %v4026
        %4030 = vmatprep.subr.bf16.mxu0 0
        %4031 = vmatpush1.bf16.msra.mxu0 0
        %4032 = vmatprep.subr.bf16.mxu0 0
        %4033 = vmatpush1.bf16.msra.mxu0 0
        %4034 = vmatprep.subr.bf16.mxu0 0
        %4035 = vmatpush1.bf16.msra.mxu0 0
        %4036 = vmatprep.subr.bf16.mxu0 0
        %4037 = vmatpush1.bf16.msra.mxu0 0
        %4038 = vmatprep.subr.bf16.mxu0 0
        %4039 = vmatpush1.bf16.msra.mxu0 0
        %4040 = vmatprep.subr.bf16.mxu0 0
        %4041 = vmatpush1.bf16.msra.mxu0 0
        %4042 = vmatprep.subr.bf16.mxu0 0
        %4043 = vmatpush1.bf16.msra.mxu0 0
        %4044 = vmatprep.subr.bf16.mxu0 0
        %4045 = vmatpush1.bf16.msra.mxu0 0
        %4046 = vmatprep.subr.bf16.mxu0 0
        %4047 = vmatpush1.bf16.msra.mxu0 0
        %4048 = vmatprep.subr.bf16.mxu0 0
        %4049 = vmatpush1.bf16.msra.mxu0 0
        %4050 = vmatprep.subr.bf16.mxu0 0
        %4051 = vmatpush1.bf16.msra.mxu0 0
        %4052 = vmatprep.subr.bf16.mxu0 0
        %4053 = vmatpush1.bf16.msra.mxu0 0
        %4054 = vmatprep.subr.bf16.mxu0 0
        %4055 = vmatpush1.bf16.msra.mxu0 0
        %4056 = vmatprep.subr.bf16.mxu0 0
        %4057 = vmatpush1.bf16.msra.mxu0 0
        %4058 = vmatprep.subr.bf16.mxu0 0
        %4059 = vmatpush1.bf16.msra.mxu0 0
        %4060 = vmatprep.mubr.bf16.mxu0 0
        %4061 = vmatmul.mubr.bf16.gmra.mrb[0].mxu0 %v4023
        %v4062 = vpop.f32.mrb[0].mxu0
        %v4063 = vadd.f32 0.0, %v4062
        %v4064 = vpop.f32.mrb[0].mxu0
        %v4065 = vpop.f32.mrb[0].mxu0
        %v4066 = vpop.f32.mrb[0].mxu0
        %4067 = vdwg.mxu0
        %4068 = vrot.lane.b32.xlu0 %v967, 64
        %v4069 = vpop.permute.xlu0 %4068
        %v4071 = vsel %vm981, %v3048, 0
        %v4074 = vsel %vm3064, %v4069, 0
        %4076 = vmatprep.subr.bf16.mxu0 0
        %4077 = vmatpush1.bf16.msra.mxu0 %v4074
        %4078 = vmatprep.subr.bf16.mxu0 0
        %4079 = vmatpush1.bf16.msra.mxu0 0
        %4080 = vmatprep.subr.bf16.mxu0 0
        %4081 = vmatpush1.bf16.msra.mxu0 0
        %4082 = vmatprep.subr.bf16.mxu0 0
        %4083 = vmatpush1.bf16.msra.mxu0 0
        %4084 = vmatprep.subr.bf16.mxu0 0
        %4085 = vmatpush1.bf16.msra.mxu0 0
        %4086 = vmatprep.subr.bf16.mxu0 0
        %4087 = vmatpush1.bf16.msra.mxu0 0
        %4088 = vmatprep.subr.bf16.mxu0 0
        %4089 = vmatpush1.bf16.msra.mxu0 0
        %4090 = vmatprep.subr.bf16.mxu0 0
        %4091 = vmatpush1.bf16.msra.mxu0 0
        %4092 = vmatprep.subr.bf16.mxu0 0
        %4093 = vmatpush1.bf16.msra.mxu0 0
        %4094 = vmatprep.subr.bf16.mxu0 0
        %4095 = vmatpush1.bf16.msra.mxu0 0
        %4096 = vmatprep.subr.bf16.mxu0 0
        %4097 = vmatpush1.bf16.msra.mxu0 0
        %4098 = vmatprep.subr.bf16.mxu0 0
        %4099 = vmatpush1.bf16.msra.mxu0 0
        %4100 = vmatprep.subr.bf16.mxu0 0
        %4101 = vmatpush1.bf16.msra.mxu0 0
        %4102 = vmatprep.subr.bf16.mxu0 0
        %4103 = vmatpush1.bf16.msra.mxu0 0
        %4104 = vmatprep.subr.bf16.mxu0 0
        %4105 = vmatpush1.bf16.msra.mxu0 0
        %4106 = vmatprep.subr.bf16.mxu0 0
        %4107 = vmatpush1.bf16.msra.mxu0 0
        %4108 = vmatprep.mubr.bf16.mxu0 0
        %4109 = vmatmul.mubr.bf16.gmra.mrb[0].mxu0 %v4071
        %v4110 = vpop.f32.mrb[0].mxu0
        %v4111 = vadd.f32 0.0, %v4110
        %v4112 = vpop.f32.mrb[0].mxu0
        %v4113 = vpop.f32.mrb[0].mxu0
        %v4114 = vpop.f32.mrb[0].mxu0
        %4115 = vdwg.mxu0
        %4116 = vrot.lane.b32.xlu0 %v968, 64
        %v4117 = vpop.permute.xlu0 %4116
        %v4119 = vsel %vm981, %v3049, 0
        %v4122 = vsel %vm3064, %v4117, 0
        %4124 = vmatprep.subr.bf16.mxu0 0
        %4125 = vmatpush1.bf16.msra.mxu0 %v4122
        %4126 = vmatprep.subr.bf16.mxu0 0
        %4127 = vmatpush1.bf16.msra.mxu0 0
        %4128 = vmatprep.subr.bf16.mxu0 0
        %4129 = vmatpush1.bf16.msra.mxu0 0
        %4130 = vmatprep.subr.bf16.mxu0 0
        %4131 = vmatpush1.bf16.msra.mxu0 0
        %4132 = vmatprep.subr.bf16.mxu0 0
        %4133 = vmatpush1.bf16.msra.mxu0 0
        %4134 = vmatprep.subr.bf16.mxu0 0
        %4135 = vmatpush1.bf16.msra.mxu0 0
        %4136 = vmatprep.subr.bf16.mxu0 0
        %4137 = vmatpush1.bf16.msra.mxu0 0
        %4138 = vmatprep.subr.bf16.mxu0 0
        %4139 = vmatpush1.bf16.msra.mxu0 0
        %4140 = vmatprep.subr.bf16.mxu0 0
        %4141 = vmatpush1.bf16.msra.mxu0 0
        %4142 = vmatprep.subr.bf16.mxu0 0
        %4143 = vmatpush1.bf16.msra.mxu0 0
        %4144 = vmatprep.subr.bf16.mxu0 0
        %4145 = vmatpush1.bf16.msra.mxu0 0
        %4146 = vmatprep.subr.bf16.mxu0 0
        %4147 = vmatpush1.bf16.msra.mxu0 0
        %4148 = vmatprep.subr.bf16.mxu0 0
        %4149 = vmatpush1.bf16.msra.mxu0 0
        %4150 = vmatprep.subr.bf16.mxu0 0
        %4151 = vmatpush1.bf16.msra.mxu0 0
        %4152 = vmatprep.subr.bf16.mxu0 0
        %4153 = vmatpush1.bf16.msra.mxu0 0
        %4154 = vmatprep.subr.bf16.mxu0 0
        %4155 = vmatpush1.bf16.msra.mxu0 0
        %4156 = vmatprep.mubr.bf16.mxu0 0
        %4157 = vmatmul.mubr.bf16.gmra.mrb[0].mxu0 %v4119
        %v4158 = vpop.f32.mrb[0].mxu0
        %v4159 = vadd.f32 0.0, %v4158
        %v4160 = vpop.f32.mrb[0].mxu0
        %v4161 = vpop.f32.mrb[0].mxu0
        %v4162 = vpop.f32.mrb[0].mxu0
        %4163 = vdwg.mxu0
        %4164 = vrot.lane.b32.xlu0 %v969, 64
        %v4165 = vpop.permute.xlu0 %4164
        %v4167 = vsel %vm981, %v3050, 0
        %v4170 = vsel %vm3064, %v4165, 0
        %4172 = vmatprep.subr.bf16.mxu0 0
        %4173 = vmatpush1.bf16.msra.mxu0 %v4170
        %4174 = vmatprep.subr.bf16.mxu0 0
        %4175 = vmatpush1.bf16.msra.mxu0 0
        %4176 = vmatprep.subr.bf16.mxu0 0
        %4177 = vmatpush1.bf16.msra.mxu0 0
        %4178 = vmatprep.subr.bf16.mxu0 0
        %4179 = vmatpush1.bf16.msra.mxu0 0
        %4180 = vmatprep.subr.bf16.mxu0 0
        %4181 = vmatpush1.bf16.msra.mxu0 0
        %4182 = vmatprep.subr.bf16.mxu0 0
        %4183 = vmatpush1.bf16.msra.mxu0 0
        %4184 = vmatprep.subr.bf16.mxu0 0
        %4185 = vmatpush1.bf16.msra.mxu0 0
        %4186 = vmatprep.subr.bf16.mxu0 0
        %4187 = vmatpush1.bf16.msra.mxu0 0
        %4188 = vmatprep.subr.bf16.mxu0 0
        %4189 = vmatpush1.bf16.msra.mxu0 0
        %4190 = vmatprep.subr.bf16.mxu0 0
        %4191 = vmatpush1.bf16.msra.mxu0 0
        %4192 = vmatprep.subr.bf16.mxu0 0
        %4193 = vmatpush1.bf16.msra.mxu0 0
        %4194 = vmatprep.subr.bf16.mxu0 0
        %4195 = vmatpush1.bf16.msra.mxu0 0
        %4196 = vmatprep.subr.bf16.mxu0 0
        %4197 = vmatpush1.bf16.msra.mxu0 0
        %4198 = vmatprep.subr.bf16.mxu0 0
        %4199 = vmatpush1.bf16.msra.mxu0 0
        %4200 = vmatprep.subr.bf16.mxu0 0
        %4201 = vmatpush1.bf16.msra.mxu0 0
        %4202 = vmatprep.subr.bf16.mxu0 0
        %4203 = vmatpush1.bf16.msra.mxu0 0
        %4204 = vmatprep.mubr.bf16.mxu0 0
        %4205 = vmatmul.mubr.bf16.gmra.mrb[0].mxu0 %v4167
        %v4206 = vpop.f32.mrb[0].mxu0
        %v4207 = vadd.f32 0.0, %v4206
        %v4208 = vpop.f32.mrb[0].mxu0
        %v4209 = vpop.f32.mrb[0].mxu0
        %v4210 = vpop.f32.mrb[0].mxu0
        %4211 = vdwg.mxu0
        %4212 = vrot.lane.b32.xlu0 %v970, 64
        %v4213 = vpop.permute.xlu0 %4212
        %v4215 = vsel %vm981, %v3051, 0
        %v4218 = vsel %vm3064, %v4213, 0
        %4220 = vmatprep.subr.bf16.mxu0 0
        %4221 = vmatpush1.bf16.msra.mxu0 %v4218
        %4222 = vmatprep.subr.bf16.mxu0 0
        %4223 = vmatpush1.bf16.msra.mxu0 0
        %4224 = vmatprep.subr.bf16.mxu0 0
        %4225 = vmatpush1.bf16.msra.mxu0 0
        %4226 = vmatprep.subr.bf16.mxu0 0
        %4227 = vmatpush1.bf16.msra.mxu0 0
        %4228 = vmatprep.subr.bf16.mxu0 0
        %4229 = vmatpush1.bf16.msra.mxu0 0
        %4230 = vmatprep.subr.bf16.mxu0 0
        %4231 = vmatpush1.bf16.msra.mxu0 0
        %4232 = vmatprep.subr.bf16.mxu0 0
        %4233 = vmatpush1.bf16.msra.mxu0 0
        %4234 = vmatprep.subr.bf16.mxu0 0
        %4235 = vmatpush1.bf16.msra.mxu0 0
        %4236 = vmatprep.subr.bf16.mxu0 0
        %4237 = vmatpush1.bf16.msra.mxu0 0
        %4238 = vmatprep.subr.bf16.mxu0 0
        %4239 = vmatpush1.bf16.msra.mxu0 0
        %4240 = vmatprep.subr.bf16.mxu0 0
        %4241 = vmatpush1.bf16.msra.mxu0 0
        %4242 = vmatprep.subr.bf16.mxu0 0
        %4243 = vmatpush1.bf16.msra.mxu0 0
        %4244 = vmatprep.subr.bf16.mxu0 0
        %4245 = vmatpush1.bf16.msra.mxu0 0
        %4246 = vmatprep.subr.bf16.mxu0 0
        %4247 = vmatpush1.bf16.msra.mxu0 0
        %4248 = vmatprep.subr.bf16.mxu0 0
        %4249 = vmatpush1.bf16.msra.mxu0 0
        %4250 = vmatprep.subr.bf16.mxu0 0
        %4251 = vmatpush1.bf16.msra.mxu0 0
        %4252 = vmatprep.mubr.bf16.mxu0 0
        %4253 = vmatmul.mubr.bf16.gmra.mrb[0].mxu0 %v4215
        %v4254 = vpop.f32.mrb[0].mxu0
        %v4255 = vadd.f32 0.0, %v4254
        %v4256 = vpop.f32.mrb[0].mxu0
        %v4257 = vpop.f32.mrb[0].mxu0
        %v4258 = vpop.f32.mrb[0].mxu0
        %4259 = vdwg.mxu0
        %4260 = vrot.lane.b32.xlu0 %v971, 64
        %v4261 = vpop.permute.xlu0 %4260
        %v4263 = vsel %vm981, %v3052, 0
        %v4266 = vsel %vm3064, %v4261, 0
        %4268 = vmatprep.subr.bf16.mxu0 0
        %4269 = vmatpush1.bf16.msra.mxu0 %v4266
        %4270 = vmatprep.subr.bf16.mxu0 0
        %4271 = vmatpush1.bf16.msra.mxu0 0
        %4272 = vmatprep.subr.bf16.mxu0 0
        %4273 = vmatpush1.bf16.msra.mxu0 0
        %4274 = vmatprep.subr.bf16.mxu0 0
        %4275 = vmatpush1.bf16.msra.mxu0 0
        %4276 = vmatprep.subr.bf16.mxu0 0
        %4277 = vmatpush1.bf16.msra.mxu0 0
        %4278 = vmatprep.subr.bf16.mxu0 0
        %4279 = vmatpush1.bf16.msra.mxu0 0
        %4280 = vmatprep.subr.bf16.mxu0 0
        %4281 = vmatpush1.bf16.msra.mxu0 0
        %4282 = vmatprep.subr.bf16.mxu0 0
        %4283 = vmatpush1.bf16.msra.mxu0 0
        %4284 = vmatprep.subr.bf16.mxu0 0
        %4285 = vmatpush1.bf16.msra.mxu0 0
        %4286 = vmatprep.subr.bf16.mxu0 0
        %4287 = vmatpush1.bf16.msra.mxu0 0
        %4288 = vmatprep.subr.bf16.mxu0 0
        %4289 = vmatpush1.bf16.msra.mxu0 0
        %4290 = vmatprep.subr.bf16.mxu0 0
        %4291 = vmatpush1.bf16.msra.mxu0 0
        %4292 = vmatprep.subr.bf16.mxu0 0
        %4293 = vmatpush1.bf16.msra.mxu0 0
        %4294 = vmatprep.subr.bf16.mxu0 0
        %4295 = vmatpush1.bf16.msra.mxu0 0
        %4296 = vmatprep.subr.bf16.mxu0 0
        %4297 = vmatpush1.bf16.msra.mxu0 0
        %4298 = vmatprep.subr.bf16.mxu0 0
        %4299 = vmatpush1.bf16.msra.mxu0 0
        %4300 = vmatprep.mubr.bf16.mxu0 0
        %4301 = vmatmul.mubr.bf16.gmra.mrb[0].mxu0 %v4263
        %v4302 = vpop.f32.mrb[0].mxu0
        %v4303 = vadd.f32 0.0, %v4302
        %v4304 = vpop.f32.mrb[0].mxu0
        %v4305 = vpop.f32.mrb[0].mxu0
        %v4306 = vpop.f32.mrb[0].mxu0
        %4307 = vdwg.mxu0
        %4308 = vrot.lane.b32.xlu0 %v972, 64
        %v4309 = vpop.permute.xlu0 %4308
        %v4311 = vsel %vm981, %v3053, 0
        %v4314 = vsel %vm3064, %v4309, 0
        %4316 = vmatprep.subr.bf16.mxu0 0
        %4317 = vmatpush1.bf16.msra.mxu0 %v4314
        %4318 = vmatprep.subr.bf16.mxu0 0
        %4319 = vmatpush1.bf16.msra.mxu0 0
        %4320 = vmatprep.subr.bf16.mxu0 0
        %4321 = vmatpush1.bf16.msra.mxu0 0
        %4322 = vmatprep.subr.bf16.mxu0 0
        %4323 = vmatpush1.bf16.msra.mxu0 0
        %4324 = vmatprep.subr.bf16.mxu0 0
        %4325 = vmatpush1.bf16.msra.mxu0 0
        %4326 = vmatprep.subr.bf16.mxu0 0
        %4327 = vmatpush1.bf16.msra.mxu0 0
        %4328 = vmatprep.subr.bf16.mxu0 0
        %4329 = vmatpush1.bf16.msra.mxu0 0
        %4330 = vmatprep.subr.bf16.mxu0 0
        %4331 = vmatpush1.bf16.msra.mxu0 0
        %4332 = vmatprep.subr.bf16.mxu0 0
        %4333 = vmatpush1.bf16.msra.mxu0 0
        %4334 = vmatprep.subr.bf16.mxu0 0
        %4335 = vmatpush1.bf16.msra.mxu0 0
        %4336 = vmatprep.subr.bf16.mxu0 0
        %4337 = vmatpush1.bf16.msra.mxu0 0
        %4338 = vmatprep.subr.bf16.mxu0 0
        %4339 = vmatpush1.bf16.msra.mxu0 0
        %4340 = vmatprep.subr.bf16.mxu0 0
        %4341 = vmatpush1.bf16.msra.mxu0 0
        %4342 = vmatprep.subr.bf16.mxu0 0
        %4343 = vmatpush1.bf16.msra.mxu0 0
        %4344 = vmatprep.subr.bf16.mxu0 0
        %4345 = vmatpush1.bf16.msra.mxu0 0
        %4346 = vmatprep.subr.bf16.mxu0 0
        %4347 = vmatpush1.bf16.msra.mxu0 0
        %4348 = vmatprep.mubr.bf16.mxu0 0
        %4349 = vmatmul.mubr.bf16.gmra.mrb[0].mxu0 %v4311
        %v4350 = vpop.f32.mrb[0].mxu0
        %v4351 = vadd.f32 0.0, %v4350
        %v4352 = vpop.f32.mrb[0].mxu0
        %v4353 = vpop.f32.mrb[0].mxu0
        %v4354 = vpop.f32.mrb[0].mxu0
        %4355 = vdwg.mxu0
        %4356 = vrot.lane.b32.xlu0 %v973, 64
        %v4357 = vpop.permute.xlu0 %4356
        %v4359 = vsel %vm981, %v3054, 0
        %v4362 = vsel %vm3064, %v4357, 0
        %4364 = vmatprep.subr.bf16.mxu0 0
        %4365 = vmatpush1.bf16.msra.mxu0 %v4362
        %4366 = vmatprep.subr.bf16.mxu0 0
        %4367 = vmatpush1.bf16.msra.mxu0 0
        %4368 = vmatprep.subr.bf16.mxu0 0
        %4369 = vmatpush1.bf16.msra.mxu0 0
        %4370 = vmatprep.subr.bf16.mxu0 0
        %4371 = vmatpush1.bf16.msra.mxu0 0
        %4372 = vmatprep.subr.bf16.mxu0 0
        %4373 = vmatpush1.bf16.msra.mxu0 0
        %4374 = vmatprep.subr.bf16.mxu0 0
        %4375 = vmatpush1.bf16.msra.mxu0 0
        %4376 = vmatprep.subr.bf16.mxu0 0
        %4377 = vmatpush1.bf16.msra.mxu0 0
        %4378 = vmatprep.subr.bf16.mxu0 0
        %4379 = vmatpush1.bf16.msra.mxu0 0
        %4380 = vmatprep.subr.bf16.mxu0 0
        %4381 = vmatpush1.bf16.msra.mxu0 0
        %4382 = vmatprep.subr.bf16.mxu0 0
        %4383 = vmatpush1.bf16.msra.mxu0 0
        %4384 = vmatprep.subr.bf16.mxu0 0
        %4385 = vmatpush1.bf16.msra.mxu0 0
        %4386 = vmatprep.subr.bf16.mxu0 0
        %4387 = vmatpush1.bf16.msra.mxu0 0
        %4388 = vmatprep.subr.bf16.mxu0 0
        %4389 = vmatpush1.bf16.msra.mxu0 0
        %4390 = vmatprep.subr.bf16.mxu0 0
        %4391 = vmatpush1.bf16.msra.mxu0 0
        %4392 = vmatprep.subr.bf16.mxu0 0
        %4393 = vmatpush1.bf16.msra.mxu0 0
        %4394 = vmatprep.subr.bf16.mxu0 0
        %4395 = vmatpush1.bf16.msra.mxu0 0
        %4396 = vmatprep.mubr.bf16.mxu0 0
        %4397 = vmatmul.mubr.bf16.gmra.mrb[0].mxu0 %v4359
        %v4398 = vpop.f32.mrb[0].mxu0
        %v4399 = vadd.f32 0.0, %v4398
        %v4400 = vpop.f32.mrb[0].mxu0
        %v4401 = vpop.f32.mrb[0].mxu0
        %v4402 = vpop.f32.mrb[0].mxu0
        %4403 = vdwg.mxu0
        %4404 = vrot.lane.b32.xlu0 %v974, 64
        %v4405 = vpop.permute.xlu0 %4404
        %v4407 = vsel %vm981, %v3055, 0
        %v4410 = vsel %vm3064, %v4405, 0
        %4412 = vmatprep.subr.bf16.mxu0 0
        %4413 = vmatpush1.bf16.msra.mxu0 %v4410
        %4414 = vmatprep.subr.bf16.mxu0 0
        %4415 = vmatpush1.bf16.msra.mxu0 0
        %4416 = vmatprep.subr.bf16.mxu0 0
        %4417 = vmatpush1.bf16.msra.mxu0 0
        %4418 = vmatprep.subr.bf16.mxu0 0
        %4419 = vmatpush1.bf16.msra.mxu0 0
        %4420 = vmatprep.subr.bf16.mxu0 0
        %4421 = vmatpush1.bf16.msra.mxu0 0
        %4422 = vmatprep.subr.bf16.mxu0 0
        %4423 = vmatpush1.bf16.msra.mxu0 0
        %4424 = vmatprep.subr.bf16.mxu0 0
        %4425 = vmatpush1.bf16.msra.mxu0 0
        %4426 = vmatprep.subr.bf16.mxu0 0
        %4427 = vmatpush1.bf16.msra.mxu0 0
        %4428 = vmatprep.subr.bf16.mxu0 0
        %4429 = vmatpush1.bf16.msra.mxu0 0
        %4430 = vmatprep.subr.bf16.mxu0 0
        %4431 = vmatpush1.bf16.msra.mxu0 0
        %4432 = vmatprep.subr.bf16.mxu0 0
        %4433 = vmatpush1.bf16.msra.mxu0 0
        %4434 = vmatprep.subr.bf16.mxu0 0
        %4435 = vmatpush1.bf16.msra.mxu0 0
        %4436 = vmatprep.subr.bf16.mxu0 0
        %4437 = vmatpush1.bf16.msra.mxu0 0
        %4438 = vmatprep.subr.bf16.mxu0 0
        %4439 = vmatpush1.bf16.msra.mxu0 0
        %4440 = vmatprep.subr.bf16.mxu0 0
        %4441 = vmatpush1.bf16.msra.mxu0 0
        %4442 = vmatprep.subr.bf16.mxu0 0
        %4443 = vmatpush1.bf16.msra.mxu0 0
        %4444 = vmatprep.mubr.bf16.mxu0 0
        %4445 = vmatmul.mubr.bf16.gmra.mrb[0].mxu0 %v4407
        %v4446 = vpop.f32.mrb[0].mxu0
        %v4447 = vadd.f32 0.0, %v4446
        %v4448 = vpop.f32.mrb[0].mxu0
        %v4449 = vpop.f32.mrb[0].mxu0
        %v4450 = vpop.f32.mrb[0].mxu0
        %4451 = vdwg.mxu0
        %4452 = vrot.lane.b32.xlu0 %v975, 64
        %v4453 = vpop.permute.xlu0 %4452
        %v4455 = vsel %vm981, %v3056, 0
        %v4458 = vsel %vm3064, %v4453, 0
        %4460 = vmatprep.subr.bf16.mxu0 0
        %4461 = vmatpush1.bf16.msra.mxu0 %v4458
        %4462 = vmatprep.subr.bf16.mxu0 0
        %4463 = vmatpush1.bf16.msra.mxu0 0
        %4464 = vmatprep.subr.bf16.mxu0 0
        %4465 = vmatpush1.bf16.msra.mxu0 0
        %4466 = vmatprep.subr.bf16.mxu0 0
        %4467 = vmatpush1.bf16.msra.mxu0 0
        %4468 = vmatprep.subr.bf16.mxu0 0
        %4469 = vmatpush1.bf16.msra.mxu0 0
        %4470 = vmatprep.subr.bf16.mxu0 0
        %4471 = vmatpush1.bf16.msra.mxu0 0
        %4472 = vmatprep.subr.bf16.mxu0 0
        %4473 = vmatpush1.bf16.msra.mxu0 0
        %4474 = vmatprep.subr.bf16.mxu0 0
        %4475 = vmatpush1.bf16.msra.mxu0 0
        %4476 = vmatprep.subr.bf16.mxu0 0
        %4477 = vmatpush1.bf16.msra.mxu0 0
        %4478 = vmatprep.subr.bf16.mxu0 0
        %4479 = vmatpush1.bf16.msra.mxu0 0
        %4480 = vmatprep.subr.bf16.mxu0 0
        %4481 = vmatpush1.bf16.msra.mxu0 0
        %4482 = vmatprep.subr.bf16.mxu0 0
        %4483 = vmatpush1.bf16.msra.mxu0 0
        %4484 = vmatprep.subr.bf16.mxu0 0
        %4485 = vmatpush1.bf16.msra.mxu0 0
        %4486 = vmatprep.subr.bf16.mxu0 0
        %4487 = vmatpush1.bf16.msra.mxu0 0
        %4488 = vmatprep.subr.bf16.mxu0 0
        %4489 = vmatpush1.bf16.msra.mxu0 0
        %4490 = vmatprep.subr.bf16.mxu0 0
        %4491 = vmatpush1.bf16.msra.mxu0 0
        %4492 = vmatprep.mubr.bf16.mxu0 0
        %4493 = vmatmul.mubr.bf16.gmra.mrb[0].mxu0 %v4455
        %v4494 = vpop.f32.mrb[0].mxu0
        %v4495 = vadd.f32 0.0, %v4494
        %v4496 = vpop.f32.mrb[0].mxu0
        %v4497 = vpop.f32.mrb[0].mxu0
        %v4498 = vpop.f32.mrb[0].mxu0
        %4499 = vdwg.mxu0
        %4500 = vrot.lane.b32.xlu0 %v976, 64
        %v4501 = vpop.permute.xlu0 %4500
        %v4503 = vsel %vm981, %v3057, 0
        %v4506 = vsel %vm3064, %v4501, 0
        %4508 = vmatprep.subr.bf16.mxu0 0
        %4509 = vmatpush1.bf16.msra.mxu0 %v4506
        %4510 = vmatprep.subr.bf16.mxu0 0
        %4511 = vmatpush1.bf16.msra.mxu0 0
        %4512 = vmatprep.subr.bf16.mxu0 0
        %4513 = vmatpush1.bf16.msra.mxu0 0
        %4514 = vmatprep.subr.bf16.mxu0 0
        %4515 = vmatpush1.bf16.msra.mxu0 0
        %4516 = vmatprep.subr.bf16.mxu0 0
        %4517 = vmatpush1.bf16.msra.mxu0 0
        %4518 = vmatprep.subr.bf16.mxu0 0
        %4519 = vmatpush1.bf16.msra.mxu0 0
        %4520 = vmatprep.subr.bf16.mxu0 0
        %4521 = vmatpush1.bf16.msra.mxu0 0
        %4522 = vmatprep.subr.bf16.mxu0 0
        %4523 = vmatpush1.bf16.msra.mxu0 0
        %4524 = vmatprep.subr.bf16.mxu0 0
        %4525 = vmatpush1.bf16.msra.mxu0 0
        %4526 = vmatprep.subr.bf16.mxu0 0
        %4527 = vmatpush1.bf16.msra.mxu0 0
        %4528 = vmatprep.subr.bf16.mxu0 0
        %4529 = vmatpush1.bf16.msra.mxu0 0
        %4530 = vmatprep.subr.bf16.mxu0 0
        %4531 = vmatpush1.bf16.msra.mxu0 0
        %4532 = vmatprep.subr.bf16.mxu0 0
        %4533 = vmatpush1.bf16.msra.mxu0 0
        %4534 = vmatprep.subr.bf16.mxu0 0
        %4535 = vmatpush1.bf16.msra.mxu0 0
        %4536 = vmatprep.subr.bf16.mxu0 0
        %4537 = vmatpush1.bf16.msra.mxu0 0
        %4538 = vmatprep.subr.bf16.mxu0 0
        %4539 = vmatpush1.bf16.msra.mxu0 0
        %4540 = vmatprep.mubr.bf16.mxu0 0
        %4541 = vmatmul.mubr.bf16.gmra.mrb[0].mxu0 %v4503
        %v4542 = vpop.f32.mrb[0].mxu0
        %v4543 = vadd.f32 0.0, %v4542
        %v4544 = vpop.f32.mrb[0].mxu0
        %v4545 = vpop.f32.mrb[0].mxu0
        %v4546 = vpop.f32.mrb[0].mxu0
        %4547 = vdwg.mxu0
        %4548 = vrot.lane.b32.xlu0 %v977, 64
        %v4549 = vpop.permute.xlu0 %4548
        %v4551 = vsel %vm981, %v3058, 0
        %v4554 = vsel %vm3064, %v4549, 0
        %4556 = vmatprep.subr.bf16.mxu0 0
        %4557 = vmatpush1.bf16.msra.mxu0 %v4554
        %4558 = vmatprep.subr.bf16.mxu0 0
        %4559 = vmatpush1.bf16.msra.mxu0 0
        %4560 = vmatprep.subr.bf16.mxu0 0
        %4561 = vmatpush1.bf16.msra.mxu0 0
        %4562 = vmatprep.subr.bf16.mxu0 0
        %4563 = vmatpush1.bf16.msra.mxu0 0
        %4564 = vmatprep.subr.bf16.mxu0 0
        %4565 = vmatpush1.bf16.msra.mxu0 0
        %4566 = vmatprep.subr.bf16.mxu0 0
        %4567 = vmatpush1.bf16.msra.mxu0 0
        %4568 = vmatprep.subr.bf16.mxu0 0
        %4569 = vmatpush1.bf16.msra.mxu0 0
        %4570 = vmatprep.subr.bf16.mxu0 0
        %4571 = vmatpush1.bf16.msra.mxu0 0
        %4572 = vmatprep.subr.bf16.mxu0 0
        %4573 = vmatpush1.bf16.msra.mxu0 0
        %4574 = vmatprep.subr.bf16.mxu0 0
        %4575 = vmatpush1.bf16.msra.mxu0 0
        %4576 = vmatprep.subr.bf16.mxu0 0
        %4577 = vmatpush1.bf16.msra.mxu0 0
        %4578 = vmatprep.subr.bf16.mxu0 0
        %4579 = vmatpush1.bf16.msra.mxu0 0
        %4580 = vmatprep.subr.bf16.mxu0 0
        %4581 = vmatpush1.bf16.msra.mxu0 0
        %4582 = vmatprep.subr.bf16.mxu0 0
        %4583 = vmatpush1.bf16.msra.mxu0 0
        %4584 = vmatprep.subr.bf16.mxu0 0
        %4585 = vmatpush1.bf16.msra.mxu0 0
        %4586 = vmatprep.subr.bf16.mxu0 0
        %4587 = vmatpush1.bf16.msra.mxu0 0
        %4588 = vmatprep.mubr.bf16.mxu0 0
        %4589 = vmatmul.mubr.bf16.gmra.mrb[0].mxu0 %v4551
        %v4590 = vpop.f32.mrb[0].mxu0
        %v4591 = vadd.f32 0.0, %v4590
        %v4592 = vpop.f32.mrb[0].mxu0
        %v4593 = vpop.f32.mrb[0].mxu0
        %v4594 = vpop.f32.mrb[0].mxu0
        %4595 = vdwg.mxu0
        %4604 = vrot.lane.b32.xlu0 %v3487, 8
        %v4605 = vpop.permute.xlu0 %4604
        %4606 = vrot.lane.b32.xlu0 %v3535, 8
        %v4607 = vpop.permute.xlu0 %4606
        %4608 = vrot.lane.b32.xlu0 %v3583, 8
        %v4609 = vpop.permute.xlu0 %4608
        %4610 = vrot.lane.b32.xlu0 %v3631, 8
        %v4611 = vpop.permute.xlu0 %4610
        %4612 = vrot.lane.b32.xlu0 %v3679, 8
        %v4613 = vpop.permute.xlu0 %4612
        %4614 = vrot.lane.b32.xlu0 %v3727, 8
        %v4615 = vpop.permute.xlu0 %4614
        %4616 = vrot.lane.b32.xlu0 %v3775, 8
        %v4617 = vpop.permute.xlu0 %4616
        %4618 = vrot.lane.b32.xlu0 %v3823, 8
        %v4619 = vpop.permute.xlu0 %4618
        %4636 = vrot.lane.b32.xlu0 %v3871, 16
        %v4637 = vpop.permute.xlu0 %4636
        %4638 = vrot.lane.b32.xlu0 %v3919, 16
        %v4639 = vpop.permute.xlu0 %4638
        %4640 = vrot.lane.b32.xlu0 %v3967, 16
        %v4641 = vpop.permute.xlu0 %4640
        %4642 = vrot.lane.b32.xlu0 %v4015, 16
        %v4643 = vpop.permute.xlu0 %4642
        %4644 = vrot.lane.b32.xlu0 %v4063, 16
        %v4645 = vpop.permute.xlu0 %4644
        %4646 = vrot.lane.b32.xlu0 %v4111, 16
        %v4647 = vpop.permute.xlu0 %4646
        %4648 = vrot.lane.b32.xlu0 %v4159, 16
        %v4649 = vpop.permute.xlu0 %4648
        %4650 = vrot.lane.b32.xlu0 %v4207, 16
        %v4651 = vpop.permute.xlu0 %4650
        %4668 = vrot.lane.b32.xlu0 %v4255, 24
        %v4669 = vpop.permute.xlu0 %4668
        %4670 = vrot.lane.b32.xlu0 %v4303, 24
        %v4671 = vpop.permute.xlu0 %4670
        %4672 = vrot.lane.b32.xlu0 %v4351, 24
        %v4673 = vpop.permute.xlu0 %4672
        %4674 = vrot.lane.b32.xlu0 %v4399, 24
        %v4675 = vpop.permute.xlu0 %4674
        %4676 = vrot.lane.b32.xlu0 %v4447, 24
        %v4677 = vpop.permute.xlu0 %4676
        %4678 = vrot.lane.b32.xlu0 %v4495, 24
        %v4679 = vpop.permute.xlu0 %4678
        %4680 = vrot.lane.b32.xlu0 %v4543, 24
        %v4681 = vpop.permute.xlu0 %4680
        %4682 = vrot.lane.b32.xlu0 %v4591, 24
        %v4683 = vpop.permute.xlu0 %4682
        %v4692 = vsel %vm981, %v3103, %v4605
        %v4693 = vsel %vm981, %v3151, %v4607
        %v4694 = vsel %vm981, %v3199, %v4609
        %v4695 = vsel %vm981, %v3247, %v4611
        %v4696 = vsel %vm981, %v3295, %v4613
        %v4697 = vsel %vm981, %v3343, %v4615
        %v4698 = vsel %vm981, %v3391, %v4617
        %v4699 = vsel %vm981, %v3439, %v4619
        %vm4700 = vcmask 130048
        %v4701 = vsel %vm4700, %v4692, %v4637
        %v4702 = vsel %vm4700, %v4693, %v4639
        %v4703 = vsel %vm4700, %v4694, %v4641
        %v4704 = vsel %vm4700, %v4695, %v4643
        %v4705 = vsel %vm4700, %v4696, %v4645
        %v4706 = vsel %vm4700, %v4697, %v4647
        %v4707 = vsel %vm4700, %v4698, %v4649
        %v4708 = vsel %vm4700, %v4699, %v4651
        %vm4709 = vcmask 195584
        %v4710 = vsel %vm4709, %v4701, %v4669
        %v4711 = vsel %vm4709, %v4702, %v4671
        %v4712 = vsel %vm4709, %v4703, %v4673
        %v4713 = vsel %vm4709, %v4704, %v4675
        %v4714 = vsel %vm4709, %v4705, %v4677
        %v4715 = vsel %vm4709, %v4706, %v4679
        %v4716 = vsel %vm4709, %v4707, %v4681
        %v4717 = vsel %vm4709, %v4708, %v4683
        %v4718 = vpack.c.bf16 %v4711, %v4710
        %v4719 = vpack.c.bf16 %v4713, %v4712
        %v4720 = vpack.c.bf16 %v4715, %v4714
        %v4721 = vpack.c.bf16 %v4717, %v4716
        %v4722 = vld [vmem:[%s505] sm:$0xf]
        %v4723 = vld [vmem:[%s505 + $0x4] sm:$0xf]
        %v4724 = vld [vmem:[%s505 + $0x8] sm:$0xf]
        %v4725 = vld [vmem:[%s505 + $0xc] sm:$0xf]
        %v4726 = vlaneseq
        %v4727 = vshrl.u32 %v4726, 7
        %v4728 = vsub.s32 1, %v4727
        %v4729 = vrot.slane %v587, %v4728
        %v4734 = vunpack.c.l.b16 %v4722
        %v4735 = vunpack.c.l.b16 %v4723
        %v4736 = vunpack.c.l.b16 %v4724
        %v4737 = vunpack.c.l.b16 %v4725
        %v4738 = vpack.c.b16 %v4735, %v4734
        %v4739 = vpack.c.b16 %v4737, %v4736
        %v4743 = vsel %vm788, %v4718, 0
        %v4746 = vsel %vm788, %v4719, 0
        %v4749 = vsel %vm788, %v4720, 0
        %v4752 = vsel %vm788, %v4721, 0
        %4754 = vmatprep.subr.bf16.mxu0 0
        %4755 = vmatpush1.bf16.msra.mxu0 %v4738
        %4756 = vmatprep.subr.bf16.mxu0 0
        %4757 = vmatpush1.bf16.msra.mxu0 %v4739
        %4758 = vmatprep.subr.bf16.mxu0 0
        %4759 = vmatpush1.bf16.msra.mxu0 0
        %4760 = vmatprep.subr.bf16.mxu0 0
        %4761 = vmatpush1.bf16.msra.mxu0 0
        %4762 = vmatprep.subr.bf16.mxu0 0
        %4763 = vmatpush1.bf16.msra.mxu0 0
        %4764 = vmatprep.subr.bf16.mxu0 0
        %4765 = vmatpush1.bf16.msra.mxu0 0
        %4766 = vmatprep.subr.bf16.mxu0 0
        %4767 = vmatpush1.bf16.msra.mxu0 0
        %4768 = vmatprep.subr.bf16.mxu0 0
        %4769 = vmatpush1.bf16.msra.mxu0 0
        %4770 = vmatprep.subr.bf16.mxu0 0
        %4771 = vmatpush1.bf16.msra.mxu0 0
        %4772 = vmatprep.subr.bf16.mxu0 0
        %4773 = vmatpush1.bf16.msra.mxu0 0
        %4774 = vmatprep.subr.bf16.mxu0 0
        %4775 = vmatpush1.bf16.msra.mxu0 0
        %4776 = vmatprep.subr.bf16.mxu0 0
        %4777 = vmatpush1.bf16.msra.mxu0 0
        %4778 = vmatprep.subr.bf16.mxu0 0
        %4779 = vmatpush1.bf16.msra.mxu0 0
        %4780 = vmatprep.subr.bf16.mxu0 0
        %4781 = vmatpush1.bf16.msra.mxu0 0
        %4782 = vmatprep.subr.bf16.mxu0 0
        %4783 = vmatpush1.bf16.msra.mxu0 0
        %4784 = vmatprep.subr.bf16.mxu0 0
        %4785 = vmatpush1.bf16.msra.mxu0 0
        %4786 = vmatprep.mubr.bf16.mxu0 0
        %4787 = vmatmul.mubr.bf16.gmra.mrb[0].mxu0 %v4743
        %v4788 = vpop.f32.mrb[0].mxu0
        %v4789 = vadd.f32 %v4729, %v4788
        %v4790 = vpop.f32.mrb[0].mxu0
        %v4791 = vpop.f32.mrb[0].mxu0
        %v4792 = vadd.f32 %v4729, %v4791
        %v4793 = vpop.f32.mrb[0].mxu0
        %4794 = vmatprep.mubr.bf16.mxu0 0
        %4795 = vmatmul.mubr.bf16.gmra.mrb[0].mxu0 %v4746
        %v4796 = vpop.f32.mrb[0].mxu0
        %v4797 = vadd.f32 %v4729, %v4796
        %v4798 = vpop.f32.mrb[0].mxu0
        %v4799 = vpop.f32.mrb[0].mxu0
        %v4800 = vadd.f32 %v4729, %v4799
        %v4801 = vpop.f32.mrb[0].mxu0
        %4802 = vmatprep.mubr.bf16.mxu0 0
        %4803 = vmatmul.mubr.bf16.gmra.mrb[0].mxu0 %v4749
        %v4804 = vpop.f32.mrb[0].mxu0
        %v4805 = vadd.f32 %v4729, %v4804
        %v4806 = vpop.f32.mrb[0].mxu0
        %v4807 = vpop.f32.mrb[0].mxu0
        %v4808 = vadd.f32 %v4729, %v4807
        %v4809 = vpop.f32.mrb[0].mxu0
        %4810 = vmatprep.mubr.bf16.mxu0 0
        %4811 = vmatmul.mubr.bf16.gmra.mrb[0].mxu0 %v4752
        %v4812 = vpop.f32.mrb[0].mxu0
        %v4813 = vadd.f32 %v4729, %v4812
        %v4814 = vpop.f32.mrb[0].mxu0
        %v4815 = vpop.f32.mrb[0].mxu0
        %v4816 = vadd.f32 %v4729, %v4815
        %v4817 = vpop.f32.mrb[0].mxu0
        %4818 = vdwg.mxu0
        %v4819 = vadd.f32 %v756, %v4789
        %v4820 = vadd.f32 %v757, %v4792
        %v4821 = vadd.f32 %v758, %v4797
        %v4822 = vadd.f32 %v759, %v4800
        %v4823 = vadd.f32 %v760, %v4805
        %v4824 = vadd.f32 %v761, %v4808
        %v4825 = vadd.f32 %v762, %v4813
        %v4826 = vadd.f32 %v763, %v4816
        %v4827 = vsel %vm788, %v4819, 0.0
        %v4828 = vsel %vm788, %v4820, 0.0
        %v4829 = vadd.f32 %v4827, %v4828
        %v4830 = vsel %vm788, %v4821, 0.0
        %v4831 = vadd.f32 %v4829, %v4830
        %v4832 = vsel %vm788, %v4822, 0.0
        %v4833 = vadd.f32 %v4831, %v4832
        %v4834 = vsel %vm788, %v4823, 0.0
        %v4835 = vadd.f32 %v4833, %v4834
        %v4836 = vsel %vm788, %v4824, 0.0
        %v4837 = vadd.f32 %v4835, %v4836
        %v4838 = vsel %vm788, %v4825, 0.0
        %v4839 = vadd.f32 %v4837, %v4838
        %v4840 = vsel %vm788, %v4826, 0.0
        %v4841 = vadd.f32 %v4839, %v4840
        %v4842 = vrot.slane %v4841, 4
        %v4843 = vadd.f32 %v4841, %v4842
        %v4844 = vrot.slane %v4843, 2
        %v4845 = vadd.f32 %v4843, %v4844
        %v4846 = vrot.slane %v4845, 1
        %v4847 = vadd.f32 %v4845, %v4846
        %v4848 = vrcp.pop 64.0
        %v4849 = vmul.f32 %v4847, %v4848
        %v4850 = vsub.f32 %v4819, %v4849
        %v4851 = vsub.f32 %v4820, %v4849
        %v4852 = vsub.f32 %v4821, %v4849
        %v4853 = vsub.f32 %v4822, %v4849
        %v4854 = vsub.f32 %v4823, %v4849
        %v4855 = vsub.f32 %v4824, %v4849
        %v4856 = vsub.f32 %v4825, %v4849
        %v4857 = vsub.f32 %v4826, %v4849
        %v4858 = vmul.f32 %v4850, %v4850
        %v4859 = vmul.f32 %v4851, %v4851
        %v4860 = vmul.f32 %v4852, %v4852
        %v4861 = vmul.f32 %v4853, %v4853
        %v4862 = vmul.f32 %v4854, %v4854
        %v4863 = vmul.f32 %v4855, %v4855
        %v4864 = vmul.f32 %v4856, %v4856
        %v4865 = vmul.f32 %v4857, %v4857
        %v4866 = vsel %vm788, %v4858, 0.0
        %v4867 = vsel %vm788, %v4859, 0.0
        %v4868 = vadd.f32 %v4866, %v4867
        %v4869 = vsel %vm788, %v4860, 0.0
        %v4870 = vadd.f32 %v4868, %v4869
        %v4871 = vsel %vm788, %v4861, 0.0
        %v4872 = vadd.f32 %v4870, %v4871
        %v4873 = vsel %vm788, %v4862, 0.0
        %v4874 = vadd.f32 %v4872, %v4873
        %v4875 = vsel %vm788, %v4863, 0.0
        %v4876 = vadd.f32 %v4874, %v4875
        %v4877 = vsel %vm788, %v4864, 0.0
        %v4878 = vadd.f32 %v4876, %v4877
        %v4879 = vsel %vm788, %v4865, 0.0
        %v4880 = vadd.f32 %v4878, %v4879
        %v4881 = vrot.slane %v4880, 4
        %v4882 = vadd.f32 %v4880, %v4881
        %v4883 = vrot.slane %v4882, 2
        %v4884 = vadd.f32 %v4882, %v4883
        %v4885 = vrot.slane %v4884, 1
        %v4886 = vadd.f32 %v4884, %v4885
        %v4887 = vmul.f32 %v4886, %v4848
        %v4888 = vadd.f32 %v4887, 1e-05
        %v4889 = vrsqrt.pop %v4888
        %v4890 = vmul.f32 %v4850, %v4889
        %v4891 = vmul.f32 %v4851, %v4889
        %v4892 = vmul.f32 %v4852, %v4889
        %v4893 = vmul.f32 %v4853, %v4889
        %v4894 = vmul.f32 %v4854, %v4889
        %v4895 = vmul.f32 %v4855, %v4889
        %v4896 = vmul.f32 %v4856, %v4889
        %v4897 = vmul.f32 %v4857, %v4889
        %v4898 = vlaneseq
        %v4899 = vshrl.u32 %v4898, 7
        %v4900 = vsub.s32 2, %v4899
        %v4901 = vrot.slane %v587, %v4900
        %v4902 = vmul.f32 %v4890, %v4901
        %v4903 = vmul.f32 %v4891, %v4901
        %v4904 = vmul.f32 %v4892, %v4901
        %v4905 = vmul.f32 %v4893, %v4901
        %v4906 = vmul.f32 %v4894, %v4901
        %v4907 = vmul.f32 %v4895, %v4901
        %v4908 = vmul.f32 %v4896, %v4901
        %v4909 = vmul.f32 %v4897, %v4901
        %v4910 = vlaneseq
        %v4911 = vshrl.u32 %v4910, 7
        %v4912 = vsub.s32 3, %v4911
        %v4913 = vrot.slane %v587, %v4912
        %v4914 = vadd.f32 %v4902, %v4913
        %v4915 = vadd.f32 %v4903, %v4913
        %v4916 = vadd.f32 %v4904, %v4913
        %v4917 = vadd.f32 %v4905, %v4913
        %v4918 = vadd.f32 %v4906, %v4913
        %v4919 = vadd.f32 %v4907, %v4913
        %v4920 = vadd.f32 %v4908, %v4913
        %v4921 = vadd.f32 %v4909, %v4913
        %v4922 = vpack.c.bf16 %v4915, %v4914
        %v4923 = vpack.c.bf16 %v4917, %v4916
        %v4924 = vpack.c.bf16 %v4919, %v4918
        %v4925 = vpack.c.bf16 %v4921, %v4920
        %v4926 = vld [vmem:[%s514] sm:$0xf]
        %v4927 = vld [vmem:[%s514 + $0x4] sm:$0xf]
        %v4928 = vld [vmem:[%s514 + $0x8] sm:$0xf]
        %v4929 = vld [vmem:[%s514 + $0xc] sm:$0xf]
        %v4930 = vlaneseq
        %v4931 = vshrl.u32 %v4930, 7
        %v4932 = vsub.s32 4, %v4931
        %v4933 = vrot.slane %v587, %v4932
        %v4938 = vunpack.c.l.b16 %v4926
        %v4939 = vunpack.c.l.b16 %v4927
        %v4940 = vunpack.c.l.b16 %v4928
        %v4941 = vunpack.c.l.b16 %v4929
        %v4942 = vpack.c.b16 %v4939, %v4938
        %v4943 = vpack.c.b16 %v4941, %v4940
        %v4947 = vsel %vm788, %v4922, 0
        %v4950 = vsel %vm788, %v4923, 0
        %v4953 = vsel %vm788, %v4924, 0
        %v4956 = vsel %vm788, %v4925, 0
        %4958 = vmatprep.subr.bf16.mxu0 0
        %4959 = vmatpush1.bf16.msra.mxu0 %v4942
        %4960 = vmatprep.subr.bf16.mxu0 0
        %4961 = vmatpush1.bf16.msra.mxu0 %v4943
        %4962 = vmatprep.subr.bf16.mxu0 0
        %4963 = vmatpush1.bf16.msra.mxu0 0
        %4964 = vmatprep.subr.bf16.mxu0 0
        %4965 = vmatpush1.bf16.msra.mxu0 0
        %4966 = vmatprep.subr.bf16.mxu0 0
        %4967 = vmatpush1.bf16.msra.mxu0 0
        %4968 = vmatprep.subr.bf16.mxu0 0
        %4969 = vmatpush1.bf16.msra.mxu0 0
        %4970 = vmatprep.subr.bf16.mxu0 0
        %4971 = vmatpush1.bf16.msra.mxu0 0
        %4972 = vmatprep.subr.bf16.mxu0 0
        %4973 = vmatpush1.bf16.msra.mxu0 0
        %4974 = vmatprep.subr.bf16.mxu0 0
        %4975 = vmatpush1.bf16.msra.mxu0 0
        %4976 = vmatprep.subr.bf16.mxu0 0
        %4977 = vmatpush1.bf16.msra.mxu0 0
        %4978 = vmatprep.subr.bf16.mxu0 0
        %4979 = vmatpush1.bf16.msra.mxu0 0
        %4980 = vmatprep.subr.bf16.mxu0 0
        %4981 = vmatpush1.bf16.msra.mxu0 0
        %4982 = vmatprep.subr.bf16.mxu0 0
        %4983 = vmatpush1.bf16.msra.mxu0 0
        %4984 = vmatprep.subr.bf16.mxu0 0
        %4985 = vmatpush1.bf16.msra.mxu0 0
        %4986 = vmatprep.subr.bf16.mxu0 0
        %4987 = vmatpush1.bf16.msra.mxu0 0
        %4988 = vmatprep.subr.bf16.mxu0 0
        %4989 = vmatpush1.bf16.msra.mxu0 0
        %4990 = vmatprep.mubr.bf16.mxu0 0
        %4991 = vmatmul.mubr.bf16.gmra.mrb[0].mxu0 %v4947
        %v4992 = vpop.f32.mrb[0].mxu0
        %v4993 = vadd.f32 %v4933, %v4992
        %v4994 = vpop.f32.mrb[0].mxu0
        %v4995 = vpop.f32.mrb[0].mxu0
        %v4996 = vadd.f32 %v4933, %v4995
        %v4997 = vpop.f32.mrb[0].mxu0
        %4998 = vmatprep.mubr.bf16.mxu0 0
        %4999 = vmatmul.mubr.bf16.gmra.mrb[0].mxu0 %v4950
        %v5000 = vpop.f32.mrb[0].mxu0
        %v5001 = vadd.f32 %v4933, %v5000
        %v5002 = vpop.f32.mrb[0].mxu0
        %v5003 = vpop.f32.mrb[0].mxu0
        %v5004 = vadd.f32 %v4933, %v5003
        %v5005 = vpop.f32.mrb[0].mxu0
        %5006 = vmatprep.mubr.bf16.mxu0 0
        %5007 = vmatmul.mubr.bf16.gmra.mrb[0].mxu0 %v4953
        %v5008 = vpop.f32.mrb[0].mxu0
        %v5009 = vadd.f32 %v4933, %v5008
        %v5010 = vpop.f32.mrb[0].mxu0
        %v5011 = vpop.f32.mrb[0].mxu0
        %v5012 = vadd.f32 %v4933, %v5011
        %v5013 = vpop.f32.mrb[0].mxu0
        %5014 = vmatprep.mubr.bf16.mxu0 0
        %5015 = vmatmul.mubr.bf16.gmra.mrb[0].mxu0 %v4956
        %v5016 = vpop.f32.mrb[0].mxu0
        %v5017 = vadd.f32 %v4933, %v5016
        %v5018 = vpop.f32.mrb[0].mxu0
        %v5019 = vpop.f32.mrb[0].mxu0
        %v5020 = vadd.f32 %v4933, %v5019
        %v5021 = vpop.f32.mrb[0].mxu0
        %5022 = vdwg.mxu0
        %v5023 = vmul.f32 %v4993, 0.5
        %v5024 = vmul.f32 %v4996, 0.5
        %v5025 = vmul.f32 %v5001, 0.5
        %v5026 = vmul.f32 %v5004, 0.5
        %v5027 = vmul.f32 %v5009, 0.5
        %v5028 = vmul.f32 %v5012, 0.5
        %v5029 = vmul.f32 %v5017, 0.5
        %v5030 = vmul.f32 %v5020, 0.5
        %v5031 = vmul.f32 %v4993, 0.70710677
        %v5032 = vmul.f32 %v4996, 0.70710677
        %v5033 = vmul.f32 %v5001, 0.70710677
        %v5034 = vmul.f32 %v5004, 0.70710677
        %v5035 = vmul.f32 %v5009, 0.70710677
        %v5036 = vmul.f32 %v5012, 0.70710677
        %v5037 = vmul.f32 %v5017, 0.70710677
        %v5038 = vmul.f32 %v5020, 0.70710677
        %v5039 = verf.f32.pop %v5031
        %v5040 = verf.f32.pop %v5032
        %v5041 = verf.f32.pop %v5033
        %v5042 = verf.f32.pop %v5034
        %v5043 = verf.f32.pop %v5035
        %v5044 = verf.f32.pop %v5036
        %v5045 = verf.f32.pop %v5037
        %v5046 = verf.f32.pop %v5038
        %v5047 = vadd.f32 %v5039, 1.0
        %v5048 = vadd.f32 %v5040, 1.0
        %v5049 = vadd.f32 %v5041, 1.0
        %v5050 = vadd.f32 %v5042, 1.0
        %v5051 = vadd.f32 %v5043, 1.0
        %v5052 = vadd.f32 %v5044, 1.0
        %v5053 = vadd.f32 %v5045, 1.0
        %v5054 = vadd.f32 %v5046, 1.0
        %v5055 = vmul.f32 %v5023, %v5047
        %v5056 = vmul.f32 %v5024, %v5048
        %v5057 = vmul.f32 %v5025, %v5049
        %v5058 = vmul.f32 %v5026, %v5050
        %v5059 = vmul.f32 %v5027, %v5051
        %v5060 = vmul.f32 %v5028, %v5052
        %v5061 = vmul.f32 %v5029, %v5053
        %v5062 = vmul.f32 %v5030, %v5054
        %v5063 = vpack.c.bf16 %v5056, %v5055
        %v5064 = vpack.c.bf16 %v5058, %v5057
        %v5065 = vpack.c.bf16 %v5060, %v5059
        %v5066 = vpack.c.bf16 %v5062, %v5061
        %v5067 = vld [vmem:[%s523] sm:$0xf]
        %v5068 = vld [vmem:[%s523 + $0x4] sm:$0xf]
        %v5069 = vld [vmem:[%s523 + $0x8] sm:$0xf]
        %v5070 = vld [vmem:[%s523 + $0xc] sm:$0xf]
        %v5071 = vld [vmem:[%s523 + $0x10] sm:$0xf]
        %v5072 = vld [vmem:[%s523 + $0x14] sm:$0xf]
        %v5073 = vld [vmem:[%s523 + $0x18] sm:$0xf]
        %v5074 = vld [vmem:[%s523 + $0x1c] sm:$0xf]
        %v5075 = vlaneseq
        %v5076 = vshrl.u32 %v5075, 7
        %v5077 = vsub.s32 5, %v5076
        %v5078 = vrot.slane %v587, %v5077
        %v5087 = vunpack.c.l.b16 %v5067
        %v5088 = vunpack.c.l.b16 %v5068
        %v5089 = vunpack.c.l.b16 %v5069
        %v5090 = vunpack.c.l.b16 %v5070
        %v5091 = vunpack.c.l.b16 %v5071
        %v5092 = vunpack.c.l.b16 %v5072
        %v5093 = vunpack.c.l.b16 %v5073
        %v5094 = vunpack.c.l.b16 %v5074
        %v5095 = vpack.c.b16 %v5088, %v5087
        %v5096 = vpack.c.b16 %v5090, %v5089
        %v5097 = vpack.c.b16 %v5092, %v5091
        %v5098 = vpack.c.b16 %v5094, %v5093
        %vm5103 = vcmask 523264
        %v5105 = vsel %vm5103, %v5063, 0
        %v5108 = vsel %vm5103, %v5064, 0
        %v5111 = vsel %vm5103, %v5065, 0
        %v5114 = vsel %vm5103, %v5066, 0
        %5116 = vmatprep.subr.bf16.mxu0 0
        %5117 = vmatpush1.bf16.msra.mxu0 %v5095
        %5118 = vmatprep.subr.bf16.mxu0 0
        %5119 = vmatpush1.bf16.msra.mxu0 %v5096
        %5120 = vmatprep.subr.bf16.mxu0 0
        %5121 = vmatpush1.bf16.msra.mxu0 %v5097
        %5122 = vmatprep.subr.bf16.mxu0 0
        %5123 = vmatpush1.bf16.msra.mxu0 %v5098
        %5124 = vmatprep.subr.bf16.mxu0 0
        %5125 = vmatpush1.bf16.msra.mxu0 0
        %5126 = vmatprep.subr.bf16.mxu0 0
        %5127 = vmatpush1.bf16.msra.mxu0 0
        %5128 = vmatprep.subr.bf16.mxu0 0
        %5129 = vmatpush1.bf16.msra.mxu0 0
        %5130 = vmatprep.subr.bf16.mxu0 0
        %5131 = vmatpush1.bf16.msra.mxu0 0
        %5132 = vmatprep.subr.bf16.mxu0 0
        %5133 = vmatpush1.bf16.msra.mxu0 0
        %5134 = vmatprep.subr.bf16.mxu0 0
        %5135 = vmatpush1.bf16.msra.mxu0 0
        %5136 = vmatprep.subr.bf16.mxu0 0
        %5137 = vmatpush1.bf16.msra.mxu0 0
        %5138 = vmatprep.subr.bf16.mxu0 0
        %5139 = vmatpush1.bf16.msra.mxu0 0
        %5140 = vmatprep.subr.bf16.mxu0 0
        %5141 = vmatpush1.bf16.msra.mxu0 0
        %5142 = vmatprep.subr.bf16.mxu0 0
        %5143 = vmatpush1.bf16.msra.mxu0 0
        %5144 = vmatprep.subr.bf16.mxu0 0
        %5145 = vmatpush1.bf16.msra.mxu0 0
        %5146 = vmatprep.subr.bf16.mxu0 0
        %5147 = vmatpush1.bf16.msra.mxu0 0
        %5148 = vmatprep.mubr.bf16.mxu0 0
        %5149 = vmatmul.mubr.bf16.gmra.mrb[0].mxu0 %v5105
        %v5150 = vpop.f32.mrb[0].mxu0
        %v5151 = vadd.f32 %v5078, %v5150
        %v5152 = vpop.f32.mrb[0].mxu0
        %v5153 = vpop.f32.mrb[0].mxu0
        %v5154 = vadd.f32 %v5078, %v5153
        %v5155 = vpop.f32.mrb[0].mxu0
        %5156 = vmatprep.mubr.bf16.mxu0 0
        %5157 = vmatmul.mubr.bf16.gmra.mrb[0].mxu0 %v5108
        %v5158 = vpop.f32.mrb[0].mxu0
        %v5159 = vadd.f32 %v5078, %v5158
        %v5160 = vpop.f32.mrb[0].mxu0
        %v5161 = vpop.f32.mrb[0].mxu0
        %v5162 = vadd.f32 %v5078, %v5161
        %v5163 = vpop.f32.mrb[0].mxu0
        %5164 = vmatprep.mubr.bf16.mxu0 0
        %5165 = vmatmul.mubr.bf16.gmra.mrb[0].mxu0 %v5111
        %v5166 = vpop.f32.mrb[0].mxu0
        %v5167 = vadd.f32 %v5078, %v5166
        %v5168 = vpop.f32.mrb[0].mxu0
        %v5169 = vpop.f32.mrb[0].mxu0
        %v5170 = vadd.f32 %v5078, %v5169
        %v5171 = vpop.f32.mrb[0].mxu0
        %5172 = vmatprep.mubr.bf16.mxu0 0
        %5173 = vmatmul.mubr.bf16.gmra.mrb[0].mxu0 %v5114
        %v5174 = vpop.f32.mrb[0].mxu0
        %v5175 = vadd.f32 %v5078, %v5174
        %v5176 = vpop.f32.mrb[0].mxu0
        %v5177 = vpop.f32.mrb[0].mxu0
        %v5178 = vadd.f32 %v5078, %v5177
        %v5179 = vpop.f32.mrb[0].mxu0
        %5180 = vdwg.mxu0
        %v5181 = vadd.f32 %v4914, %v5151
        %v5182 = vadd.f32 %v4915, %v5154
        %v5183 = vadd.f32 %v4916, %v5159
        %v5184 = vadd.f32 %v4917, %v5162
        %v5185 = vadd.f32 %v4918, %v5167
        %v5186 = vadd.f32 %v4919, %v5170
        %v5187 = vadd.f32 %v4920, %v5175
        %v5188 = vadd.f32 %v4921, %v5178
        %v5189 = vsel %vm788, %v5181, 0.0
        %v5190 = vsel %vm788, %v5182, 0.0
        %v5191 = vadd.f32 %v5189, %v5190
        %v5192 = vsel %vm788, %v5183, 0.0
        %v5193 = vadd.f32 %v5191, %v5192
        %v5194 = vsel %vm788, %v5184, 0.0
        %v5195 = vadd.f32 %v5193, %v5194
        %v5196 = vsel %vm788, %v5185, 0.0
        %v5197 = vadd.f32 %v5195, %v5196
        %v5198 = vsel %vm788, %v5186, 0.0
        %v5199 = vadd.f32 %v5197, %v5198
        %v5200 = vsel %vm788, %v5187, 0.0
        %v5201 = vadd.f32 %v5199, %v5200
        %v5202 = vsel %vm788, %v5188, 0.0
        %v5203 = vadd.f32 %v5201, %v5202
        %v5204 = vrot.slane %v5203, 4
        %v5205 = vadd.f32 %v5203, %v5204
        %v5206 = vrot.slane %v5205, 2
        %v5207 = vadd.f32 %v5205, %v5206
        %v5208 = vrot.slane %v5207, 1
        %v5209 = vadd.f32 %v5207, %v5208
        %v5210 = vmul.f32 %v5209, %v4848
        %v5211 = vsub.f32 %v5181, %v5210
        %v5212 = vsub.f32 %v5182, %v5210
        %v5213 = vsub.f32 %v5183, %v5210
        %v5214 = vsub.f32 %v5184, %v5210
        %v5215 = vsub.f32 %v5185, %v5210
        %v5216 = vsub.f32 %v5186, %v5210
        %v5217 = vsub.f32 %v5187, %v5210
        %v5218 = vsub.f32 %v5188, %v5210
        %v5219 = vmul.f32 %v5211, %v5211
        %v5220 = vmul.f32 %v5212, %v5212
        %v5221 = vmul.f32 %v5213, %v5213
        %v5222 = vmul.f32 %v5214, %v5214
        %v5223 = vmul.f32 %v5215, %v5215
        %v5224 = vmul.f32 %v5216, %v5216
        %v5225 = vmul.f32 %v5217, %v5217
        %v5226 = vmul.f32 %v5218, %v5218
        %v5227 = vsel %vm788, %v5219, 0.0
        %v5228 = vsel %vm788, %v5220, 0.0
        %v5229 = vadd.f32 %v5227, %v5228
        %v5230 = vsel %vm788, %v5221, 0.0
        %v5231 = vadd.f32 %v5229, %v5230
        %v5232 = vsel %vm788, %v5222, 0.0
        %v5233 = vadd.f32 %v5231, %v5232
        %v5234 = vsel %vm788, %v5223, 0.0
        %v5235 = vadd.f32 %v5233, %v5234
        %v5236 = vsel %vm788, %v5224, 0.0
        %v5237 = vadd.f32 %v5235, %v5236
        %v5238 = vsel %vm788, %v5225, 0.0
        %v5239 = vadd.f32 %v5237, %v5238
        %v5240 = vsel %vm788, %v5226, 0.0
        %v5241 = vadd.f32 %v5239, %v5240
        %v5242 = vrot.slane %v5241, 4
        %v5243 = vadd.f32 %v5241, %v5242
        %v5244 = vrot.slane %v5243, 2
        %v5245 = vadd.f32 %v5243, %v5244
        %v5246 = vrot.slane %v5245, 1
        %v5247 = vadd.f32 %v5245, %v5246
        %v5248 = vmul.f32 %v5247, %v4848
        %v5249 = vadd.f32 %v5248, 1e-05
        %v5250 = vrsqrt.pop %v5249
        %v5251 = vmul.f32 %v5211, %v5250
        %v5252 = vmul.f32 %v5212, %v5250
        %v5253 = vmul.f32 %v5213, %v5250
        %v5254 = vmul.f32 %v5214, %v5250
        %v5255 = vmul.f32 %v5215, %v5250
        %v5256 = vmul.f32 %v5216, %v5250
        %v5257 = vmul.f32 %v5217, %v5250
        %v5258 = vmul.f32 %v5218, %v5250
        %v5259 = vlaneseq
        %v5260 = vshrl.u32 %v5259, 7
        %v5261 = vsub.s32 6, %v5260
        %v5262 = vrot.slane %v587, %v5261
        %v5263 = vmul.f32 %v5251, %v5262
        %v5264 = vmul.f32 %v5252, %v5262
        %v5265 = vmul.f32 %v5253, %v5262
        %v5266 = vmul.f32 %v5254, %v5262
        %v5267 = vmul.f32 %v5255, %v5262
        %v5268 = vmul.f32 %v5256, %v5262
        %v5269 = vmul.f32 %v5257, %v5262
        %v5270 = vmul.f32 %v5258, %v5262
        %v5271 = vlaneseq
        %v5272 = vshrl.u32 %v5271, 7
        %v5273 = vsub.s32 7, %v5272
        %v5274 = vrot.slane %v587, %v5273
        %v5275 = vadd.f32 %v5263, %v5274
        %v5276 = vadd.f32 %v5264, %v5274
        %v5277 = vadd.f32 %v5265, %v5274
        %v5278 = vadd.f32 %v5266, %v5274
        %v5279 = vadd.f32 %v5267, %v5274
        %v5280 = vadd.f32 %v5268, %v5274
        %v5281 = vadd.f32 %v5269, %v5274
        %v5282 = vadd.f32 %v5270, %v5274
        %5283 = vst.msk [vmem:[#allocation2] sm:$0xff] %vm788, %v5275
        %5284 = vst.msk [vmem:[#allocation2 + $0x8] sm:$0xff] %vm788, %v5276
        %5285 = vst.msk [vmem:[#allocation2 + $0x10] sm:$0xff] %vm788, %v5277
        %5286 = vst.msk [vmem:[#allocation2 + $0x18] sm:$0xff] %vm788, %v5278
        %5287 = vst.msk [vmem:[#allocation2 + $0x20] sm:$0xff] %vm788, %v5279
        %5288 = vst.msk [vmem:[#allocation2 + $0x28] sm:$0xff] %vm788, %v5280
        %5289 = vst.msk [vmem:[#allocation2 + $0x30] sm:$0xff] %vm788, %v5281
        %5290 = vst.msk [vmem:[#allocation2 + $0x38] sm:$0xff] %vm788, %v5282
        %p5291 = scmp.eq.s32.totalorder %s28, 1
        // Predicated region
        $region97: #{tpu_custom_call.1} parent=55 // pred_check
          %p5292 = pneg %p5291
        $region98: #{tpu_custom_call.1} parent=55 // pred_check_branch
          %5294 = sbr.rel (%p5292) target = $region100
        $region99: #{tpu_custom_call.1} parent=55 // pred_region
          %5295 = vst.msk [vmem:[#allocation18] sm:$0xff] %vm788, %v5275
          %5296 = vst.msk [vmem:[#allocation18 + $0x8] sm:$0xff] %vm788, %v5276
          %5297 = vst.msk [vmem:[#allocation18 + $0x10] sm:$0xff] %vm788, %v5277
          %5298 = vst.msk [vmem:[#allocation18 + $0x18] sm:$0xff] %vm788, %v5278
          %5299 = vst.msk [vmem:[#allocation18 + $0x20] sm:$0xff] %vm788, %v5279
          %5300 = vst.msk [vmem:[#allocation18 + $0x28] sm:$0xff] %vm788, %v5280
          %5301 = vst.msk [vmem:[#allocation18 + $0x30] sm:$0xff] %vm788, %v5281
          %5302 = vst.msk [vmem:[#allocation18 + $0x38] sm:$0xff] %vm788, %v5282
          %5303 = vst.msk [vmem:[#allocation20] sm:$0xff] %vm981, %v2995
          %5304 = vst.msk [vmem:[#allocation20 + $0x8] sm:$0xff] %vm981, %v2996
          %5305 = vst.msk [vmem:[#allocation20 + $0x10] sm:$0xff] %vm981, %v2997
          %5306 = vst.msk [vmem:[#allocation20 + $0x18] sm:$0xff] %vm981, %v2998
          %5307 = vst.msk [vmem:[#allocation20 + $0x20] sm:$0xff] %vm981, %v2999
          %5308 = vst.msk [vmem:[#allocation20 + $0x28] sm:$0xff] %vm981, %v3000
          %5309 = vst.msk [vmem:[#allocation20 + $0x30] sm:$0xff] %vm981, %v3001
          %5310 = vst.msk [vmem:[#allocation20 + $0x38] sm:$0xff] %vm981, %v3002
          %5311 = vst.msk [vmem:[#allocation20 + $0x40] sm:$0xff] %vm981, %v3003
          %5312 = vst.msk [vmem:[#allocation20 + $0x48] sm:$0xff] %vm981, %v3004
          %5313 = vst.msk [vmem:[#allocation20 + $0x50] sm:$0xff] %vm981, %v3005
          %5314 = vst.msk [vmem:[#allocation20 + $0x58] sm:$0xff] %vm981, %v3006
          %5315 = vst.msk [vmem:[#allocation20 + $0x60] sm:$0xff] %vm981, %v3007
          %5316 = vst.msk [vmem:[#allocation20 + $0x68] sm:$0xff] %vm981, %v3008
          %5317 = vst.msk [vmem:[#allocation20 + $0x70] sm:$0xff] %vm981, %v3009
          %5318 = vst.msk [vmem:[#allocation20 + $0x78] sm:$0xff] %vm981, %v3010
          %5319 = vst.msk [vmem:[#allocation20 + $0x80] sm:$0xff] %vm981, %v3011
          %5320 = vst.msk [vmem:[#allocation20 + $0x88] sm:$0xff] %vm981, %v3012
          %5321 = vst.msk [vmem:[#allocation20 + $0x90] sm:$0xff] %vm981, %v3013
          %5322 = vst.msk [vmem:[#allocation20 + $0x98] sm:$0xff] %vm981, %v3014
          %5323 = vst.msk [vmem:[#allocation20 + $0xa0] sm:$0xff] %vm981, %v3015
          %5324 = vst.msk [vmem:[#allocation20 + $0xa8] sm:$0xff] %vm981, %v3016
          %5325 = vst.msk [vmem:[#allocation20 + $0xb0] sm:$0xff] %vm981, %v3017
          %5326 = vst.msk [vmem:[#allocation20 + $0xb8] sm:$0xff] %vm981, %v3018
          %5327 = vst.msk [vmem:[#allocation20 + $0xc0] sm:$0xff] %vm981, %v3019
          %5328 = vst.msk [vmem:[#allocation20 + $0xc8] sm:$0xff] %vm981, %v3020
          %5329 = vst.msk [vmem:[#allocation20 + $0xd0] sm:$0xff] %vm981, %v3021
          %5330 = vst.msk [vmem:[#allocation20 + $0xd8] sm:$0xff] %vm981, %v3022
          %5331 = vst.msk [vmem:[#allocation20 + $0xe0] sm:$0xff] %vm981, %v3023
          %5332 = vst.msk [vmem:[#allocation20 + $0xe8] sm:$0xff] %vm981, %v3024
          %5333 = vst.msk [vmem:[#allocation20 + $0xf0] sm:$0xff] %vm981, %v3025
          %5334 = vst.msk [vmem:[#allocation20 + $0xf8] sm:$0xff] %vm981, %v3026
        $region100: #{tpu_custom_call.1} parent=55 // pred_fallthru
          _
        // Predicated region
        $region101: #{tpu_custom_call.1} parent=55 // pred_check
          %p5335 = pneg %p255
        $region102: #{tpu_custom_call.1} parent=55 // pred_check_branch
          %5337 = sbr.rel (%p5335) target = $region104
        $region103: #{tpu_custom_call.1} parent=55 // pred_region
          %s5339 = ssub.s32 1024, 1024
          %5340 = vsyncadd [#allocation6], %s5339
          %s5341 = sshll.u32 [#allocation17], 4
          %s5342 = int_to_ptr.vmem [resolvable:$true] %s5341
          %5347 = dma.vmem_to_hbm [thread:$0]  %s5342, 1024, %s9, [#allocation6], 128, 128, 8
        $region104: #{tpu_custom_call.1} parent=55 // pred_fallthru
          _
        // Predicated region
        $region105: #{tpu_custom_call.1} parent=55 // pred_check
          %p5348 = pneg %p276
        $region106: #{tpu_custom_call.1} parent=55 // pred_check_branch
          %5350 = sbr.rel (%p5348) target = $region108
        $region107: #{tpu_custom_call.1} parent=55 // pred_region
          %s5352 = ssub.s32 1024, 1024
          %5353 = vsyncadd [#allocation19], %s5352
          %s5354 = sshll.u32 [#allocation18], 4
          %s5355 = int_to_ptr.vmem [resolvable:$true] %s5354
          %5360 = dma.vmem_to_hbm [thread:$0]  %s5355, 1024, %s10, [#allocation19], 128, 128, 8
        $region108: #{tpu_custom_call.1} parent=55 // pred_fallthru
          _
        // Predicated region
        $region109: #{tpu_custom_call.1} parent=55 // pred_check
          %p5361 = pneg %p297
        $region110: #{tpu_custom_call.1} parent=55 // pred_check_branch
          %5363 = sbr.rel (%p5361) target = $region112
        $region111: #{tpu_custom_call.1} parent=55 // pred_region
          %s5365 = ssub.s32 4096, 4096
          %5366 = vsyncadd [#allocation19], %s5365
          %s5367 = sshll.u32 [#allocation20], 4
          %s5368 = int_to_ptr.vmem [resolvable:$true] %s5367
          %5373 = dma.vmem_to_hbm [thread:$0]  %s5368, 4096, %s11, [#allocation19], 128, 128, 8
        $region112: #{tpu_custom_call.1} parent=55 // pred_fallthru
          _
        // Predicated region
        $region113: #{tpu_custom_call.1} parent=55 // pred_check
          %p5374 = pneg %p255
        $region114: #{tpu_custom_call.1} parent=55 // pred_check_branch
          %5376 = sbr.rel (%p5374) target = $region116
        $region115: #{tpu_custom_call.1} parent=55 // pred_region
          %5377 = dma.done [#allocation6], 1024
        $region116: #{tpu_custom_call.1} parent=55 // pred_fallthru
          _
        // Predicated region
        $region117: #{tpu_custom_call.1} parent=55 // pred_check
          %p5378 = pneg %p276
        $region118: #{tpu_custom_call.1} parent=55 // pred_check_branch
          %5380 = sbr.rel (%p5378) target = $region120
        $region119: #{tpu_custom_call.1} parent=55 // pred_region
          %5381 = dma.done [#allocation19], 1024
        $region120: #{tpu_custom_call.1} parent=55 // pred_fallthru
          _
        // Predicated region
        $region121: #{tpu_custom_call.1} parent=55 // pred_check
          %p5382 = pneg %p297
        $region122: #{tpu_custom_call.1} parent=55 // pred_check_branch
          %5384 = sbr.rel (%p5382) target = $region124
        $region123: #{tpu_custom_call.1} parent=55 // pred_region
          %5385 = dma.done [#allocation19], 4096
        $region124: #{tpu_custom_call.1} parent=55 // pred_fallthru
          _
      $region56: #{tpu_custom_call.1} parent=5 // pred_fallthru
        _
      %p5386 = scmp.le.s32.totalorder 2, %s23
      // Predicated region
      $region125: #{tpu_custom_call.1} parent=5 // pred_check
        %p5387 = pneg %p5386
      $region126: #{tpu_custom_call.1} parent=5 // pred_check_branch
        %5389 = sbr.rel (%p5387) target = $region128
      $region127: #{tpu_custom_call.1} parent=5 // pred_region
        %s5390 = ssub.s32 %s23, 2
      $region128: #{tpu_custom_call.1} parent=5 // pred_fallthru
        _
    $region6: #{tpu_custom_call.1} parent=1 // loop_footer
      %s27 = sadd.s32 1, %s23
    $region7: #{tpu_custom_call.1} parent=1 // loop_footer_branch
      %22 = sbr.rel target = $region3
    $region8: #{tpu_custom_call.1} parent=1 // loop_exit
      _
    %5391 = vsyncpa [#allocation5], 1
    %s5392 = scalar_lea.sflag [#allocation5], 1
    %5393 = vsyncpa %s5392, 1
    %5394 = vsyncpa [#allocation8], 1
    %5395 = vsyncpa [#allocation11], 1
    %5396 = vsyncpa [#allocation6], 1
    %s5397 = scalar_lea.sflag [#allocation6], 1
    %5398 = vsyncpa %s5397, 1
    %5399 = vsyncpa [#allocation19], 1

</llo_original>
